<compile_context>
chip_gen: v7x
topology: tpu7x:2x2x1
jax: 0.10.0
libtpu: 0.0.40
codegen_flags: <defaults>
</compile_context>

<pallas_src>
import functools

import jax
import jax.numpy as jnp
from jax.experimental import pallas as pl
from jax.experimental.pallas import tpu as pltpu


# ---------------------------------------------------------------------------
# Kernel
# ---------------------------------------------------------------------------
def _seghead_kernel(x_ref, w1_ref, b1_ref, w2_ref, b2_ref,
                    ry1_ref, rxt1_ref, ry2_ref, rxt2_ref,
                    ry3_ref, rxt3_ref, ry4_ref, rxt4_ref,
                    out_ref, *, in_chans):
    # x_ref   : (1, C_in, H, W)        VMEM
    # w1_ref  : (2, C_in)   SMEM       first 1x1 conv weight
    # b1_ref  : (2,)        SMEM
    # w2_ref  : (2, 2)      SMEM       shared conv1 (1x1) weight
    # b2_ref  : (2,)        SMEM
    # ry*/rxt*: interpolation matrices (VMEM, constant across grid)
    # out_ref : (1, 2, H_out, W_out)

    # ---- first 1x1 conv: in_chans -> 2 planes (VPU scalar-broadcast FMAs) ----
    planes = [x_ref[0, c] for c in range(in_chans)]        # each (H, W)

    def conv_in(o):
        acc = planes[0] * w1_ref[o, 0]
        for c in range(1, in_chans):
            acc = acc + planes[c] * w1_ref[o, c]
        return acc + b1_ref[o]

    p0, p1 = conv_in(0), conv_in(1)

    # ---- helpers ------------------------------------------------------------
    def upsample(p, ry_ref, rxt_ref):
        # bilinear(align_corners=True) == Ry @ p @ RxT  (separable, exact)
        t = jnp.dot(ry_ref[...], p, preferred_element_type=jnp.float32)
        return jnp.dot(t, rxt_ref[...], preferred_element_type=jnp.float32)

    def mix(a, b):
        # conv1: 2 -> 2 channel mixing (1x1 conv)
        o0 = a * w2_ref[0, 0] + b * w2_ref[0, 1] + b2_ref[0]
        o1 = a * w2_ref[1, 0] + b * w2_ref[1, 1] + b2_ref[1]
        return o0, o1

    # ---- three (upsample -> conv1) stages -----------------------------------
    for ry_ref, rxt_ref in ((ry1_ref, rxt1_ref),
                            (ry2_ref, rxt2_ref),
                            (ry3_ref, rxt3_ref)):
        p0, p1 = mix(upsample(p0, ry_ref, rxt_ref),
                     upsample(p1, ry_ref, rxt_ref))

    # ---- final upsample to img_size -----------------------------------------
    out_ref[0, 0] = upsample(p0, ry4_ref, rxt4_ref).astype(out_ref.dtype)
    out_ref[0, 1] = upsample(p1, ry4_ref, rxt4_ref).astype(out_ref.dtype)


# ---------------------------------------------------------------------------
# Wrapper
# ---------------------------------------------------------------------------
def _interp_matrix(n_out, n_in):
    """Row-interpolation matrix M (n_out, n_in) for bilinear align_corners=True:
    out = M @ inp along that axis."""
    if n_in == 1:
        return jnp.ones((n_out, 1), jnp.float32)
    if n_out == 1:
        return jnp.zeros((1, n_in), jnp.float32).at[0, 0].set(1.0)
    scale = (n_in - 1) / (n_out - 1)
    src = jnp.arange(n_out, dtype=jnp.float32) * scale
    lo = jnp.clip(jnp.floor(src).astype(jnp.int32), 0, n_in - 2)
    frac = src - lo.astype(jnp.float32)
    rows = jnp.arange(n_out)
    m = jnp.zeros((n_out, n_in), jnp.float32)
    m = m.at[rows, lo].add(1.0 - frac)
    m = m.at[rows, lo + 1].add(frac)
    return m


def seghead_forward(x, w_conv, b_conv, w_conv1, b_conv1, img_size):
    """x: (B, C_in, H, W); w_conv: (2, C_in, 1, 1); b_conv: (2,);
    w_conv1: (2, 2, 1, 1); b_conv1: (2,); img_size: (H_out, W_out)."""
    B, C_in, H, W = x.shape
    OUT_C = 2
    Ho, Wo = int(img_size[0]), int(img_size[1])

    # Interpolation matrices for the four resizes.
    sizes = [(H, W), (2 * H, 4 * W), (4 * H, 8 * W), (8 * H, 16 * W), (Ho, Wo)]
    mats = []
    for (hi, wi), (ho, wo) in zip(sizes[:-1], sizes[1:]):
        mats.append(_interp_matrix(ho, hi))          # Ry  : (h_out, h_in)
        mats.append(_interp_matrix(wo, wi).T)        # RxT : (w_in, w_out)

    w1 = w_conv.reshape(OUT_C, C_in).astype(jnp.float32)
    b1 = b_conv.astype(jnp.float32)
    w2 = w_conv1.reshape(OUT_C, OUT_C).astype(jnp.float32)
    b2 = b_conv1.astype(jnp.float32)

    kernel = functools.partial(_seghead_kernel, in_chans=C_in)

    smem_spec = pl.BlockSpec(memory_space=pltpu.MemorySpace.SMEM)
    mat_specs = [pl.BlockSpec(m.shape, lambda b: (0, 0)) for m in mats]

    out = pl.pallas_call(
        kernel,
        out_shape=jax.ShapeDtypeStruct((B, OUT_C, Ho, Wo), x.dtype),
        grid_spec=pltpu.PrefetchScalarGridSpec(
            num_scalar_prefetch=0,
            grid=(B,),
            in_specs=[
                pl.BlockSpec((1, C_in, H, W), lambda b: (b, 0, 0, 0)),   # x
                smem_spec,                                               # w1
                smem_spec,                                               # b1
                smem_spec,                                               # w2
                smem_spec,                                               # b2
            ] + mat_specs,
            out_specs=pl.BlockSpec((1, OUT_C, Ho, Wo), lambda b: (b, 0, 0, 0)),
        ),
        compiler_params=pltpu.CompilerParams(
            dimension_semantics=("parallel",)),
    )(x, w1, b1, w2, b2, *mats)
    return out


# ---------------------------------------------------------------------------
# Pure-JAX reference (independent gather-based bilinear, matches PyTorch
# F.interpolate(mode='bilinear', align_corners=True))
# ---------------------------------------------------------------------------
def _bilinear_align_corners(x, out_h, out_w):
    B, C, H, W = x.shape

    def coords(n_out, n_in):
        if n_in == 1 or n_out == 1:
            z = jnp.zeros((n_out,), jnp.int32)
            return z, z, jnp.zeros((n_out,), jnp.float32)
        scale = (n_in - 1) / (n_out - 1)
        src = jnp.arange(n_out, dtype=jnp.float32) * scale
        lo = jnp.clip(jnp.floor(src).astype(jnp.int32), 0, n_in - 2)
        return lo, lo + 1, src - lo.astype(jnp.float32)

    y0, y1, wy = coords(out_h, H)
    x0, x1, wx = coords(out_w, W)
    rows = (x[:, :, y0, :] * (1.0 - wy)[None, None, :, None]
            + x[:, :, y1, :] * wy[None, None, :, None])
    return (rows[:, :, :, x0] * (1.0 - wx)[None, None, None, :]
            + rows[:, :, :, x1] * wx[None, None, None, :])


def _reference(x, w1, b1, w2, b2, img_size):
    def conv(t, w, b):
        return jnp.einsum("bchw,oc->bohw", t, w) + b[None, :, None, None]

    y = conv(x, w1, b1)
    _, _, h, w = y.shape
    y = _bilinear_align_corners(y, 2 * h, 4 * w)
    y = conv(y, w2, b2)
    y = _bilinear_align_corners(y, 4 * h, 8 * w)
    y = conv(y, w2, b2)
    y = _bilinear_align_corners(y, 8 * h, 16 * w)
    y = conv(y, w2, b2)
    y = _bilinear_align_corners(y, img_size[0], img_size[1])
    return y


if __name__ == "__main__":
    B, C_in, H, W = 2, 4, 16, 16
    img_size = (96, 192)

    key = jax.random.PRNGKey(0)
    kx, kw1, kb1, kw2, kb2 = jax.random.split(key, 5)
    x = jax.random.normal(kx, (B, C_in, H, W), dtype=jnp.float32)
    w_conv = jax.random.normal(kw1, (2, C_in, 1, 1), dtype=jnp.float32) * 0.5
    b_conv = jax.random.normal(kb1, (2,), dtype=jnp.float32) * 0.1
    w_conv1 = jax.random.normal(kw2, (2, 2, 1, 1), dtype=jnp.float32) * 0.5
    b_conv1 = jax.random.normal(kb2, (2,), dtype=jnp.float32) * 0.1

    out = seghead_forward(x, w_conv, b_conv, w_conv1, b_conv1, img_size)
    out = jax.block_until_ready(out)

    ref = _reference(x, w_conv.reshape(2, C_in), b_conv,
                     w_conv1.reshape(2, 2), b_conv1, img_size)
    assert out.shape == (B, 2, img_size[0], img_size[1])
    assert jnp.allclose(out, ref, rtol=1e-3, atol=1e-3), "output mismatch"

    print("KERNEL_OK")
</pallas_src>

<mosaic_0001>
module attributes {stable_mosaic.version = 11 : i64} {
  func.func @_seghead_kernel(%arg0: i32, %arg1: memref<1x4x16x16xf32, #tpu.memory_space<vmem>>, %arg2: memref<2x4xf32, #tpu.memory_space<smem>>, %arg3: memref<2xf32, #tpu.memory_space<smem>>, %arg4: memref<2x2xf32, #tpu.memory_space<smem>>, %arg5: memref<2xf32, #tpu.memory_space<smem>>, %arg6: memref<32x16xf32, #tpu.memory_space<vmem>>, %arg7: memref<16x64xf32, #tpu.memory_space<vmem>>, %arg8: memref<64x32xf32, #tpu.memory_space<vmem>>, %arg9: memref<64x128xf32, #tpu.memory_space<vmem>>, %arg10: memref<128x64xf32, #tpu.memory_space<vmem>>, %arg11: memref<128x256xf32, #tpu.memory_space<vmem>>, %arg12: memref<96x128xf32, #tpu.memory_space<vmem>>, %arg13: memref<256x192xf32, #tpu.memory_space<vmem>>, %arg14: memref<1x2x96x192xf32, #tpu.memory_space<vmem>>) attributes {dimension_semantics = [#tpu.dimension_semantics<parallel>], iteration_bounds = array<i64: 2>, scalar_prefetch = 0 : i64, scratch_operands = 0 : i64, tpu.core_type = #tpu.core_type<tc>, window_params = [{transform_indices = @transform_0, window_bounds = array<i64: 1, 4, 16, 16>}, {transform_indices = @transform_1, window_bounds = array<i64: 2, 4>}, {transform_indices = @transform_2, window_bounds = array<i64: 2>}, {transform_indices = @transform_3, window_bounds = array<i64: 2, 2>}, {transform_indices = @transform_4, window_bounds = array<i64: 2>}, {pipeline_mode = #tpu.pipeline_mode<synchronous>, transform_indices = @transform_5, window_bounds = array<i64: 32, 16>}, {pipeline_mode = #tpu.pipeline_mode<synchronous>, transform_indices = @transform_6, window_bounds = array<i64: 16, 64>}, {pipeline_mode = #tpu.pipeline_mode<synchronous>, transform_indices = @transform_7, window_bounds = array<i64: 64, 32>}, {pipeline_mode = #tpu.pipeline_mode<synchronous>, transform_indices = @transform_8, window_bounds = array<i64: 64, 128>}, {pipeline_mode = #tpu.pipeline_mode<synchronous>, transform_indices = @transform_9, window_bounds = array<i64: 128, 64>}, {pipeline_mode = #tpu.pipeline_mode<synchronous>, transform_indices = @transform_10, window_bounds = array<i64: 128, 256>}, {pipeline_mode = #tpu.pipeline_mode<synchronous>, transform_indices = @transform_11, window_bounds = array<i64: 96, 128>}, {pipeline_mode = #tpu.pipeline_mode<synchronous>, transform_indices = @transform_12, window_bounds = array<i64: 256, 192>}, {transform_indices = @transform_13, window_bounds = array<i64: 1, 2, 96, 192>}]} {
    %c0 = arith.constant 0 : index
    %c0_0 = arith.constant 0 : index
    %c0_1 = arith.constant 0 : index
    %c0_2 = arith.constant 0 : index
    %0 = vector.load %arg1[%c0, %c0_0, %c0_1, %c0_2] : memref<1x4x16x16xf32, #tpu.memory_space<vmem>>, vector<1x1x16x16xf32>
    %1 = vector.shape_cast %0 : vector<1x1x16x16xf32> to vector<16x16xf32>
    %c0_3 = arith.constant 0 : index
    %c1 = arith.constant 1 : index
    %c0_4 = arith.constant 0 : index
    %c0_5 = arith.constant 0 : index
    %2 = vector.load %arg1[%c0_3, %c1, %c0_4, %c0_5] : memref<1x4x16x16xf32, #tpu.memory_space<vmem>>, vector<1x1x16x16xf32>
    %3 = vector.shape_cast %2 : vector<1x1x16x16xf32> to vector<16x16xf32>
    %c0_6 = arith.constant 0 : index
    %c2 = arith.constant 2 : index
    %c0_7 = arith.constant 0 : index
    %c0_8 = arith.constant 0 : index
    %4 = vector.load %arg1[%c0_6, %c2, %c0_7, %c0_8] : memref<1x4x16x16xf32, #tpu.memory_space<vmem>>, vector<1x1x16x16xf32>
    %5 = vector.shape_cast %4 : vector<1x1x16x16xf32> to vector<16x16xf32>
    %c0_9 = arith.constant 0 : index
    %c3 = arith.constant 3 : index
    %c0_10 = arith.constant 0 : index
    %c0_11 = arith.constant 0 : index
    %6 = vector.load %arg1[%c0_9, %c3, %c0_10, %c0_11] : memref<1x4x16x16xf32, #tpu.memory_space<vmem>>, vector<1x1x16x16xf32>
    %7 = vector.shape_cast %6 : vector<1x1x16x16xf32> to vector<16x16xf32>
    %c0_12 = arith.constant 0 : index
    %c0_13 = arith.constant 0 : index
    %8 = memref.load %arg2[%c0_12, %c0_13] : memref<2x4xf32, #tpu.memory_space<smem>>
    %9 = vector.broadcast %8 : f32 to vector<16x16xf32>
    %10 = arith.mulf %1, %9 : vector<16x16xf32>
    %c0_14 = arith.constant 0 : index
    %c1_15 = arith.constant 1 : index
    %11 = memref.load %arg2[%c0_14, %c1_15] : memref<2x4xf32, #tpu.memory_space<smem>>
    %12 = vector.broadcast %11 : f32 to vector<16x16xf32>
    %13 = arith.mulf %3, %12 : vector<16x16xf32>
    %14 = arith.addf %10, %13 : vector<16x16xf32>
    %c0_16 = arith.constant 0 : index
    %c2_17 = arith.constant 2 : index
    %15 = memref.load %arg2[%c0_16, %c2_17] : memref<2x4xf32, #tpu.memory_space<smem>>
    %16 = vector.broadcast %15 : f32 to vector<16x16xf32>
    %17 = arith.mulf %5, %16 : vector<16x16xf32>
    %18 = arith.addf %14, %17 : vector<16x16xf32>
    %c0_18 = arith.constant 0 : index
    %c3_19 = arith.constant 3 : index
    %19 = memref.load %arg2[%c0_18, %c3_19] : memref<2x4xf32, #tpu.memory_space<smem>>
    %20 = vector.broadcast %19 : f32 to vector<16x16xf32>
    %21 = arith.mulf %7, %20 : vector<16x16xf32>
    %22 = arith.addf %18, %21 : vector<16x16xf32>
    %c0_20 = arith.constant 0 : index
    %23 = memref.load %arg3[%c0_20] : memref<2xf32, #tpu.memory_space<smem>>
    %24 = vector.broadcast %23 : f32 to vector<16x16xf32>
    %25 = arith.addf %22, %24 : vector<16x16xf32>
    %c1_21 = arith.constant 1 : index
    %c0_22 = arith.constant 0 : index
    %26 = memref.load %arg2[%c1_21, %c0_22] : memref<2x4xf32, #tpu.memory_space<smem>>
    %27 = vector.broadcast %26 : f32 to vector<16x16xf32>
    %28 = arith.mulf %1, %27 : vector<16x16xf32>
    %c1_23 = arith.constant 1 : index
    %c1_24 = arith.constant 1 : index
    %29 = memref.load %arg2[%c1_23, %c1_24] : memref<2x4xf32, #tpu.memory_space<smem>>
    %30 = vector.broadcast %29 : f32 to vector<16x16xf32>
    %31 = arith.mulf %3, %30 : vector<16x16xf32>
    %32 = arith.addf %28, %31 : vector<16x16xf32>
    %c1_25 = arith.constant 1 : index
    %c2_26 = arith.constant 2 : index
    %33 = memref.load %arg2[%c1_25, %c2_26] : memref<2x4xf32, #tpu.memory_space<smem>>
    %34 = vector.broadcast %33 : f32 to vector<16x16xf32>
    %35 = arith.mulf %5, %34 : vector<16x16xf32>
    %36 = arith.addf %32, %35 : vector<16x16xf32>
    %c1_27 = arith.constant 1 : index
    %c3_28 = arith.constant 3 : index
    %37 = memref.load %arg2[%c1_27, %c3_28] : memref<2x4xf32, #tpu.memory_space<smem>>
    %38 = vector.broadcast %37 : f32 to vector<16x16xf32>
    %39 = arith.mulf %7, %38 : vector<16x16xf32>
    %40 = arith.addf %36, %39 : vector<16x16xf32>
    %c1_29 = arith.constant 1 : index
    %41 = memref.load %arg3[%c1_29] : memref<2xf32, #tpu.memory_space<smem>>
    %42 = vector.broadcast %41 : f32 to vector<16x16xf32>
    %43 = arith.addf %40, %42 : vector<16x16xf32>
    %c0_30 = arith.constant 0 : index
    %c0_31 = arith.constant 0 : index
    %44 = vector.load %arg6[%c0_30, %c0_31] : memref<32x16xf32, #tpu.memory_space<vmem>>, vector<32x16xf32>
    %cst = arith.constant dense<0.000000e+00> : vector<32x16xf32>
    %45 = tpu.matmul %44, %25, %cst {dimension_numbers = #tpu.dot_dimension_numbers<[1], [0], [0], [1], [0, 0, 1, 1], [], []>} : vector<32x16xf32>, vector<16x16xf32>, vector<32x16xf32> -> vector<32x16xf32>
    %c0_32 = arith.constant 0 : index
    %c0_33 = arith.constant 0 : index
    %46 = vector.load %arg7[%c0_32, %c0_33] : memref<16x64xf32, #tpu.memory_space<vmem>>, vector<16x64xf32>
    %cst_34 = arith.constant dense<0.000000e+00> : vector<32x64xf32>
    %47 = tpu.matmul %45, %46, %cst_34 {dimension_numbers = #tpu.dot_dimension_numbers<[1], [0], [0], [1], [0, 0, 1, 1], [], []>} : vector<32x16xf32>, vector<16x64xf32>, vector<32x64xf32> -> vector<32x64xf32>
    %c0_35 = arith.constant 0 : index
    %c0_36 = arith.constant 0 : index
    %48 = vector.load %arg6[%c0_35, %c0_36] : memref<32x16xf32, #tpu.memory_space<vmem>>, vector<32x16xf32>
    %cst_37 = arith.constant dense<0.000000e+00> : vector<32x16xf32>
    %49 = tpu.matmul %48, %43, %cst_37 {dimension_numbers = #tpu.dot_dimension_numbers<[1], [0], [0], [1], [0, 0, 1, 1], [], []>} : vector<32x16xf32>, vector<16x16xf32>, vector<32x16xf32> -> vector<32x16xf32>
    %c0_38 = arith.constant 0 : index
    %c0_39 = arith.constant 0 : index
    %50 = vector.load %arg7[%c0_38, %c0_39] : memref<16x64xf32, #tpu.memory_space<vmem>>, vector<16x64xf32>
    %cst_40 = arith.constant dense<0.000000e+00> : vector<32x64xf32>
    %51 = tpu.matmul %49, %50, %cst_40 {dimension_numbers = #tpu.dot_dimension_numbers<[1], [0], [0], [1], [0, 0, 1, 1], [], []>} : vector<32x16xf32>, vector<16x64xf32>, vector<32x64xf32> -> vector<32x64xf32>
    %c0_41 = arith.constant 0 : index
    %c0_42 = arith.constant 0 : index
    %52 = memref.load %arg4[%c0_41, %c0_42] : memref<2x2xf32, #tpu.memory_space<smem>>
    %53 = vector.broadcast %52 : f32 to vector<32x64xf32>
    %54 = arith.mulf %47, %53 : vector<32x64xf32>
    %c0_43 = arith.constant 0 : index
    %c1_44 = arith.constant 1 : index
    %55 = memref.load %arg4[%c0_43, %c1_44] : memref<2x2xf32, #tpu.memory_space<smem>>
    %56 = vector.broadcast %55 : f32 to vector<32x64xf32>
    %57 = arith.mulf %51, %56 : vector<32x64xf32>
    %58 = arith.addf %54, %57 : vector<32x64xf32>
    %c0_45 = arith.constant 0 : index
    %59 = memref.load %arg5[%c0_45] : memref<2xf32, #tpu.memory_space<smem>>
    %60 = vector.broadcast %59 : f32 to vector<32x64xf32>
    %61 = arith.addf %58, %60 : vector<32x64xf32>
    %c1_46 = arith.constant 1 : index
    %c0_47 = arith.constant 0 : index
    %62 = memref.load %arg4[%c1_46, %c0_47] : memref<2x2xf32, #tpu.memory_space<smem>>
    %63 = vector.broadcast %62 : f32 to vector<32x64xf32>
    %64 = arith.mulf %47, %63 : vector<32x64xf32>
    %c1_48 = arith.constant 1 : index
    %c1_49 = arith.constant 1 : index
    %65 = memref.load %arg4[%c1_48, %c1_49] : memref<2x2xf32, #tpu.memory_space<smem>>
    %66 = vector.broadcast %65 : f32 to vector<32x64xf32>
    %67 = arith.mulf %51, %66 : vector<32x64xf32>
    %68 = arith.addf %64, %67 : vector<32x64xf32>
    %c1_50 = arith.constant 1 : index
    %69 = memref.load %arg5[%c1_50] : memref<2xf32, #tpu.memory_space<smem>>
    %70 = vector.broadcast %69 : f32 to vector<32x64xf32>
    %71 = arith.addf %68, %70 : vector<32x64xf32>
    %c0_51 = arith.constant 0 : index
    %c0_52 = arith.constant 0 : index
    %72 = vector.load %arg8[%c0_51, %c0_52] : memref<64x32xf32, #tpu.memory_space<vmem>>, vector<64x32xf32>
    %cst_53 = arith.constant dense<0.000000e+00> : vector<64x64xf32>
    %73 = tpu.matmul %72, %61, %cst_53 {dimension_numbers = #tpu.dot_dimension_numbers<[1], [0], [0], [1], [0, 0, 1, 1], [], []>} : vector<64x32xf32>, vector<32x64xf32>, vector<64x64xf32> -> vector<64x64xf32>
    %c0_54 = arith.constant 0 : index
    %c0_55 = arith.constant 0 : index
    %74 = vector.load %arg9[%c0_54, %c0_55] : memref<64x128xf32, #tpu.memory_space<vmem>>, vector<64x128xf32>
    %cst_56 = arith.constant dense<0.000000e+00> : vector<64x128xf32>
    %75 = tpu.matmul %73, %74, %cst_56 {dimension_numbers = #tpu.dot_dimension_numbers<[1], [0], [0], [1], [0, 0, 1, 1], [], []>} : vector<64x64xf32>, vector<64x128xf32>, vector<64x128xf32> -> vector<64x128xf32>
    %c0_57 = arith.constant 0 : index
    %c0_58 = arith.constant 0 : index
    %76 = vector.load %arg8[%c0_57, %c0_58] : memref<64x32xf32, #tpu.memory_space<vmem>>, vector<64x32xf32>
    %cst_59 = arith.constant dense<0.000000e+00> : vector<64x64xf32>
    %77 = tpu.matmul %76, %71, %cst_59 {dimension_numbers = #tpu.dot_dimension_numbers<[1], [0], [0], [1], [0, 0, 1, 1], [], []>} : vector<64x32xf32>, vector<32x64xf32>, vector<64x64xf32> -> vector<64x64xf32>
    %c0_60 = arith.constant 0 : index
    %c0_61 = arith.constant 0 : index
    %78 = vector.load %arg9[%c0_60, %c0_61] : memref<64x128xf32, #tpu.memory_space<vmem>>, vector<64x128xf32>
    %cst_62 = arith.constant dense<0.000000e+00> : vector<64x128xf32>
    %79 = tpu.matmul %77, %78, %cst_62 {dimension_numbers = #tpu.dot_dimension_numbers<[1], [0], [0], [1], [0, 0, 1, 1], [], []>} : vector<64x64xf32>, vector<64x128xf32>, vector<64x128xf32> -> vector<64x128xf32>
    %c0_63 = arith.constant 0 : index
    %c0_64 = arith.constant 0 : index
    %80 = memref.load %arg4[%c0_63, %c0_64] : memref<2x2xf32, #tpu.memory_space<smem>>
    %81 = vector.broadcast %80 : f32 to vector<64x128xf32>
    %82 = arith.mulf %75, %81 : vector<64x128xf32>
    %c0_65 = arith.constant 0 : index
    %c1_66 = arith.constant 1 : index
    %83 = memref.load %arg4[%c0_65, %c1_66] : memref<2x2xf32, #tpu.memory_space<smem>>
    %84 = vector.broadcast %83 : f32 to vector<64x128xf32>
    %85 = arith.mulf %79, %84 : vector<64x128xf32>
    %86 = arith.addf %82, %85 : vector<64x128xf32>
    %c0_67 = arith.constant 0 : index
    %87 = memref.load %arg5[%c0_67] : memref<2xf32, #tpu.memory_space<smem>>
    %88 = vector.broadcast %87 : f32 to vector<64x128xf32>
    %89 = arith.addf %86, %88 : vector<64x128xf32>
    %c1_68 = arith.constant 1 : index
    %c0_69 = arith.constant 0 : index
    %90 = memref.load %arg4[%c1_68, %c0_69] : memref<2x2xf32, #tpu.memory_space<smem>>
    %91 = vector.broadcast %90 : f32 to vector<64x128xf32>
    %92 = arith.mulf %75, %91 : vector<64x128xf32>
    %c1_70 = arith.constant 1 : index
    %c1_71 = arith.constant 1 : index
    %93 = memref.load %arg4[%c1_70, %c1_71] : memref<2x2xf32, #tpu.memory_space<smem>>
    %94 = vector.broadcast %93 : f32 to vector<64x128xf32>
    %95 = arith.mulf %79, %94 : vector<64x128xf32>
    %96 = arith.addf %92, %95 : vector<64x128xf32>
    %c1_72 = arith.constant 1 : index
    %97 = memref.load %arg5[%c1_72] : memref<2xf32, #tpu.memory_space<smem>>
    %98 = vector.broadcast %97 : f32 to vector<64x128xf32>
    %99 = arith.addf %96, %98 : vector<64x128xf32>
    %c0_73 = arith.constant 0 : index
    %c0_74 = arith.constant 0 : index
    %100 = vector.load %arg10[%c0_73, %c0_74] : memref<128x64xf32, #tpu.memory_space<vmem>>, vector<128x64xf32>
    %cst_75 = arith.constant dense<0.000000e+00> : vector<128x128xf32>
    %101 = tpu.matmul %100, %89, %cst_75 {dimension_numbers = #tpu.dot_dimension_numbers<[1], [0], [0], [1], [0, 0, 1, 1], [], []>} : vector<128x64xf32>, vector<64x128xf32>, vector<128x128xf32> -> vector<128x128xf32>
    %c0_76 = arith.constant 0 : index
    %c0_77 = arith.constant 0 : index
    %102 = vector.load %arg11[%c0_76, %c0_77] : memref<128x256xf32, #tpu.memory_space<vmem>>, vector<128x256xf32>
    %cst_78 = arith.constant dense<0.000000e+00> : vector<128x256xf32>
    %103 = tpu.matmul %101, %102, %cst_78 {dimension_numbers = #tpu.dot_dimension_numbers<[1], [0], [0], [1], [0, 0, 1, 1], [], []>} : vector<128x128xf32>, vector<128x256xf32>, vector<128x256xf32> -> vector<128x256xf32>
    %c0_79 = arith.constant 0 : index
    %c0_80 = arith.constant 0 : index
    %104 = vector.load %arg10[%c0_79, %c0_80] : memref<128x64xf32, #tpu.memory_space<vmem>>, vector<128x64xf32>
    %cst_81 = arith.constant dense<0.000000e+00> : vector<128x128xf32>
    %105 = tpu.matmul %104, %99, %cst_81 {dimension_numbers = #tpu.dot_dimension_numbers<[1], [0], [0], [1], [0, 0, 1, 1], [], []>} : vector<128x64xf32>, vector<64x128xf32>, vector<128x128xf32> -> vector<128x128xf32>
    %c0_82 = arith.constant 0 : index
    %c0_83 = arith.constant 0 : index
    %106 = vector.load %arg11[%c0_82, %c0_83] : memref<128x256xf32, #tpu.memory_space<vmem>>, vector<128x256xf32>
    %cst_84 = arith.constant dense<0.000000e+00> : vector<128x256xf32>
    %107 = tpu.matmul %105, %106, %cst_84 {dimension_numbers = #tpu.dot_dimension_numbers<[1], [0], [0], [1], [0, 0, 1, 1], [], []>} : vector<128x128xf32>, vector<128x256xf32>, vector<128x256xf32> -> vector<128x256xf32>
    %c0_85 = arith.constant 0 : index
    %c0_86 = arith.constant 0 : index
    %108 = memref.load %arg4[%c0_85, %c0_86] : memref<2x2xf32, #tpu.memory_space<smem>>
    %109 = vector.broadcast %108 : f32 to vector<128x256xf32>
    %110 = arith.mulf %103, %109 : vector<128x256xf32>
    %c0_87 = arith.constant 0 : index
    %c1_88 = arith.constant 1 : index
    %111 = memref.load %arg4[%c0_87, %c1_88] : memref<2x2xf32, #tpu.memory_space<smem>>
    %112 = vector.broadcast %111 : f32 to vector<128x256xf32>
    %113 = arith.mulf %107, %112 : vector<128x256xf32>
    %114 = arith.addf %110, %113 : vector<128x256xf32>
    %c0_89 = arith.constant 0 : index
    %115 = memref.load %arg5[%c0_89] : memref<2xf32, #tpu.memory_space<smem>>
    %116 = vector.broadcast %115 : f32 to vector<128x256xf32>
    %117 = arith.addf %114, %116 : vector<128x256xf32>
    %c1_90 = arith.constant 1 : index
    %c0_91 = arith.constant 0 : index
    %118 = memref.load %arg4[%c1_90, %c0_91] : memref<2x2xf32, #tpu.memory_space<smem>>
    %119 = vector.broadcast %118 : f32 to vector<128x256xf32>
    %120 = arith.mulf %103, %119 : vector<128x256xf32>
    %c1_92 = arith.constant 1 : index
    %c1_93 = arith.constant 1 : index
    %121 = memref.load %arg4[%c1_92, %c1_93] : memref<2x2xf32, #tpu.memory_space<smem>>
    %122 = vector.broadcast %121 : f32 to vector<128x256xf32>
    %123 = arith.mulf %107, %122 : vector<128x256xf32>
    %124 = arith.addf %120, %123 : vector<128x256xf32>
    %c1_94 = arith.constant 1 : index
    %125 = memref.load %arg5[%c1_94] : memref<2xf32, #tpu.memory_space<smem>>
    %126 = vector.broadcast %125 : f32 to vector<128x256xf32>
    %127 = arith.addf %124, %126 : vector<128x256xf32>
    %c0_95 = arith.constant 0 : index
    %c0_96 = arith.constant 0 : index
    %128 = vector.load %arg12[%c0_95, %c0_96] : memref<96x128xf32, #tpu.memory_space<vmem>>, vector<96x128xf32>
    %cst_97 = arith.constant dense<0.000000e+00> : vector<96x256xf32>
    %129 = tpu.matmul %128, %117, %cst_97 {dimension_numbers = #tpu.dot_dimension_numbers<[1], [0], [0], [1], [0, 0, 1, 1], [], []>} : vector<96x128xf32>, vector<128x256xf32>, vector<96x256xf32> -> vector<96x256xf32>
    %c0_98 = arith.constant 0 : index
    %c0_99 = arith.constant 0 : index
    %130 = vector.load %arg13[%c0_98, %c0_99] : memref<256x192xf32, #tpu.memory_space<vmem>>, vector<256x192xf32>
    %cst_100 = arith.constant dense<0.000000e+00> : vector<96x192xf32>
    %131 = tpu.matmul %129, %130, %cst_100 {dimension_numbers = #tpu.dot_dimension_numbers<[1], [0], [0], [1], [0, 0, 1, 1], [], []>} : vector<96x256xf32>, vector<256x192xf32>, vector<96x192xf32> -> vector<96x192xf32>
    %c0_101 = arith.constant 0 : index
    %c0_102 = arith.constant 0 : index
    %c0_103 = arith.constant 0 : index
    %c0_104 = arith.constant 0 : index
    %132 = vector.load %arg14[%c0_101, %c0_102, %c0_103, %c0_104] : memref<1x2x96x192xf32, #tpu.memory_space<vmem>>, vector<1x1x96x192xf32>
    %133 = vector.shape_cast %132 : vector<1x1x96x192xf32> to vector<96x192xf32>
    %134 = vector.shape_cast %131 : vector<96x192xf32> to vector<1x1x96x192xf32>
    tpu.vector_store %arg14[%c0_101, %c0_102, %c0_103, %c0_104], %134 {strides = array<i32>} : memref<1x2x96x192xf32, #tpu.memory_space<vmem>>, vector<1x1x96x192xf32>,
    %c0_105 = arith.constant 0 : index
    %c0_106 = arith.constant 0 : index
    %135 = vector.load %arg12[%c0_105, %c0_106] : memref<96x128xf32, #tpu.memory_space<vmem>>, vector<96x128xf32>
    %cst_107 = arith.constant dense<0.000000e+00> : vector<96x256xf32>
    %136 = tpu.matmul %135, %127, %cst_107 {dimension_numbers = #tpu.dot_dimension_numbers<[1], [0], [0], [1], [0, 0, 1, 1], [], []>} : vector<96x128xf32>, vector<128x256xf32>, vector<96x256xf32> -> vector<96x256xf32>
    %c0_108 = arith.constant 0 : index
    %c0_109 = arith.constant 0 : index
    %137 = vector.load %arg13[%c0_108, %c0_109] : memref<256x192xf32, #tpu.memory_space<vmem>>, vector<256x192xf32>
    %cst_110 = arith.constant dense<0.000000e+00> : vector<96x192xf32>
    %138 = tpu.matmul %136, %137, %cst_110 {dimension_numbers = #tpu.dot_dimension_numbers<[1], [0], [0], [1], [0, 0, 1, 1], [], []>} : vector<96x256xf32>, vector<256x192xf32>, vector<96x192xf32> -> vector<96x192xf32>
    %c0_111 = arith.constant 0 : index
    %c1_112 = arith.constant 1 : index
    %c0_113 = arith.constant 0 : index
    %c0_114 = arith.constant 0 : index
    %139 = vector.load %arg14[%c0_111, %c1_112, %c0_113, %c0_114] : memref<1x2x96x192xf32, #tpu.memory_space<vmem>>, vector<1x1x96x192xf32>
    %140 = vector.shape_cast %139 : vector<1x1x96x192xf32> to vector<96x192xf32>
    %141 = vector.shape_cast %138 : vector<96x192xf32> to vector<1x1x96x192xf32>
    tpu.vector_store %arg14[%c0_111, %c1_112, %c0_113, %c0_114], %141 {strides = array<i32>} : memref<1x2x96x192xf32, #tpu.memory_space<vmem>>, vector<1x1x96x192xf32>,
    return
  }
  func.func @transform_0(%arg0: i32) -> (i32, i32, i32, i32) {
    %c0_i32 = arith.constant 0 : i32
    %c0_i32_0 = arith.constant 0 : i32
    %c0_i32_1 = arith.constant 0 : i32
    %c0_i32_2 = arith.constant 0 : i32
    return %arg0, %c0_i32, %c0_i32_0, %c0_i32_1 : i32, i32, i32, i32
  }
  func.func @transform_1(%arg0: i32) -> (i32, i32) {
    %c0_i32 = arith.constant 0 : i32
    %c0_i32_0 = arith.constant 0 : i32
    %c0_i32_1 = arith.constant 0 : i32
    return %c0_i32, %c0_i32_0 : i32, i32
  }
  func.func @transform_2(%arg0: i32) -> i32 {
    %c0_i32 = arith.constant 0 : i32
    %c0_i32_0 = arith.constant 0 : i32
    return %c0_i32 : i32
  }
  func.func @transform_3(%arg0: i32) -> (i32, i32) {
    %c0_i32 = arith.constant 0 : i32
    %c0_i32_0 = arith.constant 0 : i32
    %c0_i32_1 = arith.constant 0 : i32
    return %c0_i32, %c0_i32_0 : i32, i32
  }
  func.func @transform_4(%arg0: i32) -> i32 {
    %c0_i32 = arith.constant 0 : i32
    %c0_i32_0 = arith.constant 0 : i32
    return %c0_i32 : i32
  }
  func.func @transform_5(%arg0: i32) -> (i32, i32) {
    %c0_i32 = arith.constant 0 : i32
    %c0_i32_0 = arith.constant 0 : i32
    %c0_i32_1 = arith.constant 0 : i32
    return %c0_i32, %c0_i32_0 : i32, i32
  }
  func.func @transform_6(%arg0: i32) -> (i32, i32) {
    %c0_i32 = arith.constant 0 : i32
    %c0_i32_0 = arith.constant 0 : i32
    %c0_i32_1 = arith.constant 0 : i32
    return %c0_i32, %c0_i32_0 : i32, i32
  }
  func.func @transform_7(%arg0: i32) -> (i32, i32) {
    %c0_i32 = arith.constant 0 : i32
    %c0_i32_0 = arith.constant 0 : i32
    %c0_i32_1 = arith.constant 0 : i32
    return %c0_i32, %c0_i32_0 : i32, i32
  }
  func.func @transform_8(%arg0: i32) -> (i32, i32) {
    %c0_i32 = arith.constant 0 : i32
    %c0_i32_0 = arith.constant 0 : i32
    %c0_i32_1 = arith.constant 0 : i32
    return %c0_i32, %c0_i32_0 : i32, i32
  }
  func.func @transform_9(%arg0: i32) -> (i32, i32) {
    %c0_i32 = arith.constant 0 : i32
    %c0_i32_0 = arith.constant 0 : i32
    %c0_i32_1 = arith.constant 0 : i32
    return %c0_i32, %c0_i32_0 : i32, i32
  }
  func.func @transform_10(%arg0: i32) -> (i32, i32) {
    %c0_i32 = arith.constant 0 : i32
    %c0_i32_0 = arith.constant 0 : i32
    %c0_i32_1 = arith.constant 0 : i32
    return %c0_i32, %c0_i32_0 : i32, i32
  }
  func.func @transform_11(%arg0: i32) -> (i32, i32) {
    %c0_i32 = arith.constant 0 : i32
    %c0_i32_0 = arith.constant 0 : i32
    %c0_i32_1 = arith.constant 0 : i32
    return %c0_i32, %c0_i32_0 : i32, i32
  }
  func.func @transform_12(%arg0: i32) -> (i32, i32) {
    %c0_i32 = arith.constant 0 : i32
    %c0_i32_0 = arith.constant 0 : i32
    %c0_i32_1 = arith.constant 0 : i32
    return %c0_i32, %c0_i32_0 : i32, i32
  }
  func.func @transform_13(%arg0: i32) -> (i32, i32, i32, i32) {
    %c0_i32 = arith.constant 0 : i32
    %c0_i32_0 = arith.constant 0 : i32
    %c0_i32_1 = arith.constant 0 : i32
    %c0_i32_2 = arith.constant 0 : i32
    return %arg0, %c0_i32, %c0_i32_0, %c0_i32_1 : i32, i32, i32, i32
  }
}

</mosaic_0001>

<llo_original>
// kernel: tpu_custom_call.1
$region0: #{tpu_custom_call.1}
  #allocation0 [shape = 'u32[]', space=smem, size = 0x4, offset = 0x4, fixed_abs, tag = 'smem constant byte address 0x4 - core index']
  #allocation1 [shape = 'u32[144,128]{1,0:T(1,128)}', space=vmem, size = 0x12000, scoped, tag = 'internal scratch']
  %s0 = inlined_call_operand.vmem [shape: f32[2,4,16,16], index: 0, kind: input, shape index: {}]
  %s1 = inlined_call_operand.vmem [shape: f32[2,4], index: 1, kind: input, shape index: {}]
  %s2 = inlined_call_operand.vmem [shape: f32[2], index: 2, kind: input, shape index: {}]
  %s3 = inlined_call_operand.vmem [shape: f32[2,2], index: 3, kind: input, shape index: {}]
  %s4 = inlined_call_operand.vmem [shape: f32[2], index: 4, kind: input, shape index: {}]
  %s5 = inlined_call_operand.vmem [shape: f32[32,16], index: 5, kind: input, shape index: {}]
  %s6 = inlined_call_operand.vmem [shape: f32[16,64], index: 6, kind: input, shape index: {}]
  %s7 = inlined_call_operand.vmem [shape: f32[64,32], index: 7, kind: input, shape index: {}]
  %s8 = inlined_call_operand.vmem [shape: f32[64,128], index: 8, kind: input, shape index: {}]
  %s9 = inlined_call_operand.vmem [shape: f32[128,64], index: 9, kind: input, shape index: {}]
  %s10 = inlined_call_operand.vmem [shape: f32[128,256], index: 10, kind: input, shape index: {}]
  %s11 = inlined_call_operand.vmem [shape: f32[96,128], index: 11, kind: input, shape index: {}]
  %s12 = inlined_call_operand.vmem [shape: f32[256,192], index: 12, kind: input, shape index: {}]
  %s13 = inlined_call_operand.hbm [shape: f32[2,2,96,192], index: 13, kind: output, shape index: {}]
  %s14 = sld [smem:[#allocation0]]
  $region101: #{tpu_custom_call.1} parent=0
    _
  %s16 = ssub.s32 1, %s14
  %s17 = scalar_select 0, %s16, %s14
  $region1: #{tpu_custom_call.1} parent=0
    #allocation2 [shape = 'u8[1024]{0}', space=smem, size = 0x400, scoped, tag = 'input window, operand 1, single buffered']
    #allocation3 [shape = 's32[2]{0}', space=sflag, size = 0x8, scoped, tag = 'scoped memory for tpu_custom_call.1']
    #allocation4 [shape = 's32[2]{0}', space=sflag, size = 0x8, scoped, tag = 'scoped memory for tpu_custom_call.1']
    #allocation5 [shape = 'u8[512]{0}', space=smem, size = 0x200, scoped, tag = 'input window, operand 2, single buffered']
    #allocation6 [shape = 's32[1]{0}', space=sflag, size = 0x4, scoped, tag = 'scoped memory for tpu_custom_call.1']
    #allocation7 [shape = 'u8[1024]{0}', space=smem, size = 0x400, scoped, tag = 'input window, operand 3, single buffered']
    #allocation8 [shape = 'u8[512]{0}', space=smem, size = 0x200, scoped, tag = 'input window, operand 4, single buffered']
    #allocation9 [shape = 's32[1]{0}', space=sflag, size = 0x4, scoped, tag = 'scoped memory for tpu_custom_call.1']
    #allocation10 [shape = 'u8[393216]{0}', space=vmem, size = 0x60000, scoped, tag = 'output window, operand 0']
    %18 = vsyncpa [#allocation4], 0
    %19 = vsyncpa [#allocation6], 0
    %20 = vsyncpa [#allocation9], 0
    %21 = vsyncpa [#allocation3], 0
    %s22 = scalar_lea.sflag [#allocation3], 1
    %23 = vsyncpa %s22, 0
    loop: start=0, step=1, limit=4
    $region2: #{tpu_custom_call.1} parent=1 // loop_pre_header
      _
    $region3: #{tpu_custom_call.1} parent=1 // loop_header
      %s25 = sphi 0, %s29
      %p26 = scmp.ge.s32.totalorder %s25, 4
      %s35 = sphi 0, %s37
      %s38 = sphi 0, %s35
      %s39 = sphi 0, %s38
      %s55 = sphi 0, %s39
      %s59 = sphi 0, %s59
      %s61 = sphi 0, %s59
      %s62 = sphi 0, %s61
      %s76 = sphi 0, %s62
      %s80 = sphi 0, %s80
      %s82 = sphi 0, %s80
      %s83 = sphi 0, %s82
      %s97 = sphi 0, %s83
      %s101 = sphi 0, %s101
      %s103 = sphi 0, %s101
      %s104 = sphi 0, %s103
      %s118 = sphi 0, %s104
      %s122 = sphi 0, %s122
      %s124 = sphi 0, %s122
      %s125 = sphi 0, %s124
      %s139 = sphi 0, %s125
      %s143 = sphi 0, %s143
      %s145 = sphi 0, %s143
      %s146 = sphi 0, %s145
      %s160 = sphi 0, %s146
      %s164 = sphi 0, %s164
      %s166 = sphi 0, %s164
      %s167 = sphi 0, %s166
      %s181 = sphi 0, %s167
      %s185 = sphi 0, %s185
      %s187 = sphi 0, %s185
      %s188 = sphi 0, %s187
      %s202 = sphi 0, %s188
      %s206 = sphi 0, %s206
      %s208 = sphi 0, %s206
      %s209 = sphi 0, %s208
      %s223 = sphi 0, %s209
      %s227 = sphi 0, %s227
      %s229 = sphi 0, %s227
      %s230 = sphi 0, %s229
      %s244 = sphi 0, %s230
      %s248 = sphi 0, %s248
      %s250 = sphi 0, %s248
      %s251 = sphi 0, %s250
      %s265 = sphi 0, %s251
      %s269 = sphi 0, %s269
      %s271 = sphi 0, %s269
      %s272 = sphi 0, %s271
      %s286 = sphi 0, %s272
      %s290 = sphi 0, %s290
      %s292 = sphi 0, %s290
      %s293 = sphi 0, %s292
      %s307 = sphi 0, %s293
      %s313 = sphi 0, %s315
      %s316 = sphi 0, %s313
      %s317 = sphi 0, %s316
      %s333 = sphi 0, %s317
    $region4: #{tpu_custom_call.1} parent=1 // loop_header_branch
      %28 = sbr.rel (%p26) target = $region8
    $region5: #{tpu_custom_call.1} parent=1 // loop_body
      %s30 = ssub.s32 %s25, 1
      %s31 = ssub.s32 %s25, 2
      %s32 = sadd.s32 %s25, 1
      %s33 = ssub.s32 %s25, %s32
      %p34 = scmp.eq.s32.totalorder %s33, 0
      %s36 = sadd.s32 %s35, 1
      %s37 = scalar_select %p34, %s35, %s36
      %p40 = pneg %p34
      %p41 = scmp.eq.s32.totalorder %s25, 1
      %p42 = por %p40, %p41
      %p43 = scmp.ne.s32.totalorder %s35, %s38
      %p44 = scmp.eq.s32.totalorder %s25, 0
      %p45 = por %p43, %p44
      %p46 = scmp.ne.s32.totalorder %s35, %s38
      %p47 = scmp.eq.s32.totalorder %s30, 1
      %p48 = por %p46, %p47
      %p49 = scmp.ne.s32.totalorder %s38, %s39
      %p50 = scmp.eq.s32.totalorder %s30, 0
      %p51 = por %p49, %p50
      %p52 = scmp.ne.s32.totalorder %s38, %s39
      %p53 = scmp.eq.s32.totalorder %s31, 1
      %p54 = por %p52, %p53
      %p56 = scmp.ne.s32.totalorder %s39, %s55
      %p57 = scmp.eq.s32.totalorder %s31, 0
      %p58 = por %p56, %p57
      %s60 = sadd.s32 %s59, 1
      %p63 = scmp.eq.s32.totalorder %s25, 1
      %p64 = scmp.ne.s32.totalorder %s59, %s61
      %p65 = scmp.eq.s32.totalorder %s25, 0
      %p66 = por %p64, %p65
      %p67 = scmp.ne.s32.totalorder %s59, %s61
      %p68 = scmp.eq.s32.totalorder %s30, 1
      %p69 = por %p67, %p68
      %p70 = scmp.ne.s32.totalorder %s61, %s62
      %p71 = scmp.eq.s32.totalorder %s30, 0
      %p72 = por %p70, %p71
      %p73 = scmp.ne.s32.totalorder %s61, %s62
      %p74 = scmp.eq.s32.totalorder %s31, 1
      %p75 = por %p73, %p74
      %p77 = scmp.ne.s32.totalorder %s62, %s76
      %p78 = scmp.eq.s32.totalorder %s31, 0
      %p79 = por %p77, %p78
      %s81 = sadd.s32 %s80, 1
      %p84 = scmp.eq.s32.totalorder %s25, 1
      %p85 = scmp.ne.s32.totalorder %s80, %s82
      %p86 = scmp.eq.s32.totalorder %s25, 0
      %p87 = por %p85, %p86
      %p88 = scmp.ne.s32.totalorder %s80, %s82
      %p89 = scmp.eq.s32.totalorder %s30, 1
      %p90 = por %p88, %p89
      %p91 = scmp.ne.s32.totalorder %s82, %s83
      %p92 = scmp.eq.s32.totalorder %s30, 0
      %p93 = por %p91, %p92
      %p94 = scmp.ne.s32.totalorder %s82, %s83
      %p95 = scmp.eq.s32.totalorder %s31, 1
      %p96 = por %p94, %p95
      %p98 = scmp.ne.s32.totalorder %s83, %s97
      %p99 = scmp.eq.s32.totalorder %s31, 0
      %p100 = por %p98, %p99
      %s102 = sadd.s32 %s101, 1
      %p105 = scmp.eq.s32.totalorder %s25, 1
      %p106 = scmp.ne.s32.totalorder %s101, %s103
      %p107 = scmp.eq.s32.totalorder %s25, 0
      %p108 = por %p106, %p107
      %p109 = scmp.ne.s32.totalorder %s101, %s103
      %p110 = scmp.eq.s32.totalorder %s30, 1
      %p111 = por %p109, %p110
      %p112 = scmp.ne.s32.totalorder %s103, %s104
      %p113 = scmp.eq.s32.totalorder %s30, 0
      %p114 = por %p112, %p113
      %p115 = scmp.ne.s32.totalorder %s103, %s104
      %p116 = scmp.eq.s32.totalorder %s31, 1
      %p117 = por %p115, %p116
      %p119 = scmp.ne.s32.totalorder %s104, %s118
      %p120 = scmp.eq.s32.totalorder %s31, 0
      %p121 = por %p119, %p120
      %s123 = sadd.s32 %s122, 1
      %p126 = scmp.eq.s32.totalorder %s25, 1
      %p127 = scmp.ne.s32.totalorder %s122, %s124
      %p128 = scmp.eq.s32.totalorder %s25, 0
      %p129 = por %p127, %p128
      %p130 = scmp.ne.s32.totalorder %s122, %s124
      %p131 = scmp.eq.s32.totalorder %s30, 1
      %p132 = por %p130, %p131
      %p133 = scmp.ne.s32.totalorder %s124, %s125
      %p134 = scmp.eq.s32.totalorder %s30, 0
      %p135 = por %p133, %p134
      %p136 = scmp.ne.s32.totalorder %s124, %s125
      %p137 = scmp.eq.s32.totalorder %s31, 1
      %p138 = por %p136, %p137
      %p140 = scmp.ne.s32.totalorder %s125, %s139
      %p141 = scmp.eq.s32.totalorder %s31, 0
      %p142 = por %p140, %p141
      %s144 = sadd.s32 %s143, 1
      %p147 = scmp.eq.s32.totalorder %s25, 1
      %p148 = scmp.ne.s32.totalorder %s143, %s145
      %p149 = scmp.eq.s32.totalorder %s25, 0
      %p150 = por %p148, %p149
      %p151 = scmp.ne.s32.totalorder %s143, %s145
      %p152 = scmp.eq.s32.totalorder %s30, 1
      %p153 = por %p151, %p152
      %p154 = scmp.ne.s32.totalorder %s145, %s146
      %p155 = scmp.eq.s32.totalorder %s30, 0
      %p156 = por %p154, %p155
      %p157 = scmp.ne.s32.totalorder %s145, %s146
      %p158 = scmp.eq.s32.totalorder %s31, 1
      %p159 = por %p157, %p158
      %p161 = scmp.ne.s32.totalorder %s146, %s160
      %p162 = scmp.eq.s32.totalorder %s31, 0
      %p163 = por %p161, %p162
      %s165 = sadd.s32 %s164, 1
      %p168 = scmp.eq.s32.totalorder %s25, 1
      %p169 = scmp.ne.s32.totalorder %s164, %s166
      %p170 = scmp.eq.s32.totalorder %s25, 0
      %p171 = por %p169, %p170
      %p172 = scmp.ne.s32.totalorder %s164, %s166
      %p173 = scmp.eq.s32.totalorder %s30, 1
      %p174 = por %p172, %p173
      %p175 = scmp.ne.s32.totalorder %s166, %s167
      %p176 = scmp.eq.s32.totalorder %s30, 0
      %p177 = por %p175, %p176
      %p178 = scmp.ne.s32.totalorder %s166, %s167
      %p179 = scmp.eq.s32.totalorder %s31, 1
      %p180 = por %p178, %p179
      %p182 = scmp.ne.s32.totalorder %s167, %s181
      %p183 = scmp.eq.s32.totalorder %s31, 0
      %p184 = por %p182, %p183
      %s186 = sadd.s32 %s185, 1
      %p189 = scmp.eq.s32.totalorder %s25, 1
      %p190 = scmp.ne.s32.totalorder %s185, %s187
      %p191 = scmp.eq.s32.totalorder %s25, 0
      %p192 = por %p190, %p191
      %p193 = scmp.ne.s32.totalorder %s185, %s187
      %p194 = scmp.eq.s32.totalorder %s30, 1
      %p195 = por %p193, %p194
      %p196 = scmp.ne.s32.totalorder %s187, %s188
      %p197 = scmp.eq.s32.totalorder %s30, 0
      %p198 = por %p196, %p197
      %p199 = scmp.ne.s32.totalorder %s187, %s188
      %p200 = scmp.eq.s32.totalorder %s31, 1
      %p201 = por %p199, %p200
      %p203 = scmp.ne.s32.totalorder %s188, %s202
      %p204 = scmp.eq.s32.totalorder %s31, 0
      %p205 = por %p203, %p204
      %s207 = sadd.s32 %s206, 1
      %p210 = scmp.eq.s32.totalorder %s25, 1
      %p211 = scmp.ne.s32.totalorder %s206, %s208
      %p212 = scmp.eq.s32.totalorder %s25, 0
      %p213 = por %p211, %p212
      %p214 = scmp.ne.s32.totalorder %s206, %s208
      %p215 = scmp.eq.s32.totalorder %s30, 1
      %p216 = por %p214, %p215
      %p217 = scmp.ne.s32.totalorder %s208, %s209
      %p218 = scmp.eq.s32.totalorder %s30, 0
      %p219 = por %p217, %p218
      %p220 = scmp.ne.s32.totalorder %s208, %s209
      %p221 = scmp.eq.s32.totalorder %s31, 1
      %p222 = por %p220, %p221
      %p224 = scmp.ne.s32.totalorder %s209, %s223
      %p225 = scmp.eq.s32.totalorder %s31, 0
      %p226 = por %p224, %p225
      %s228 = sadd.s32 %s227, 1
      %p231 = scmp.eq.s32.totalorder %s25, 1
      %p232 = scmp.ne.s32.totalorder %s227, %s229
      %p233 = scmp.eq.s32.totalorder %s25, 0
      %p234 = por %p232, %p233
      %p235 = scmp.ne.s32.totalorder %s227, %s229
      %p236 = scmp.eq.s32.totalorder %s30, 1
      %p237 = por %p235, %p236
      %p238 = scmp.ne.s32.totalorder %s229, %s230
      %p239 = scmp.eq.s32.totalorder %s30, 0
      %p240 = por %p238, %p239
      %p241 = scmp.ne.s32.totalorder %s229, %s230
      %p242 = scmp.eq.s32.totalorder %s31, 1
      %p243 = por %p241, %p242
      %p245 = scmp.ne.s32.totalorder %s230, %s244
      %p246 = scmp.eq.s32.totalorder %s31, 0
      %p247 = por %p245, %p246
      %s249 = sadd.s32 %s248, 1
      %p252 = scmp.eq.s32.totalorder %s25, 1
      %p253 = scmp.ne.s32.totalorder %s248, %s250
      %p254 = scmp.eq.s32.totalorder %s25, 0
      %p255 = por %p253, %p254
      %p256 = scmp.ne.s32.totalorder %s248, %s250
      %p257 = scmp.eq.s32.totalorder %s30, 1
      %p258 = por %p256, %p257
      %p259 = scmp.ne.s32.totalorder %s250, %s251
      %p260 = scmp.eq.s32.totalorder %s30, 0
      %p261 = por %p259, %p260
      %p262 = scmp.ne.s32.totalorder %s250, %s251
      %p263 = scmp.eq.s32.totalorder %s31, 1
      %p264 = por %p262, %p263
      %p266 = scmp.ne.s32.totalorder %s251, %s265
      %p267 = scmp.eq.s32.totalorder %s31, 0
      %p268 = por %p266, %p267
      %s270 = sadd.s32 %s269, 1
      %p273 = scmp.eq.s32.totalorder %s25, 1
      %p274 = scmp.ne.s32.totalorder %s269, %s271
      %p275 = scmp.eq.s32.totalorder %s25, 0
      %p276 = por %p274, %p275
      %p277 = scmp.ne.s32.totalorder %s269, %s271
      %p278 = scmp.eq.s32.totalorder %s30, 1
      %p279 = por %p277, %p278
      %p280 = scmp.ne.s32.totalorder %s271, %s272
      %p281 = scmp.eq.s32.totalorder %s30, 0
      %p282 = por %p280, %p281
      %p283 = scmp.ne.s32.totalorder %s271, %s272
      %p284 = scmp.eq.s32.totalorder %s31, 1
      %p285 = por %p283, %p284
      %p287 = scmp.ne.s32.totalorder %s272, %s286
      %p288 = scmp.eq.s32.totalorder %s31, 0
      %p289 = por %p287, %p288
      %s291 = sadd.s32 %s290, 1
      %p294 = scmp.eq.s32.totalorder %s25, 1
      %p295 = scmp.ne.s32.totalorder %s290, %s292
      %p296 = scmp.eq.s32.totalorder %s25, 0
      %p297 = por %p295, %p296
      %p298 = scmp.ne.s32.totalorder %s290, %s292
      %p299 = scmp.eq.s32.totalorder %s30, 1
      %p300 = por %p298, %p299
      %p301 = scmp.ne.s32.totalorder %s292, %s293
      %p302 = scmp.eq.s32.totalorder %s30, 0
      %p303 = por %p301, %p302
      %p304 = scmp.ne.s32.totalorder %s292, %s293
      %p305 = scmp.eq.s32.totalorder %s31, 1
      %p306 = por %p304, %p305
      %p308 = scmp.ne.s32.totalorder %s293, %s307
      %p309 = scmp.eq.s32.totalorder %s31, 0
      %p310 = por %p308, %p309
      %s311 = ssub.s32 %s25, %s32
      %p312 = scmp.eq.s32.totalorder %s311, 0
      %s314 = sadd.s32 %s313, 1
      %s315 = scalar_select %p312, %s313, %s314
      %p318 = pneg %p312
      %p319 = scmp.eq.s32.totalorder %s25, 1
      %p320 = por %p318, %p319
      %p321 = scmp.ne.s32.totalorder %s313, %s316
      %p322 = scmp.eq.s32.totalorder %s25, 0
      %p323 = por %p321, %p322
      %p324 = scmp.ne.s32.totalorder %s313, %s316
      %p325 = scmp.eq.s32.totalorder %s30, 1
      %p326 = por %p324, %p325
      %p327 = scmp.ne.s32.totalorder %s316, %s317
      %p328 = scmp.eq.s32.totalorder %s30, 0
      %p329 = por %p327, %p328
      %p330 = scmp.ne.s32.totalorder %s316, %s317
      %p331 = scmp.eq.s32.totalorder %s31, 1
      %p332 = por %p330, %p331
      %p334 = scmp.ne.s32.totalorder %s317, %s333
      %p335 = scmp.eq.s32.totalorder %s31, 0
      %p336 = por %p334, %p335
      %p337 = scmp.le.s32.totalorder 1, %s25
      %p338 = scmp.lt.s32.totalorder %s25, 3
      %p339 = pnand %p337, %p338
      %p340 = pneg %p339
      // Predicated region
      $region9: #{tpu_custom_call.1} parent=5 // pred_check
        _
      $region10: #{tpu_custom_call.1} parent=5 // pred_check_branch
        %342 = sbr.rel (%p339) target = $region12
      $region11: #{tpu_custom_call.1} parent=5 // pred_region
        %s343 = ssub.s32 %s25, 1
        // Predicated region
        $region13: #{tpu_custom_call.1} parent=11 // pred_check
          %p344 = pneg %p72
        $region14: #{tpu_custom_call.1} parent=11 // pred_check_branch
          %346 = sbr.rel (%p344) target = $region16
        $region15: #{tpu_custom_call.1} parent=11 // pred_region
          %s348 = ssub.s32 32, 32
          %349 = vsyncadd [#allocation4], %s348
          %s351 = sshll.u32 %s1, 4
          %s352 = int_to_ptr.vmem [resolvable:$true] %s351
          %354 = dma.vmem_to_smem %s352, 32, [#allocation2], [#allocation4]
        $region16: #{tpu_custom_call.1} parent=11 // pred_fallthru
          _
        // Predicated region
        $region17: #{tpu_custom_call.1} parent=11 // pred_check
          %p355 = pneg %p93
        $region18: #{tpu_custom_call.1} parent=11 // pred_check_branch
          %357 = sbr.rel (%p355) target = $region20
        $region19: #{tpu_custom_call.1} parent=11 // pred_region
          %s359 = ssub.s32 16, 16
          %360 = vsyncadd [#allocation6], %s359
          %s362 = sshll.u32 %s2, 4
          %s363 = int_to_ptr.vmem [resolvable:$true] %s362
          %365 = dma.vmem_to_smem %s363, 16, [#allocation5], [#allocation6]
        $region20: #{tpu_custom_call.1} parent=11 // pred_fallthru
          _
        // Predicated region
        $region21: #{tpu_custom_call.1} parent=11 // pred_check
          %p366 = pneg %p114
        $region22: #{tpu_custom_call.1} parent=11 // pred_check_branch
          %368 = sbr.rel (%p366) target = $region24
        $region23: #{tpu_custom_call.1} parent=11 // pred_region
          %s370 = ssub.s32 32, 32
          %371 = vsyncadd [#allocation6], %s370
          %s373 = sshll.u32 %s3, 4
          %s374 = int_to_ptr.vmem [resolvable:$true] %s373
          %376 = dma.vmem_to_smem %s374, 32, [#allocation7], [#allocation6]
        $region24: #{tpu_custom_call.1} parent=11 // pred_fallthru
          _
        // Predicated region
        $region25: #{tpu_custom_call.1} parent=11 // pred_check
          %p377 = pneg %p135
        $region26: #{tpu_custom_call.1} parent=11 // pred_check_branch
          %379 = sbr.rel (%p377) target = $region28
        $region27: #{tpu_custom_call.1} parent=11 // pred_region
          %s381 = ssub.s32 16, 16
          %382 = vsyncadd [#allocation9], %s381
          %s384 = sshll.u32 %s4, 4
          %s385 = int_to_ptr.vmem [resolvable:$true] %s384
          %387 = dma.vmem_to_smem %s385, 16, [#allocation8], [#allocation9]
        $region28: #{tpu_custom_call.1} parent=11 // pred_fallthru
          _
        // Predicated region
        $region29: #{tpu_custom_call.1} parent=11 // pred_check
          %p388 = pneg %p156
        $region30: #{tpu_custom_call.1} parent=11 // pred_check_branch
          %390 = sbr.rel (%p388) target = $region32
        $region31: #{tpu_custom_call.1} parent=11 // pred_region
          _
        $region32: #{tpu_custom_call.1} parent=11 // pred_fallthru
          _
        // Predicated region
        $region33: #{tpu_custom_call.1} parent=11 // pred_check
          %p391 = pneg %p177
        $region34: #{tpu_custom_call.1} parent=11 // pred_check_branch
          %393 = sbr.rel (%p391) target = $region36
        $region35: #{tpu_custom_call.1} parent=11 // pred_region
          _
        $region36: #{tpu_custom_call.1} parent=11 // pred_fallthru
          _
        // Predicated region
        $region37: #{tpu_custom_call.1} parent=11 // pred_check
          %p394 = pneg %p198
        $region38: #{tpu_custom_call.1} parent=11 // pred_check_branch
          %396 = sbr.rel (%p394) target = $region40
        $region39: #{tpu_custom_call.1} parent=11 // pred_region
          _
        $region40: #{tpu_custom_call.1} parent=11 // pred_fallthru
          _
        // Predicated region
        $region41: #{tpu_custom_call.1} parent=11 // pred_check
          %p397 = pneg %p219
        $region42: #{tpu_custom_call.1} parent=11 // pred_check_branch
          %399 = sbr.rel (%p397) target = $region44
        $region43: #{tpu_custom_call.1} parent=11 // pred_region
          _
        $region44: #{tpu_custom_call.1} parent=11 // pred_fallthru
          _
        // Predicated region
        $region45: #{tpu_custom_call.1} parent=11 // pred_check
          %p400 = pneg %p240
        $region46: #{tpu_custom_call.1} parent=11 // pred_check_branch
          %402 = sbr.rel (%p400) target = $region48
        $region47: #{tpu_custom_call.1} parent=11 // pred_region
          _
        $region48: #{tpu_custom_call.1} parent=11 // pred_fallthru
          _
        // Predicated region
        $region49: #{tpu_custom_call.1} parent=11 // pred_check
          %p403 = pneg %p261
        $region50: #{tpu_custom_call.1} parent=11 // pred_check_branch
          %405 = sbr.rel (%p403) target = $region52
        $region51: #{tpu_custom_call.1} parent=11 // pred_region
          _
        $region52: #{tpu_custom_call.1} parent=11 // pred_fallthru
          _
        // Predicated region
        $region53: #{tpu_custom_call.1} parent=11 // pred_check
          %p406 = pneg %p282
        $region54: #{tpu_custom_call.1} parent=11 // pred_check_branch
          %408 = sbr.rel (%p406) target = $region56
        $region55: #{tpu_custom_call.1} parent=11 // pred_region
          _
        $region56: #{tpu_custom_call.1} parent=11 // pred_fallthru
          _
        // Predicated region
        $region57: #{tpu_custom_call.1} parent=11 // pred_check
          %p409 = pneg %p303
        $region58: #{tpu_custom_call.1} parent=11 // pred_check_branch
          %411 = sbr.rel (%p409) target = $region60
        $region59: #{tpu_custom_call.1} parent=11 // pred_region
          _
        $region60: #{tpu_custom_call.1} parent=11 // pred_fallthru
          _
      $region12: #{tpu_custom_call.1} parent=5 // pred_fallthru
        _
      %p412 = scmp.lt.s32.totalorder %s25, 2
      // Predicated region
      $region61: #{tpu_custom_call.1} parent=5 // pred_check
        %p413 = pneg %p412
      $region62: #{tpu_custom_call.1} parent=5 // pred_check_branch
        %415 = sbr.rel (%p413) target = $region64
      $region63: #{tpu_custom_call.1} parent=5 // pred_region
        // Predicated region
        $region65: #{tpu_custom_call.1} parent=63 // pred_check
          %p416 = pneg %p45
        $region66: #{tpu_custom_call.1} parent=63 // pred_check_branch
          %418 = sbr.rel (%p416) target = $region68
        $region67: #{tpu_custom_call.1} parent=63 // pred_region
          %p419 = scmp.lt.s32.totalorder %s25, 1
          %s420 = scalar_select %p419, %s25, 1
          %s421 = smul.addr %s420, 8
          %s422 = smul.addr %s421, 8
          %s423 = scalar_lea.vmem %s0, %s422
        $region68: #{tpu_custom_call.1} parent=63 // pred_fallthru
          _
      $region64: #{tpu_custom_call.1} parent=5 // pred_fallthru
        _
      %p424 = scmp.le.s32.totalorder 1, %s25
      %p425 = scmp.lt.s32.totalorder %s25, 3
      %p426 = pnand %p424, %p425
      %p427 = pneg %p426
      // Predicated region
      $region69: #{tpu_custom_call.1} parent=5 // pred_check
        _
      $region70: #{tpu_custom_call.1} parent=5 // pred_check_branch
        %429 = sbr.rel (%p426) target = $region72
      $region71: #{tpu_custom_call.1} parent=5 // pred_region
        %s430 = ssub.s32 %s25, 1
        // Predicated region
        $region73: #{tpu_custom_call.1} parent=71 // pred_check
          %p431 = pneg %p72
        $region74: #{tpu_custom_call.1} parent=71 // pred_check_branch
          %433 = sbr.rel (%p431) target = $region76
        $region75: #{tpu_custom_call.1} parent=71 // pred_region
          %434 = dma.done [#allocation4], 32
        $region76: #{tpu_custom_call.1} parent=71 // pred_fallthru
          _
        // Predicated region
        $region77: #{tpu_custom_call.1} parent=71 // pred_check
          %p435 = pneg %p93
        $region78: #{tpu_custom_call.1} parent=71 // pred_check_branch
          %437 = sbr.rel (%p435) target = $region80
        $region79: #{tpu_custom_call.1} parent=71 // pred_region
          %438 = dma.done [#allocation6], 16
        $region80: #{tpu_custom_call.1} parent=71 // pred_fallthru
          _
        // Predicated region
        $region81: #{tpu_custom_call.1} parent=71 // pred_check
          %p439 = pneg %p114
        $region82: #{tpu_custom_call.1} parent=71 // pred_check_branch
          %441 = sbr.rel (%p439) target = $region84
        $region83: #{tpu_custom_call.1} parent=71 // pred_region
          %442 = dma.done [#allocation6], 32
        $region84: #{tpu_custom_call.1} parent=71 // pred_fallthru
          _
        // Predicated region
        $region85: #{tpu_custom_call.1} parent=71 // pred_check
          %p443 = pneg %p135
        $region86: #{tpu_custom_call.1} parent=71 // pred_check_branch
          %445 = sbr.rel (%p443) target = $region88
        $region87: #{tpu_custom_call.1} parent=71 // pred_region
          %446 = dma.done [#allocation9], 16
        $region88: #{tpu_custom_call.1} parent=71 // pred_fallthru
          _
        %447 = sfence
        %p448 = scmp.lt.s32.totalorder %s30, 1
        %s449 = scalar_select %p448, %s30, 1
        %s450 = smul.addr %s449, 8
        %s451 = smul.addr %s450, 8
        %s452 = scalar_lea.vmem %s0, %s451
        %p453 = pneg %p51
        %p454 = pneg %p48
        %p455 = pneg %p72
        %p456 = pneg %p69
        %p457 = pneg %p93
        %p458 = pneg %p90
        %p459 = pneg %p114
        %p460 = pneg %p111
        %p461 = pneg %p135
        %p462 = pneg %p132
        %p463 = pneg %p156
        %p464 = pneg %p153
        %p465 = pneg %p177
        %p466 = pneg %p174
        %p467 = pneg %p198
        %p468 = pneg %p195
        %p469 = pneg %p219
        %p470 = pneg %p216
        %p471 = pneg %p240
        %p472 = pneg %p237
        %p473 = pneg %p261
        %p474 = pneg %p258
        %p475 = pneg %p282
        %p476 = pneg %p279
        %p477 = pneg %p303
        %p478 = pneg %p300
        %p479 = pneg %p329
        %p480 = pneg %p326
        %s481 = sand.u32 %s316, 1
        %s482 = scalar_lea.sflag [#allocation3], %s481
        %s483 = sand.u32 %s316, 1
        %s484 = smul.addr %s483, 384
        %s485 = scalar_lea.vmem [#allocation10], %s484
        %p486 = scmp.lt.s32.totalorder %s30, 1
        %s487 = scalar_select %p486, %s30, 1
        %s488 = smul.addr %s487, 8
        %s489 = smul.addr %s488, 8
        %s490 = scalar_lea.vmem %s0, %s489
        %v491 = vld [vmem:[%s490] sm:$0xff]
        %v492 = vld [vmem:[%s490 + $0x8] sm:$0xff]
        %s493 = scalar_lea.vmem %s490, 16
        %v494 = vld [vmem:[%s493] sm:$0xff]
        %v495 = vld [vmem:[%s493 + $0x8] sm:$0xff]
        %s496 = scalar_lea.vmem %s490, 32
        %v497 = vld [vmem:[%s496] sm:$0xff]
        %v498 = vld [vmem:[%s496 + $0x8] sm:$0xff]
        %s499 = scalar_lea.vmem %s490, 48
        %v500 = vld [vmem:[%s499] sm:$0xff]
        %v501 = vld [vmem:[%s499 + $0x8] sm:$0xff]
        %s502 = sld [smem:[#allocation2]]
        %v503 = vstv %s502
        %v504 = vmul.f32 %v491, %v503
        %v505 = vmul.f32 %v492, %v503
        %s506 = sld [smem:[#allocation2 + $0x1]]
        %v507 = vstv %s506
        %v508 = vmul.f32 %v494, %v507
        %v509 = vmul.f32 %v495, %v507
        %v510 = vadd.f32 %v504, %v508
        %v511 = vadd.f32 %v505, %v509
        %s512 = sld [smem:[#allocation2 + $0x2]]
        %v513 = vstv %s512
        %v514 = vmul.f32 %v497, %v513
        %v515 = vmul.f32 %v498, %v513
        %v516 = vadd.f32 %v510, %v514
        %v517 = vadd.f32 %v511, %v515
        %s518 = sld [smem:[#allocation2 + $0x3]]
        %v519 = vstv %s518
        %v520 = vmul.f32 %v500, %v519
        %v521 = vmul.f32 %v501, %v519
        %v522 = vadd.f32 %v516, %v520
        %v523 = vadd.f32 %v517, %v521
        %s524 = sld [smem:[#allocation5]]
        %v525 = vstv %s524
        %v526 = vadd.f32 %v522, %v525
        %v527 = vadd.f32 %v523, %v525
        %s528 = sld [smem:[#allocation2 + $0x80]]
        %v529 = vstv %s528
        %v530 = vmul.f32 %v491, %v529
        %v531 = vmul.f32 %v492, %v529
        %s532 = sld [smem:[#allocation2 + $0x81]]
        %v533 = vstv %s532
        %v534 = vmul.f32 %v494, %v533
        %v535 = vmul.f32 %v495, %v533
        %v536 = vadd.f32 %v530, %v534
        %v537 = vadd.f32 %v531, %v535
        %s538 = sld [smem:[#allocation2 + $0x82]]
        %v539 = vstv %s538
        %v540 = vmul.f32 %v497, %v539
        %v541 = vmul.f32 %v498, %v539
        %v542 = vadd.f32 %v536, %v540
        %v543 = vadd.f32 %v537, %v541
        %s544 = sld [smem:[#allocation2 + $0x83]]
        %v545 = vstv %s544
        %v546 = vmul.f32 %v500, %v545
        %v547 = vmul.f32 %v501, %v545
        %v548 = vadd.f32 %v542, %v546
        %v549 = vadd.f32 %v543, %v547
        %s550 = sld [smem:[#allocation5 + $0x1]]
        %v551 = vstv %s550
        %v552 = vadd.f32 %v548, %v551
        %v553 = vadd.f32 %v549, %v551
        %v554 = vld [vmem:[%s5] sm:$0xff]
        %v555 = vld [vmem:[%s5 + $0x8] sm:$0xff]
        %v556 = vld [vmem:[%s5 + $0x10] sm:$0xff]
        %v557 = vld [vmem:[%s5 + $0x18] sm:$0xff]
        %vm558 = vcmask 130048
        %v560 = vsel %vm558, %v554, 0
        %v563 = vsel %vm558, %v555, 0
        %v566 = vsel %vm558, %v556, 0
        %v569 = vsel %vm558, %v557, 0
        %571 = vmatprep.subr.mxu0 0.0
        %572 = vmatpush1.msra.mxu0 %v526
        %573 = vmatprep.subr.mxu0 0.0
        %574 = vmatpush1.msra.mxu0 %v527
        %575 = vmatprep.subr.mxu0 0.0
        %576 = vmatpush1.msra.mxu0 0.0
        %577 = vmatprep.subr.mxu0 0.0
        %578 = vmatpush1.msra.mxu0 0.0
        %579 = vmatprep.subr.mxu0 0.0
        %580 = vmatpush1.msra.mxu0 0.0
        %581 = vmatprep.subr.mxu0 0.0
        %582 = vmatpush1.msra.mxu0 0.0
        %583 = vmatprep.subr.mxu0 0.0
        %584 = vmatpush1.msra.mxu0 0.0
        %585 = vmatprep.subr.mxu0 0.0
        %586 = vmatpush1.msra.mxu0 0.0
        %587 = vmatprep.subr.mxu0 0.0
        %588 = vmatpush1.msra.mxu0 0.0
        %589 = vmatprep.subr.mxu0 0.0
        %590 = vmatpush1.msra.mxu0 0.0
        %591 = vmatprep.subr.mxu0 0.0
        %592 = vmatpush1.msra.mxu0 0.0
        %593 = vmatprep.subr.mxu0 0.0
        %594 = vmatpush1.msra.mxu0 0.0
        %595 = vmatprep.subr.mxu0 0.0
        %596 = vmatpush1.msra.mxu0 0.0
        %597 = vmatprep.subr.mxu0 0.0
        %598 = vmatpush1.msra.mxu0 0.0
        %599 = vmatprep.subr.mxu0 0.0
        %600 = vmatpush1.msra.mxu0 0.0
        %601 = vmatprep.subr.mxu0 0.0
        %602 = vmatpush1.msra.mxu0 0.0
        %603 = vmatprep.subr.mxu0 0.0
        %604 = vmatpush1.msra.mxu0 0.0
        %605 = vmatprep.subr.mxu0 0.0
        %606 = vmatpush1.msra.mxu0 0.0
        %607 = vmatprep.subr.mxu0 0.0
        %608 = vmatpush1.msra.mxu0 0.0
        %609 = vmatprep.subr.mxu0 0.0
        %610 = vmatpush1.msra.mxu0 0.0
        %611 = vmatprep.subr.mxu0 0.0
        %612 = vmatpush1.msra.mxu0 0.0
        %613 = vmatprep.subr.mxu0 0.0
        %614 = vmatpush1.msra.mxu0 0.0
        %615 = vmatprep.subr.mxu0 0.0
        %616 = vmatpush1.msra.mxu0 0.0
        %617 = vmatprep.subr.mxu0 0.0
        %618 = vmatpush1.msra.mxu0 0.0
        %619 = vmatprep.subr.mxu0 0.0
        %620 = vmatpush1.msra.mxu0 0.0
        %621 = vmatprep.subr.mxu0 0.0
        %622 = vmatpush1.msra.mxu0 0.0
        %623 = vmatprep.subr.mxu0 0.0
        %624 = vmatpush1.msra.mxu0 0.0
        %625 = vmatprep.subr.mxu0 0.0
        %626 = vmatpush1.msra.mxu0 0.0
        %627 = vmatprep.subr.mxu0 0.0
        %628 = vmatpush1.msra.mxu0 0.0
        %629 = vmatprep.subr.mxu0 0.0
        %630 = vmatpush1.msra.mxu0 0.0
        %631 = vmatprep.subr.mxu0 0.0
        %632 = vmatpush1.msra.mxu0 0.0
        %633 = vmatprep.subr.mxu0 0.0
        %634 = vmatpush1.msra.mxu0 0.0
        %635 = vmatprep.mubr.f32.mxu0 0.0
        %636 = vmatmul.mubr.f32.gmra.mrb[0].mxu0 %v560
        %v637 = vpop.f32.mrb[0].mxu0
        %v638 = vadd.f32 0.0, %v637
        %v639 = vpop.f32.mrb[0].mxu0
        %640 = vmatprep.mubr.f32.mxu0 0.0
        %641 = vmatmul.mubr.f32.gmra.mrb[0].mxu0 %v563
        %v642 = vpop.f32.mrb[0].mxu0
        %v643 = vadd.f32 0.0, %v642
        %v644 = vpop.f32.mrb[0].mxu0
        %645 = vmatprep.mubr.f32.mxu0 0.0
        %646 = vmatmul.mubr.f32.gmra.mrb[0].mxu0 %v566
        %v647 = vpop.f32.mrb[0].mxu0
        %v648 = vadd.f32 0.0, %v647
        %v649 = vpop.f32.mrb[0].mxu0
        %650 = vmatprep.mubr.f32.mxu0 0.0
        %651 = vmatmul.mubr.f32.gmra.mrb[0].mxu0 %v569
        %v652 = vpop.f32.mrb[0].mxu0
        %v653 = vadd.f32 0.0, %v652
        %v654 = vpop.f32.mrb[0].mxu0
        %655 = vdwg.mxu0
        %v656 = vld [vmem:[%s6] sm:$0xff]
        %v657 = vld [vmem:[%s6 + $0x8] sm:$0xff]
        %v659 = vsel %vm558, %v638, 0
        %v662 = vsel %vm558, %v643, 0
        %v665 = vsel %vm558, %v648, 0
        %v668 = vsel %vm558, %v653, 0
        %670 = vmatprep.subr.mxu0 0.0
        %671 = vmatpush1.msra.mxu0 %v656
        %672 = vmatprep.subr.mxu0 0.0
        %673 = vmatpush1.msra.mxu0 %v657
        %674 = vmatprep.subr.mxu0 0.0
        %675 = vmatpush1.msra.mxu0 0.0
        %676 = vmatprep.subr.mxu0 0.0
        %677 = vmatpush1.msra.mxu0 0.0
        %678 = vmatprep.subr.mxu0 0.0
        %679 = vmatpush1.msra.mxu0 0.0
        %680 = vmatprep.subr.mxu0 0.0
        %681 = vmatpush1.msra.mxu0 0.0
        %682 = vmatprep.subr.mxu0 0.0
        %683 = vmatpush1.msra.mxu0 0.0
        %684 = vmatprep.subr.mxu0 0.0
        %685 = vmatpush1.msra.mxu0 0.0
        %686 = vmatprep.subr.mxu0 0.0
        %687 = vmatpush1.msra.mxu0 0.0
        %688 = vmatprep.subr.mxu0 0.0
        %689 = vmatpush1.msra.mxu0 0.0
        %690 = vmatprep.subr.mxu0 0.0
        %691 = vmatpush1.msra.mxu0 0.0
        %692 = vmatprep.subr.mxu0 0.0
        %693 = vmatpush1.msra.mxu0 0.0
        %694 = vmatprep.subr.mxu0 0.0
        %695 = vmatpush1.msra.mxu0 0.0
        %696 = vmatprep.subr.mxu0 0.0
        %697 = vmatpush1.msra.mxu0 0.0
        %698 = vmatprep.subr.mxu0 0.0
        %699 = vmatpush1.msra.mxu0 0.0
        %700 = vmatprep.subr.mxu0 0.0
        %701 = vmatpush1.msra.mxu0 0.0
        %702 = vmatprep.subr.mxu0 0.0
        %703 = vmatpush1.msra.mxu0 0.0
        %704 = vmatprep.subr.mxu0 0.0
        %705 = vmatpush1.msra.mxu0 0.0
        %706 = vmatprep.subr.mxu0 0.0
        %707 = vmatpush1.msra.mxu0 0.0
        %708 = vmatprep.subr.mxu0 0.0
        %709 = vmatpush1.msra.mxu0 0.0
        %710 = vmatprep.subr.mxu0 0.0
        %711 = vmatpush1.msra.mxu0 0.0
        %712 = vmatprep.subr.mxu0 0.0
        %713 = vmatpush1.msra.mxu0 0.0
        %714 = vmatprep.subr.mxu0 0.0
        %715 = vmatpush1.msra.mxu0 0.0
        %716 = vmatprep.subr.mxu0 0.0
        %717 = vmatpush1.msra.mxu0 0.0
        %718 = vmatprep.subr.mxu0 0.0
        %719 = vmatpush1.msra.mxu0 0.0
        %720 = vmatprep.subr.mxu0 0.0
        %721 = vmatpush1.msra.mxu0 0.0
        %722 = vmatprep.subr.mxu0 0.0
        %723 = vmatpush1.msra.mxu0 0.0
        %724 = vmatprep.subr.mxu0 0.0
        %725 = vmatpush1.msra.mxu0 0.0
        %726 = vmatprep.subr.mxu0 0.0
        %727 = vmatpush1.msra.mxu0 0.0
        %728 = vmatprep.subr.mxu0 0.0
        %729 = vmatpush1.msra.mxu0 0.0
        %730 = vmatprep.subr.mxu0 0.0
        %731 = vmatpush1.msra.mxu0 0.0
        %732 = vmatprep.subr.mxu0 0.0
        %733 = vmatpush1.msra.mxu0 0.0
        %734 = vmatprep.mubr.f32.mxu0 0.0
        %735 = vmatmul.mubr.f32.gmra.mrb[0].mxu0 %v659
        %v736 = vpop.f32.mrb[0].mxu0
        %v737 = vadd.f32 0.0, %v736
        %v738 = vpop.f32.mrb[0].mxu0
        %739 = vmatprep.mubr.f32.mxu0 0.0
        %740 = vmatmul.mubr.f32.gmra.mrb[0].mxu0 %v662
        %v741 = vpop.f32.mrb[0].mxu0
        %v742 = vadd.f32 0.0, %v741
        %v743 = vpop.f32.mrb[0].mxu0
        %744 = vmatprep.mubr.f32.mxu0 0.0
        %745 = vmatmul.mubr.f32.gmra.mrb[0].mxu0 %v665
        %v746 = vpop.f32.mrb[0].mxu0
        %v747 = vadd.f32 0.0, %v746
        %v748 = vpop.f32.mrb[0].mxu0
        %749 = vmatprep.mubr.f32.mxu0 0.0
        %750 = vmatmul.mubr.f32.gmra.mrb[0].mxu0 %v668
        %v751 = vpop.f32.mrb[0].mxu0
        %v752 = vadd.f32 0.0, %v751
        %v753 = vpop.f32.mrb[0].mxu0
        %754 = vdwg.mxu0
        %755 = vmatprep.subr.mxu0 0.0
        %756 = vmatpush1.msra.mxu0 %v552
        %757 = vmatprep.subr.mxu0 0.0
        %758 = vmatpush1.msra.mxu0 %v553
        %759 = vmatprep.subr.mxu0 0.0
        %760 = vmatpush1.msra.mxu0 0.0
        %761 = vmatprep.subr.mxu0 0.0
        %762 = vmatpush1.msra.mxu0 0.0
        %763 = vmatprep.subr.mxu0 0.0
        %764 = vmatpush1.msra.mxu0 0.0
        %765 = vmatprep.subr.mxu0 0.0
        %766 = vmatpush1.msra.mxu0 0.0
        %767 = vmatprep.subr.mxu0 0.0
        %768 = vmatpush1.msra.mxu0 0.0
        %769 = vmatprep.subr.mxu0 0.0
        %770 = vmatpush1.msra.mxu0 0.0
        %771 = vmatprep.subr.mxu0 0.0
        %772 = vmatpush1.msra.mxu0 0.0
        %773 = vmatprep.subr.mxu0 0.0
        %774 = vmatpush1.msra.mxu0 0.0
        %775 = vmatprep.subr.mxu0 0.0
        %776 = vmatpush1.msra.mxu0 0.0
        %777 = vmatprep.subr.mxu0 0.0
        %778 = vmatpush1.msra.mxu0 0.0
        %779 = vmatprep.subr.mxu0 0.0
        %780 = vmatpush1.msra.mxu0 0.0
        %781 = vmatprep.subr.mxu0 0.0
        %782 = vmatpush1.msra.mxu0 0.0
        %783 = vmatprep.subr.mxu0 0.0
        %784 = vmatpush1.msra.mxu0 0.0
        %785 = vmatprep.subr.mxu0 0.0
        %786 = vmatpush1.msra.mxu0 0.0
        %787 = vmatprep.subr.mxu0 0.0
        %788 = vmatpush1.msra.mxu0 0.0
        %789 = vmatprep.subr.mxu0 0.0
        %790 = vmatpush1.msra.mxu0 0.0
        %791 = vmatprep.subr.mxu0 0.0
        %792 = vmatpush1.msra.mxu0 0.0
        %793 = vmatprep.subr.mxu0 0.0
        %794 = vmatpush1.msra.mxu0 0.0
        %795 = vmatprep.subr.mxu0 0.0
        %796 = vmatpush1.msra.mxu0 0.0
        %797 = vmatprep.subr.mxu0 0.0
        %798 = vmatpush1.msra.mxu0 0.0
        %799 = vmatprep.subr.mxu0 0.0
        %800 = vmatpush1.msra.mxu0 0.0
        %801 = vmatprep.subr.mxu0 0.0
        %802 = vmatpush1.msra.mxu0 0.0
        %803 = vmatprep.subr.mxu0 0.0
        %804 = vmatpush1.msra.mxu0 0.0
        %805 = vmatprep.subr.mxu0 0.0
        %806 = vmatpush1.msra.mxu0 0.0
        %807 = vmatprep.subr.mxu0 0.0
        %808 = vmatpush1.msra.mxu0 0.0
        %809 = vmatprep.subr.mxu0 0.0
        %810 = vmatpush1.msra.mxu0 0.0
        %811 = vmatprep.subr.mxu0 0.0
        %812 = vmatpush1.msra.mxu0 0.0
        %813 = vmatprep.subr.mxu0 0.0
        %814 = vmatpush1.msra.mxu0 0.0
        %815 = vmatprep.subr.mxu0 0.0
        %816 = vmatpush1.msra.mxu0 0.0
        %817 = vmatprep.subr.mxu0 0.0
        %818 = vmatpush1.msra.mxu0 0.0
        %819 = vmatprep.mubr.f32.mxu0 0.0
        %820 = vmatmul.mubr.f32.gmra.mrb[0].mxu0 %v560
        %v821 = vpop.f32.mrb[0].mxu0
        %v822 = vadd.f32 0.0, %v821
        %v823 = vpop.f32.mrb[0].mxu0
        %824 = vmatprep.mubr.f32.mxu0 0.0
        %825 = vmatmul.mubr.f32.gmra.mrb[0].mxu0 %v563
        %v826 = vpop.f32.mrb[0].mxu0
        %v827 = vadd.f32 0.0, %v826
        %v828 = vpop.f32.mrb[0].mxu0
        %829 = vmatprep.mubr.f32.mxu0 0.0
        %830 = vmatmul.mubr.f32.gmra.mrb[0].mxu0 %v566
        %v831 = vpop.f32.mrb[0].mxu0
        %v832 = vadd.f32 0.0, %v831
        %v833 = vpop.f32.mrb[0].mxu0
        %834 = vmatprep.mubr.f32.mxu0 0.0
        %835 = vmatmul.mubr.f32.gmra.mrb[0].mxu0 %v569
        %v836 = vpop.f32.mrb[0].mxu0
        %v837 = vadd.f32 0.0, %v836
        %v838 = vpop.f32.mrb[0].mxu0
        %839 = vdwg.mxu0
        %v841 = vsel %vm558, %v822, 0
        %v844 = vsel %vm558, %v827, 0
        %v847 = vsel %vm558, %v832, 0
        %v850 = vsel %vm558, %v837, 0
        %852 = vmatprep.subr.mxu0 0.0
        %853 = vmatpush1.msra.mxu0 %v656
        %854 = vmatprep.subr.mxu0 0.0
        %855 = vmatpush1.msra.mxu0 %v657
        %856 = vmatprep.subr.mxu0 0.0
        %857 = vmatpush1.msra.mxu0 0.0
        %858 = vmatprep.subr.mxu0 0.0
        %859 = vmatpush1.msra.mxu0 0.0
        %860 = vmatprep.subr.mxu0 0.0
        %861 = vmatpush1.msra.mxu0 0.0
        %862 = vmatprep.subr.mxu0 0.0
        %863 = vmatpush1.msra.mxu0 0.0
        %864 = vmatprep.subr.mxu0 0.0
        %865 = vmatpush1.msra.mxu0 0.0
        %866 = vmatprep.subr.mxu0 0.0
        %867 = vmatpush1.msra.mxu0 0.0
        %868 = vmatprep.subr.mxu0 0.0
        %869 = vmatpush1.msra.mxu0 0.0
        %870 = vmatprep.subr.mxu0 0.0
        %871 = vmatpush1.msra.mxu0 0.0
        %872 = vmatprep.subr.mxu0 0.0
        %873 = vmatpush1.msra.mxu0 0.0
        %874 = vmatprep.subr.mxu0 0.0
        %875 = vmatpush1.msra.mxu0 0.0
        %876 = vmatprep.subr.mxu0 0.0
        %877 = vmatpush1.msra.mxu0 0.0
        %878 = vmatprep.subr.mxu0 0.0
        %879 = vmatpush1.msra.mxu0 0.0
        %880 = vmatprep.subr.mxu0 0.0
        %881 = vmatpush1.msra.mxu0 0.0
        %882 = vmatprep.subr.mxu0 0.0
        %883 = vmatpush1.msra.mxu0 0.0
        %884 = vmatprep.subr.mxu0 0.0
        %885 = vmatpush1.msra.mxu0 0.0
        %886 = vmatprep.subr.mxu0 0.0
        %887 = vmatpush1.msra.mxu0 0.0
        %888 = vmatprep.subr.mxu0 0.0
        %889 = vmatpush1.msra.mxu0 0.0
        %890 = vmatprep.subr.mxu0 0.0
        %891 = vmatpush1.msra.mxu0 0.0
        %892 = vmatprep.subr.mxu0 0.0
        %893 = vmatpush1.msra.mxu0 0.0
        %894 = vmatprep.subr.mxu0 0.0
        %895 = vmatpush1.msra.mxu0 0.0
        %896 = vmatprep.subr.mxu0 0.0
        %897 = vmatpush1.msra.mxu0 0.0
        %898 = vmatprep.subr.mxu0 0.0
        %899 = vmatpush1.msra.mxu0 0.0
        %900 = vmatprep.subr.mxu0 0.0
        %901 = vmatpush1.msra.mxu0 0.0
        %902 = vmatprep.subr.mxu0 0.0
        %903 = vmatpush1.msra.mxu0 0.0
        %904 = vmatprep.subr.mxu0 0.0
        %905 = vmatpush1.msra.mxu0 0.0
        %906 = vmatprep.subr.mxu0 0.0
        %907 = vmatpush1.msra.mxu0 0.0
        %908 = vmatprep.subr.mxu0 0.0
        %909 = vmatpush1.msra.mxu0 0.0
        %910 = vmatprep.subr.mxu0 0.0
        %911 = vmatpush1.msra.mxu0 0.0
        %912 = vmatprep.subr.mxu0 0.0
        %913 = vmatpush1.msra.mxu0 0.0
        %914 = vmatprep.subr.mxu0 0.0
        %915 = vmatpush1.msra.mxu0 0.0
        %916 = vmatprep.mubr.f32.mxu0 0.0
        %917 = vmatmul.mubr.f32.gmra.mrb[0].mxu0 %v841
        %v918 = vpop.f32.mrb[0].mxu0
        %v919 = vadd.f32 0.0, %v918
        %v920 = vpop.f32.mrb[0].mxu0
        %921 = vmatprep.mubr.f32.mxu0 0.0
        %922 = vmatmul.mubr.f32.gmra.mrb[0].mxu0 %v844
        %v923 = vpop.f32.mrb[0].mxu0
        %v924 = vadd.f32 0.0, %v923
        %v925 = vpop.f32.mrb[0].mxu0
        %926 = vmatprep.mubr.f32.mxu0 0.0
        %927 = vmatmul.mubr.f32.gmra.mrb[0].mxu0 %v847
        %v928 = vpop.f32.mrb[0].mxu0
        %v929 = vadd.f32 0.0, %v928
        %v930 = vpop.f32.mrb[0].mxu0
        %931 = vmatprep.mubr.f32.mxu0 0.0
        %932 = vmatmul.mubr.f32.gmra.mrb[0].mxu0 %v850
        %v933 = vpop.f32.mrb[0].mxu0
        %v934 = vadd.f32 0.0, %v933
        %v935 = vpop.f32.mrb[0].mxu0
        %936 = vdwg.mxu0
        %s937 = sld [smem:[#allocation7]]
        %v938 = vstv %s937
        %v939 = vmul.f32 %v737, %v938
        %v940 = vmul.f32 %v742, %v938
        %v941 = vmul.f32 %v747, %v938
        %v942 = vmul.f32 %v752, %v938
        %s943 = sld [smem:[#allocation7 + $0x1]]
        %v944 = vstv %s943
        %v945 = vmul.f32 %v919, %v944
        %v946 = vmul.f32 %v924, %v944
        %v947 = vmul.f32 %v929, %v944
        %v948 = vmul.f32 %v934, %v944
        %v949 = vadd.f32 %v939, %v945
        %v950 = vadd.f32 %v940, %v946
        %v951 = vadd.f32 %v941, %v947
        %v952 = vadd.f32 %v942, %v948
        %s953 = sld [smem:[#allocation8]]
        %v954 = vstv %s953
        %v955 = vadd.f32 %v949, %v954
        %v956 = vadd.f32 %v950, %v954
        %v957 = vadd.f32 %v951, %v954
        %v958 = vadd.f32 %v952, %v954
        %s959 = sld [smem:[#allocation7 + $0x80]]
        %v960 = vstv %s959
        %v961 = vmul.f32 %v737, %v960
        %v962 = vmul.f32 %v742, %v960
        %v963 = vmul.f32 %v747, %v960
        %v964 = vmul.f32 %v752, %v960
        %s965 = sld [smem:[#allocation7 + $0x81]]
        %v966 = vstv %s965
        %v967 = vmul.f32 %v919, %v966
        %v968 = vmul.f32 %v924, %v966
        %v969 = vmul.f32 %v929, %v966
        %v970 = vmul.f32 %v934, %v966
        %v971 = vadd.f32 %v961, %v967
        %v972 = vadd.f32 %v962, %v968
        %v973 = vadd.f32 %v963, %v969
        %v974 = vadd.f32 %v964, %v970
        %s975 = sld [smem:[#allocation8 + $0x1]]
        %v976 = vstv %s975
        %v977 = vadd.f32 %v971, %v976
        %v978 = vadd.f32 %v972, %v976
        %v979 = vadd.f32 %v973, %v976
        %v980 = vadd.f32 %v974, %v976
        %v981 = vld [vmem:[%s7] sm:$0xff]
        %v982 = vld [vmem:[%s7 + $0x8] sm:$0xff]
        %v983 = vld [vmem:[%s7 + $0x10] sm:$0xff]
        %v984 = vld [vmem:[%s7 + $0x18] sm:$0xff]
        %v985 = vld [vmem:[%s7 + $0x20] sm:$0xff]
        %v986 = vld [vmem:[%s7 + $0x28] sm:$0xff]
        %v987 = vld [vmem:[%s7 + $0x30] sm:$0xff]
        %v988 = vld [vmem:[%s7 + $0x38] sm:$0xff]
        %vm989 = vcmask 261120
        %v991 = vsel %vm989, %v981, 0
        %v994 = vsel %vm989, %v982, 0
        %v997 = vsel %vm989, %v983, 0
        %v1000 = vsel %vm989, %v984, 0
        %v1003 = vsel %vm989, %v985, 0
        %v1006 = vsel %vm989, %v986, 0
        %v1009 = vsel %vm989, %v987, 0
        %v1012 = vsel %vm989, %v988, 0
        %1014 = vmatprep.subr.mxu0 0.0
        %1015 = vmatpush1.msra.mxu0 %v955
        %1016 = vmatprep.subr.mxu0 0.0
        %1017 = vmatpush1.msra.mxu0 %v956
        %1018 = vmatprep.subr.mxu0 0.0
        %1019 = vmatpush1.msra.mxu0 %v957
        %1020 = vmatprep.subr.mxu0 0.0
        %1021 = vmatpush1.msra.mxu0 %v958
        %1022 = vmatprep.subr.mxu0 0.0
        %1023 = vmatpush1.msra.mxu0 0.0
        %1024 = vmatprep.subr.mxu0 0.0
        %1025 = vmatpush1.msra.mxu0 0.0
        %1026 = vmatprep.subr.mxu0 0.0
        %1027 = vmatpush1.msra.mxu0 0.0
        %1028 = vmatprep.subr.mxu0 0.0
        %1029 = vmatpush1.msra.mxu0 0.0
        %1030 = vmatprep.subr.mxu0 0.0
        %1031 = vmatpush1.msra.mxu0 0.0
        %1032 = vmatprep.subr.mxu0 0.0
        %1033 = vmatpush1.msra.mxu0 0.0
        %1034 = vmatprep.subr.mxu0 0.0
        %1035 = vmatpush1.msra.mxu0 0.0
        %1036 = vmatprep.subr.mxu0 0.0
        %1037 = vmatpush1.msra.mxu0 0.0
        %1038 = vmatprep.subr.mxu0 0.0
        %1039 = vmatpush1.msra.mxu0 0.0
        %1040 = vmatprep.subr.mxu0 0.0
        %1041 = vmatpush1.msra.mxu0 0.0
        %1042 = vmatprep.subr.mxu0 0.0
        %1043 = vmatpush1.msra.mxu0 0.0
        %1044 = vmatprep.subr.mxu0 0.0
        %1045 = vmatpush1.msra.mxu0 0.0
        %1046 = vmatprep.subr.mxu0 0.0
        %1047 = vmatpush1.msra.mxu0 0.0
        %1048 = vmatprep.subr.mxu0 0.0
        %1049 = vmatpush1.msra.mxu0 0.0
        %1050 = vmatprep.subr.mxu0 0.0
        %1051 = vmatpush1.msra.mxu0 0.0
        %1052 = vmatprep.subr.mxu0 0.0
        %1053 = vmatpush1.msra.mxu0 0.0
        %1054 = vmatprep.subr.mxu0 0.0
        %1055 = vmatpush1.msra.mxu0 0.0
        %1056 = vmatprep.subr.mxu0 0.0
        %1057 = vmatpush1.msra.mxu0 0.0
        %1058 = vmatprep.subr.mxu0 0.0
        %1059 = vmatpush1.msra.mxu0 0.0
        %1060 = vmatprep.subr.mxu0 0.0
        %1061 = vmatpush1.msra.mxu0 0.0
        %1062 = vmatprep.subr.mxu0 0.0
        %1063 = vmatpush1.msra.mxu0 0.0
        %1064 = vmatprep.subr.mxu0 0.0
        %1065 = vmatpush1.msra.mxu0 0.0
        %1066 = vmatprep.subr.mxu0 0.0
        %1067 = vmatpush1.msra.mxu0 0.0
        %1068 = vmatprep.subr.mxu0 0.0
        %1069 = vmatpush1.msra.mxu0 0.0
        %1070 = vmatprep.subr.mxu0 0.0
        %1071 = vmatpush1.msra.mxu0 0.0
        %1072 = vmatprep.subr.mxu0 0.0
        %1073 = vmatpush1.msra.mxu0 0.0
        %1074 = vmatprep.subr.mxu0 0.0
        %1075 = vmatpush1.msra.mxu0 0.0
        %1076 = vmatprep.subr.mxu0 0.0
        %1077 = vmatpush1.msra.mxu0 0.0
        %1078 = vmatprep.mubr.f32.mxu0 0.0
        %1079 = vmatmul.mubr.f32.gmra.mrb[0].mxu0 %v991
        %v1080 = vpop.f32.mrb[0].mxu0
        %v1081 = vadd.f32 0.0, %v1080
        %v1082 = vpop.f32.mrb[0].mxu0
        %1083 = vmatprep.mubr.f32.mxu0 0.0
        %1084 = vmatmul.mubr.f32.gmra.mrb[0].mxu0 %v994
        %v1085 = vpop.f32.mrb[0].mxu0
        %v1086 = vadd.f32 0.0, %v1085
        %v1087 = vpop.f32.mrb[0].mxu0
        %1088 = vmatprep.mubr.f32.mxu0 0.0
        %1089 = vmatmul.mubr.f32.gmra.mrb[0].mxu0 %v997
        %v1090 = vpop.f32.mrb[0].mxu0
        %v1091 = vadd.f32 0.0, %v1090
        %v1092 = vpop.f32.mrb[0].mxu0
        %1093 = vmatprep.mubr.f32.mxu0 0.0
        %1094 = vmatmul.mubr.f32.gmra.mrb[0].mxu0 %v1000
        %v1095 = vpop.f32.mrb[0].mxu0
        %v1096 = vadd.f32 0.0, %v1095
        %v1097 = vpop.f32.mrb[0].mxu0
        %1098 = vmatprep.mubr.f32.mxu0 0.0
        %1099 = vmatmul.mubr.f32.gmra.mrb[0].mxu0 %v1003
        %v1100 = vpop.f32.mrb[0].mxu0
        %v1101 = vadd.f32 0.0, %v1100
        %v1102 = vpop.f32.mrb[0].mxu0
        %1103 = vmatprep.mubr.f32.mxu0 0.0
        %1104 = vmatmul.mubr.f32.gmra.mrb[0].mxu0 %v1006
        %v1105 = vpop.f32.mrb[0].mxu0
        %v1106 = vadd.f32 0.0, %v1105
        %v1107 = vpop.f32.mrb[0].mxu0
        %1108 = vmatprep.mubr.f32.mxu0 0.0
        %1109 = vmatmul.mubr.f32.gmra.mrb[0].mxu0 %v1009
        %v1110 = vpop.f32.mrb[0].mxu0
        %v1111 = vadd.f32 0.0, %v1110
        %v1112 = vpop.f32.mrb[0].mxu0
        %1113 = vmatprep.mubr.f32.mxu0 0.0
        %1114 = vmatmul.mubr.f32.gmra.mrb[0].mxu0 %v1012
        %v1115 = vpop.f32.mrb[0].mxu0
        %v1116 = vadd.f32 0.0, %v1115
        %v1117 = vpop.f32.mrb[0].mxu0
        %1118 = vdwg.mxu0
        %v1119 = vld [vmem:[%s8] sm:$0xff]
        %v1120 = vld [vmem:[%s8 + $0x8] sm:$0xff]
        %v1121 = vld [vmem:[%s8 + $0x10] sm:$0xff]
        %v1122 = vld [vmem:[%s8 + $0x18] sm:$0xff]
        %v1123 = vld [vmem:[%s8 + $0x20] sm:$0xff]
        %v1124 = vld [vmem:[%s8 + $0x28] sm:$0xff]
        %v1125 = vld [vmem:[%s8 + $0x30] sm:$0xff]
        %v1126 = vld [vmem:[%s8 + $0x38] sm:$0xff]
        %vm1127 = vcmask 523264
        %v1129 = vsel %vm1127, %v1081, 0
        %v1132 = vsel %vm1127, %v1086, 0
        %v1135 = vsel %vm1127, %v1091, 0
        %v1138 = vsel %vm1127, %v1096, 0
        %v1141 = vsel %vm1127, %v1101, 0
        %v1144 = vsel %vm1127, %v1106, 0
        %v1147 = vsel %vm1127, %v1111, 0
        %v1150 = vsel %vm1127, %v1116, 0
        %1152 = vmatprep.subr.mxu0 0.0
        %1153 = vmatpush1.msra.mxu0 %v1119
        %1154 = vmatprep.subr.mxu0 0.0
        %1155 = vmatpush1.msra.mxu0 %v1120
        %1156 = vmatprep.subr.mxu0 0.0
        %1157 = vmatpush1.msra.mxu0 %v1121
        %1158 = vmatprep.subr.mxu0 0.0
        %1159 = vmatpush1.msra.mxu0 %v1122
        %1160 = vmatprep.subr.mxu0 0.0
        %1161 = vmatpush1.msra.mxu0 %v1123
        %1162 = vmatprep.subr.mxu0 0.0
        %1163 = vmatpush1.msra.mxu0 %v1124
        %1164 = vmatprep.subr.mxu0 0.0
        %1165 = vmatpush1.msra.mxu0 %v1125
        %1166 = vmatprep.subr.mxu0 0.0
        %1167 = vmatpush1.msra.mxu0 %v1126
        %1168 = vmatprep.subr.mxu0 0.0
        %1169 = vmatpush1.msra.mxu0 0.0
        %1170 = vmatprep.subr.mxu0 0.0
        %1171 = vmatpush1.msra.mxu0 0.0
        %1172 = vmatprep.subr.mxu0 0.0
        %1173 = vmatpush1.msra.mxu0 0.0
        %1174 = vmatprep.subr.mxu0 0.0
        %1175 = vmatpush1.msra.mxu0 0.0
        %1176 = vmatprep.subr.mxu0 0.0
        %1177 = vmatpush1.msra.mxu0 0.0
        %1178 = vmatprep.subr.mxu0 0.0
        %1179 = vmatpush1.msra.mxu0 0.0
        %1180 = vmatprep.subr.mxu0 0.0
        %1181 = vmatpush1.msra.mxu0 0.0
        %1182 = vmatprep.subr.mxu0 0.0
        %1183 = vmatpush1.msra.mxu0 0.0
        %1184 = vmatprep.subr.mxu0 0.0
        %1185 = vmatpush1.msra.mxu0 0.0
        %1186 = vmatprep.subr.mxu0 0.0
        %1187 = vmatpush1.msra.mxu0 0.0
        %1188 = vmatprep.subr.mxu0 0.0
        %1189 = vmatpush1.msra.mxu0 0.0
        %1190 = vmatprep.subr.mxu0 0.0
        %1191 = vmatpush1.msra.mxu0 0.0
        %1192 = vmatprep.subr.mxu0 0.0
        %1193 = vmatpush1.msra.mxu0 0.0
        %1194 = vmatprep.subr.mxu0 0.0
        %1195 = vmatpush1.msra.mxu0 0.0
        %1196 = vmatprep.subr.mxu0 0.0
        %1197 = vmatpush1.msra.mxu0 0.0
        %1198 = vmatprep.subr.mxu0 0.0
        %1199 = vmatpush1.msra.mxu0 0.0
        %1200 = vmatprep.subr.mxu0 0.0
        %1201 = vmatpush1.msra.mxu0 0.0
        %1202 = vmatprep.subr.mxu0 0.0
        %1203 = vmatpush1.msra.mxu0 0.0
        %1204 = vmatprep.subr.mxu0 0.0
        %1205 = vmatpush1.msra.mxu0 0.0
        %1206 = vmatprep.subr.mxu0 0.0
        %1207 = vmatpush1.msra.mxu0 0.0
        %1208 = vmatprep.subr.mxu0 0.0
        %1209 = vmatpush1.msra.mxu0 0.0
        %1210 = vmatprep.subr.mxu0 0.0
        %1211 = vmatpush1.msra.mxu0 0.0
        %1212 = vmatprep.subr.mxu0 0.0
        %1213 = vmatpush1.msra.mxu0 0.0
        %1214 = vmatprep.subr.mxu0 0.0
        %1215 = vmatpush1.msra.mxu0 0.0
        %1216 = vmatprep.mubr.f32.mxu0 0.0
        %1217 = vmatmul.mubr.f32.gmra.mrb[0].mxu0 %v1129
        %v1218 = vpop.f32.mrb[0].mxu0
        %v1219 = vadd.f32 0.0, %v1218
        %v1220 = vpop.f32.mrb[0].mxu0
        %1221 = vmatprep.mubr.f32.mxu0 0.0
        %1222 = vmatmul.mubr.f32.gmra.mrb[0].mxu0 %v1132
        %v1223 = vpop.f32.mrb[0].mxu0
        %v1224 = vadd.f32 0.0, %v1223
        %v1225 = vpop.f32.mrb[0].mxu0
        %1226 = vmatprep.mubr.f32.mxu0 0.0
        %1227 = vmatmul.mubr.f32.gmra.mrb[0].mxu0 %v1135
        %v1228 = vpop.f32.mrb[0].mxu0
        %v1229 = vadd.f32 0.0, %v1228
        %v1230 = vpop.f32.mrb[0].mxu0
        %1231 = vmatprep.mubr.f32.mxu0 0.0
        %1232 = vmatmul.mubr.f32.gmra.mrb[0].mxu0 %v1138
        %v1233 = vpop.f32.mrb[0].mxu0
        %v1234 = vadd.f32 0.0, %v1233
        %v1235 = vpop.f32.mrb[0].mxu0
        %1236 = vmatprep.mubr.f32.mxu0 0.0
        %1237 = vmatmul.mubr.f32.gmra.mrb[0].mxu0 %v1141
        %v1238 = vpop.f32.mrb[0].mxu0
        %v1239 = vadd.f32 0.0, %v1238
        %v1240 = vpop.f32.mrb[0].mxu0
        %1241 = vmatprep.mubr.f32.mxu0 0.0
        %1242 = vmatmul.mubr.f32.gmra.mrb[0].mxu0 %v1144
        %v1243 = vpop.f32.mrb[0].mxu0
        %v1244 = vadd.f32 0.0, %v1243
        %v1245 = vpop.f32.mrb[0].mxu0
        %1246 = vmatprep.mubr.f32.mxu0 0.0
        %1247 = vmatmul.mubr.f32.gmra.mrb[0].mxu0 %v1147
        %v1248 = vpop.f32.mrb[0].mxu0
        %v1249 = vadd.f32 0.0, %v1248
        %v1250 = vpop.f32.mrb[0].mxu0
        %1251 = vmatprep.mubr.f32.mxu0 0.0
        %1252 = vmatmul.mubr.f32.gmra.mrb[0].mxu0 %v1150
        %v1253 = vpop.f32.mrb[0].mxu0
        %v1254 = vadd.f32 0.0, %v1253
        %v1255 = vpop.f32.mrb[0].mxu0
        %1256 = vdwg.mxu0
        %1257 = vmatprep.subr.mxu0 0.0
        %1258 = vmatpush1.msra.mxu0 %v977
        %1259 = vmatprep.subr.mxu0 0.0
        %1260 = vmatpush1.msra.mxu0 %v978
        %1261 = vmatprep.subr.mxu0 0.0
        %1262 = vmatpush1.msra.mxu0 %v979
        %1263 = vmatprep.subr.mxu0 0.0
        %1264 = vmatpush1.msra.mxu0 %v980
        %1265 = vmatprep.subr.mxu0 0.0
        %1266 = vmatpush1.msra.mxu0 0.0
        %1267 = vmatprep.subr.mxu0 0.0
        %1268 = vmatpush1.msra.mxu0 0.0
        %1269 = vmatprep.subr.mxu0 0.0
        %1270 = vmatpush1.msra.mxu0 0.0
        %1271 = vmatprep.subr.mxu0 0.0
        %1272 = vmatpush1.msra.mxu0 0.0
        %1273 = vmatprep.subr.mxu0 0.0
        %1274 = vmatpush1.msra.mxu0 0.0
        %1275 = vmatprep.subr.mxu0 0.0
        %1276 = vmatpush1.msra.mxu0 0.0
        %1277 = vmatprep.subr.mxu0 0.0
        %1278 = vmatpush1.msra.mxu0 0.0
        %1279 = vmatprep.subr.mxu0 0.0
        %1280 = vmatpush1.msra.mxu0 0.0
        %1281 = vmatprep.subr.mxu0 0.0
        %1282 = vmatpush1.msra.mxu0 0.0
        %1283 = vmatprep.subr.mxu0 0.0
        %1284 = vmatpush1.msra.mxu0 0.0
        %1285 = vmatprep.subr.mxu0 0.0
        %1286 = vmatpush1.msra.mxu0 0.0
        %1287 = vmatprep.subr.mxu0 0.0
        %1288 = vmatpush1.msra.mxu0 0.0
        %1289 = vmatprep.subr.mxu0 0.0
        %1290 = vmatpush1.msra.mxu0 0.0
        %1291 = vmatprep.subr.mxu0 0.0
        %1292 = vmatpush1.msra.mxu0 0.0
        %1293 = vmatprep.subr.mxu0 0.0
        %1294 = vmatpush1.msra.mxu0 0.0
        %1295 = vmatprep.subr.mxu0 0.0
        %1296 = vmatpush1.msra.mxu0 0.0
        %1297 = vmatprep.subr.mxu0 0.0
        %1298 = vmatpush1.msra.mxu0 0.0
        %1299 = vmatprep.subr.mxu0 0.0
        %1300 = vmatpush1.msra.mxu0 0.0
        %1301 = vmatprep.subr.mxu0 0.0
        %1302 = vmatpush1.msra.mxu0 0.0
        %1303 = vmatprep.subr.mxu0 0.0
        %1304 = vmatpush1.msra.mxu0 0.0
        %1305 = vmatprep.subr.mxu0 0.0
        %1306 = vmatpush1.msra.mxu0 0.0
        %1307 = vmatprep.subr.mxu0 0.0
        %1308 = vmatpush1.msra.mxu0 0.0
        %1309 = vmatprep.subr.mxu0 0.0
        %1310 = vmatpush1.msra.mxu0 0.0
        %1311 = vmatprep.subr.mxu0 0.0
        %1312 = vmatpush1.msra.mxu0 0.0
        %1313 = vmatprep.subr.mxu0 0.0
        %1314 = vmatpush1.msra.mxu0 0.0
        %1315 = vmatprep.subr.mxu0 0.0
        %1316 = vmatpush1.msra.mxu0 0.0
        %1317 = vmatprep.subr.mxu0 0.0
        %1318 = vmatpush1.msra.mxu0 0.0
        %1319 = vmatprep.subr.mxu0 0.0
        %1320 = vmatpush1.msra.mxu0 0.0
        %1321 = vmatprep.mubr.f32.mxu0 0.0
        %1322 = vmatmul.mubr.f32.gmra.mrb[0].mxu0 %v991
        %v1323 = vpop.f32.mrb[0].mxu0
        %v1324 = vadd.f32 0.0, %v1323
        %v1325 = vpop.f32.mrb[0].mxu0
        %1326 = vmatprep.mubr.f32.mxu0 0.0
        %1327 = vmatmul.mubr.f32.gmra.mrb[0].mxu0 %v994
        %v1328 = vpop.f32.mrb[0].mxu0
        %v1329 = vadd.f32 0.0, %v1328
        %v1330 = vpop.f32.mrb[0].mxu0
        %1331 = vmatprep.mubr.f32.mxu0 0.0
        %1332 = vmatmul.mubr.f32.gmra.mrb[0].mxu0 %v997
        %v1333 = vpop.f32.mrb[0].mxu0
        %v1334 = vadd.f32 0.0, %v1333
        %v1335 = vpop.f32.mrb[0].mxu0
        %1336 = vmatprep.mubr.f32.mxu0 0.0
        %1337 = vmatmul.mubr.f32.gmra.mrb[0].mxu0 %v1000
        %v1338 = vpop.f32.mrb[0].mxu0
        %v1339 = vadd.f32 0.0, %v1338
        %v1340 = vpop.f32.mrb[0].mxu0
        %1341 = vmatprep.mubr.f32.mxu0 0.0
        %1342 = vmatmul.mubr.f32.gmra.mrb[0].mxu0 %v1003
        %v1343 = vpop.f32.mrb[0].mxu0
        %v1344 = vadd.f32 0.0, %v1343
        %v1345 = vpop.f32.mrb[0].mxu0
        %1346 = vmatprep.mubr.f32.mxu0 0.0
        %1347 = vmatmul.mubr.f32.gmra.mrb[0].mxu0 %v1006
        %v1348 = vpop.f32.mrb[0].mxu0
        %v1349 = vadd.f32 0.0, %v1348
        %v1350 = vpop.f32.mrb[0].mxu0
        %1351 = vmatprep.mubr.f32.mxu0 0.0
        %1352 = vmatmul.mubr.f32.gmra.mrb[0].mxu0 %v1009
        %v1353 = vpop.f32.mrb[0].mxu0
        %v1354 = vadd.f32 0.0, %v1353
        %v1355 = vpop.f32.mrb[0].mxu0
        %1356 = vmatprep.mubr.f32.mxu0 0.0
        %1357 = vmatmul.mubr.f32.gmra.mrb[0].mxu0 %v1012
        %v1358 = vpop.f32.mrb[0].mxu0
        %v1359 = vadd.f32 0.0, %v1358
        %v1360 = vpop.f32.mrb[0].mxu0
        %1361 = vdwg.mxu0
        %v1363 = vsel %vm1127, %v1324, 0
        %v1366 = vsel %vm1127, %v1329, 0
        %v1369 = vsel %vm1127, %v1334, 0
        %v1372 = vsel %vm1127, %v1339, 0
        %v1375 = vsel %vm1127, %v1344, 0
        %v1378 = vsel %vm1127, %v1349, 0
        %v1381 = vsel %vm1127, %v1354, 0
        %v1384 = vsel %vm1127, %v1359, 0
        %1386 = vmatprep.subr.mxu0 0.0
        %1387 = vmatpush1.msra.mxu0 %v1119
        %1388 = vmatprep.subr.mxu0 0.0
        %1389 = vmatpush1.msra.mxu0 %v1120
        %1390 = vmatprep.subr.mxu0 0.0
        %1391 = vmatpush1.msra.mxu0 %v1121
        %1392 = vmatprep.subr.mxu0 0.0
        %1393 = vmatpush1.msra.mxu0 %v1122
        %1394 = vmatprep.subr.mxu0 0.0
        %1395 = vmatpush1.msra.mxu0 %v1123
        %1396 = vmatprep.subr.mxu0 0.0
        %1397 = vmatpush1.msra.mxu0 %v1124
        %1398 = vmatprep.subr.mxu0 0.0
        %1399 = vmatpush1.msra.mxu0 %v1125
        %1400 = vmatprep.subr.mxu0 0.0
        %1401 = vmatpush1.msra.mxu0 %v1126
        %1402 = vmatprep.subr.mxu0 0.0
        %1403 = vmatpush1.msra.mxu0 0.0
        %1404 = vmatprep.subr.mxu0 0.0
        %1405 = vmatpush1.msra.mxu0 0.0
        %1406 = vmatprep.subr.mxu0 0.0
        %1407 = vmatpush1.msra.mxu0 0.0
        %1408 = vmatprep.subr.mxu0 0.0
        %1409 = vmatpush1.msra.mxu0 0.0
        %1410 = vmatprep.subr.mxu0 0.0
        %1411 = vmatpush1.msra.mxu0 0.0
        %1412 = vmatprep.subr.mxu0 0.0
        %1413 = vmatpush1.msra.mxu0 0.0
        %1414 = vmatprep.subr.mxu0 0.0
        %1415 = vmatpush1.msra.mxu0 0.0
        %1416 = vmatprep.subr.mxu0 0.0
        %1417 = vmatpush1.msra.mxu0 0.0
        %1418 = vmatprep.subr.mxu0 0.0
        %1419 = vmatpush1.msra.mxu0 0.0
        %1420 = vmatprep.subr.mxu0 0.0
        %1421 = vmatpush1.msra.mxu0 0.0
        %1422 = vmatprep.subr.mxu0 0.0
        %1423 = vmatpush1.msra.mxu0 0.0
        %1424 = vmatprep.subr.mxu0 0.0
        %1425 = vmatpush1.msra.mxu0 0.0
        %1426 = vmatprep.subr.mxu0 0.0
        %1427 = vmatpush1.msra.mxu0 0.0
        %1428 = vmatprep.subr.mxu0 0.0
        %1429 = vmatpush1.msra.mxu0 0.0
        %1430 = vmatprep.subr.mxu0 0.0
        %1431 = vmatpush1.msra.mxu0 0.0
        %1432 = vmatprep.subr.mxu0 0.0
        %1433 = vmatpush1.msra.mxu0 0.0
        %1434 = vmatprep.subr.mxu0 0.0
        %1435 = vmatpush1.msra.mxu0 0.0
        %1436 = vmatprep.subr.mxu0 0.0
        %1437 = vmatpush1.msra.mxu0 0.0
        %1438 = vmatprep.subr.mxu0 0.0
        %1439 = vmatpush1.msra.mxu0 0.0
        %1440 = vmatprep.subr.mxu0 0.0
        %1441 = vmatpush1.msra.mxu0 0.0
        %1442 = vmatprep.subr.mxu0 0.0
        %1443 = vmatpush1.msra.mxu0 0.0
        %1444 = vmatprep.subr.mxu0 0.0
        %1445 = vmatpush1.msra.mxu0 0.0
        %1446 = vmatprep.subr.mxu0 0.0
        %1447 = vmatpush1.msra.mxu0 0.0
        %1448 = vmatprep.subr.mxu0 0.0
        %1449 = vmatpush1.msra.mxu0 0.0
        %1450 = vmatprep.mubr.f32.mxu0 0.0
        %1451 = vmatmul.mubr.f32.gmra.mrb[0].mxu0 %v1363
        %v1452 = vpop.f32.mrb[0].mxu0
        %v1453 = vadd.f32 0.0, %v1452
        %v1454 = vpop.f32.mrb[0].mxu0
        %1455 = vmatprep.mubr.f32.mxu0 0.0
        %1456 = vmatmul.mubr.f32.gmra.mrb[0].mxu0 %v1366
        %v1457 = vpop.f32.mrb[0].mxu0
        %v1458 = vadd.f32 0.0, %v1457
        %v1459 = vpop.f32.mrb[0].mxu0
        %1460 = vmatprep.mubr.f32.mxu0 0.0
        %1461 = vmatmul.mubr.f32.gmra.mrb[0].mxu0 %v1369
        %v1462 = vpop.f32.mrb[0].mxu0
        %v1463 = vadd.f32 0.0, %v1462
        %v1464 = vpop.f32.mrb[0].mxu0
        %1465 = vmatprep.mubr.f32.mxu0 0.0
        %1466 = vmatmul.mubr.f32.gmra.mrb[0].mxu0 %v1372
        %v1467 = vpop.f32.mrb[0].mxu0
        %v1468 = vadd.f32 0.0, %v1467
        %v1469 = vpop.f32.mrb[0].mxu0
        %1470 = vmatprep.mubr.f32.mxu0 0.0
        %1471 = vmatmul.mubr.f32.gmra.mrb[0].mxu0 %v1375
        %v1472 = vpop.f32.mrb[0].mxu0
        %v1473 = vadd.f32 0.0, %v1472
        %v1474 = vpop.f32.mrb[0].mxu0
        %1475 = vmatprep.mubr.f32.mxu0 0.0
        %1476 = vmatmul.mubr.f32.gmra.mrb[0].mxu0 %v1378
        %v1477 = vpop.f32.mrb[0].mxu0
        %v1478 = vadd.f32 0.0, %v1477
        %v1479 = vpop.f32.mrb[0].mxu0
        %1480 = vmatprep.mubr.f32.mxu0 0.0
        %1481 = vmatmul.mubr.f32.gmra.mrb[0].mxu0 %v1381
        %v1482 = vpop.f32.mrb[0].mxu0
        %v1483 = vadd.f32 0.0, %v1482
        %v1484 = vpop.f32.mrb[0].mxu0
        %1485 = vmatprep.mubr.f32.mxu0 0.0
        %1486 = vmatmul.mubr.f32.gmra.mrb[0].mxu0 %v1384
        %v1487 = vpop.f32.mrb[0].mxu0
        %v1488 = vadd.f32 0.0, %v1487
        %v1489 = vpop.f32.mrb[0].mxu0
        %1490 = vdwg.mxu0
        %v1491 = vmul.f32 %v1219, %v938
        %v1492 = vmul.f32 %v1224, %v938
        %v1493 = vmul.f32 %v1229, %v938
        %v1494 = vmul.f32 %v1234, %v938
        %v1495 = vmul.f32 %v1239, %v938
        %v1496 = vmul.f32 %v1244, %v938
        %v1497 = vmul.f32 %v1249, %v938
        %v1498 = vmul.f32 %v1254, %v938
        %v1499 = vmul.f32 %v1453, %v944
        %v1500 = vmul.f32 %v1458, %v944
        %v1501 = vmul.f32 %v1463, %v944
        %v1502 = vmul.f32 %v1468, %v944
        %v1503 = vmul.f32 %v1473, %v944
        %v1504 = vmul.f32 %v1478, %v944
        %v1505 = vmul.f32 %v1483, %v944
        %v1506 = vmul.f32 %v1488, %v944
        %v1507 = vadd.f32 %v1491, %v1499
        %v1508 = vadd.f32 %v1492, %v1500
        %v1509 = vadd.f32 %v1493, %v1501
        %v1510 = vadd.f32 %v1494, %v1502
        %v1511 = vadd.f32 %v1495, %v1503
        %v1512 = vadd.f32 %v1496, %v1504
        %v1513 = vadd.f32 %v1497, %v1505
        %v1514 = vadd.f32 %v1498, %v1506
        %v1515 = vadd.f32 %v1507, %v954
        %v1516 = vadd.f32 %v1508, %v954
        %v1517 = vadd.f32 %v1509, %v954
        %v1518 = vadd.f32 %v1510, %v954
        %v1519 = vadd.f32 %v1511, %v954
        %v1520 = vadd.f32 %v1512, %v954
        %v1521 = vadd.f32 %v1513, %v954
        %v1522 = vadd.f32 %v1514, %v954
        %v1523 = vmul.f32 %v1219, %v960
        %v1524 = vmul.f32 %v1224, %v960
        %v1525 = vmul.f32 %v1229, %v960
        %v1526 = vmul.f32 %v1234, %v960
        %v1527 = vmul.f32 %v1239, %v960
        %v1528 = vmul.f32 %v1244, %v960
        %v1529 = vmul.f32 %v1249, %v960
        %v1530 = vmul.f32 %v1254, %v960
        %v1531 = vmul.f32 %v1453, %v966
        %v1532 = vmul.f32 %v1458, %v966
        %v1533 = vmul.f32 %v1463, %v966
        %v1534 = vmul.f32 %v1468, %v966
        %v1535 = vmul.f32 %v1473, %v966
        %v1536 = vmul.f32 %v1478, %v966
        %v1537 = vmul.f32 %v1483, %v966
        %v1538 = vmul.f32 %v1488, %v966
        %v1539 = vadd.f32 %v1523, %v1531
        %v1540 = vadd.f32 %v1524, %v1532
        %v1541 = vadd.f32 %v1525, %v1533
        %v1542 = vadd.f32 %v1526, %v1534
        %v1543 = vadd.f32 %v1527, %v1535
        %v1544 = vadd.f32 %v1528, %v1536
        %v1545 = vadd.f32 %v1529, %v1537
        %v1546 = vadd.f32 %v1530, %v1538
        %v1547 = vadd.f32 %v1539, %v976
        %v1548 = vadd.f32 %v1540, %v976
        %v1549 = vadd.f32 %v1541, %v976
        %v1550 = vadd.f32 %v1542, %v976
        %v1551 = vadd.f32 %v1543, %v976
        %v1552 = vadd.f32 %v1544, %v976
        %v1553 = vadd.f32 %v1545, %v976
        %v1554 = vadd.f32 %v1546, %v976
        %v1555 = vld [vmem:[%s9] sm:$0xff]
        %v1556 = vld [vmem:[%s9 + $0x8] sm:$0xff]
        %v1557 = vld [vmem:[%s9 + $0x10] sm:$0xff]
        %v1558 = vld [vmem:[%s9 + $0x18] sm:$0xff]
        %v1559 = vld [vmem:[%s9 + $0x20] sm:$0xff]
        %v1560 = vld [vmem:[%s9 + $0x28] sm:$0xff]
        %v1561 = vld [vmem:[%s9 + $0x30] sm:$0xff]
        %v1562 = vld [vmem:[%s9 + $0x38] sm:$0xff]
        %v1563 = vld [vmem:[%s9 + $0x40] sm:$0xff]
        %v1564 = vld [vmem:[%s9 + $0x48] sm:$0xff]
        %v1565 = vld [vmem:[%s9 + $0x50] sm:$0xff]
        %v1566 = vld [vmem:[%s9 + $0x58] sm:$0xff]
        %v1567 = vld [vmem:[%s9 + $0x60] sm:$0xff]
        %v1568 = vld [vmem:[%s9 + $0x68] sm:$0xff]
        %v1569 = vld [vmem:[%s9 + $0x70] sm:$0xff]
        %v1570 = vld [vmem:[%s9 + $0x78] sm:$0xff]
        %v1572 = vsel %vm1127, %v1555, 0
        %v1575 = vsel %vm1127, %v1556, 0
        %v1578 = vsel %vm1127, %v1557, 0
        %v1581 = vsel %vm1127, %v1558, 0
        %v1584 = vsel %vm1127, %v1559, 0
        %v1587 = vsel %vm1127, %v1560, 0
        %v1590 = vsel %vm1127, %v1561, 0
        %v1593 = vsel %vm1127, %v1562, 0
        %v1596 = vsel %vm1127, %v1563, 0
        %v1599 = vsel %vm1127, %v1564, 0
        %v1602 = vsel %vm1127, %v1565, 0
        %v1605 = vsel %vm1127, %v1566, 0
        %v1608 = vsel %vm1127, %v1567, 0
        %v1611 = vsel %vm1127, %v1568, 0
        %v1614 = vsel %vm1127, %v1569, 0
        %v1617 = vsel %vm1127, %v1570, 0
        %1619 = vmatprep.subr.mxu0 0.0
        %1620 = vmatpush1.msra.mxu0 %v1515
        %1621 = vmatprep.subr.mxu0 0.0
        %1622 = vmatpush1.msra.mxu0 %v1516
        %1623 = vmatprep.subr.mxu0 0.0
        %1624 = vmatpush1.msra.mxu0 %v1517
        %1625 = vmatprep.subr.mxu0 0.0
        %1626 = vmatpush1.msra.mxu0 %v1518
        %1627 = vmatprep.subr.mxu0 0.0
        %1628 = vmatpush1.msra.mxu0 %v1519
        %1629 = vmatprep.subr.mxu0 0.0
        %1630 = vmatpush1.msra.mxu0 %v1520
        %1631 = vmatprep.subr.mxu0 0.0
        %1632 = vmatpush1.msra.mxu0 %v1521
        %1633 = vmatprep.subr.mxu0 0.0
        %1634 = vmatpush1.msra.mxu0 %v1522
        %1635 = vmatprep.subr.mxu0 0.0
        %1636 = vmatpush1.msra.mxu0 0.0
        %1637 = vmatprep.subr.mxu0 0.0
        %1638 = vmatpush1.msra.mxu0 0.0
        %1639 = vmatprep.subr.mxu0 0.0
        %1640 = vmatpush1.msra.mxu0 0.0
        %1641 = vmatprep.subr.mxu0 0.0
        %1642 = vmatpush1.msra.mxu0 0.0
        %1643 = vmatprep.subr.mxu0 0.0
        %1644 = vmatpush1.msra.mxu0 0.0
        %1645 = vmatprep.subr.mxu0 0.0
        %1646 = vmatpush1.msra.mxu0 0.0
        %1647 = vmatprep.subr.mxu0 0.0
        %1648 = vmatpush1.msra.mxu0 0.0
        %1649 = vmatprep.subr.mxu0 0.0
        %1650 = vmatpush1.msra.mxu0 0.0
        %1651 = vmatprep.subr.mxu0 0.0
        %1652 = vmatpush1.msra.mxu0 0.0
        %1653 = vmatprep.subr.mxu0 0.0
        %1654 = vmatpush1.msra.mxu0 0.0
        %1655 = vmatprep.subr.mxu0 0.0
        %1656 = vmatpush1.msra.mxu0 0.0
        %1657 = vmatprep.subr.mxu0 0.0
        %1658 = vmatpush1.msra.mxu0 0.0
        %1659 = vmatprep.subr.mxu0 0.0
        %1660 = vmatpush1.msra.mxu0 0.0
        %1661 = vmatprep.subr.mxu0 0.0
        %1662 = vmatpush1.msra.mxu0 0.0
        %1663 = vmatprep.subr.mxu0 0.0
        %1664 = vmatpush1.msra.mxu0 0.0
        %1665 = vmatprep.subr.mxu0 0.0
        %1666 = vmatpush1.msra.mxu0 0.0
        %1667 = vmatprep.subr.mxu0 0.0
        %1668 = vmatpush1.msra.mxu0 0.0
        %1669 = vmatprep.subr.mxu0 0.0
        %1670 = vmatpush1.msra.mxu0 0.0
        %1671 = vmatprep.subr.mxu0 0.0
        %1672 = vmatpush1.msra.mxu0 0.0
        %1673 = vmatprep.subr.mxu0 0.0
        %1674 = vmatpush1.msra.mxu0 0.0
        %1675 = vmatprep.subr.mxu0 0.0
        %1676 = vmatpush1.msra.mxu0 0.0
        %1677 = vmatprep.subr.mxu0 0.0
        %1678 = vmatpush1.msra.mxu0 0.0
        %1679 = vmatprep.subr.mxu0 0.0
        %1680 = vmatpush1.msra.mxu0 0.0
        %1681 = vmatprep.subr.mxu0 0.0
        %1682 = vmatpush1.msra.mxu0 0.0
        %1683 = vmatprep.mubr.f32.mxu0 0.0
        %1684 = vmatmul.mubr.f32.gmra.mrb[0].mxu0 %v1572
        %v1685 = vpop.f32.mrb[0].mxu0
        %v1686 = vadd.f32 0.0, %v1685
        %v1687 = vpop.f32.mrb[0].mxu0
        %1688 = vmatprep.mubr.f32.mxu0 0.0
        %1689 = vmatmul.mubr.f32.gmra.mrb[0].mxu0 %v1575
        %v1690 = vpop.f32.mrb[0].mxu0
        %v1691 = vadd.f32 0.0, %v1690
        %v1692 = vpop.f32.mrb[0].mxu0
        %1693 = vmatprep.mubr.f32.mxu0 0.0
        %1694 = vmatmul.mubr.f32.gmra.mrb[0].mxu0 %v1578
        %v1695 = vpop.f32.mrb[0].mxu0
        %v1696 = vadd.f32 0.0, %v1695
        %v1697 = vpop.f32.mrb[0].mxu0
        %1698 = vmatprep.mubr.f32.mxu0 0.0
        %1699 = vmatmul.mubr.f32.gmra.mrb[0].mxu0 %v1581
        %v1700 = vpop.f32.mrb[0].mxu0
        %v1701 = vadd.f32 0.0, %v1700
        %v1702 = vpop.f32.mrb[0].mxu0
        %1703 = vmatprep.mubr.f32.mxu0 0.0
        %1704 = vmatmul.mubr.f32.gmra.mrb[0].mxu0 %v1584
        %v1705 = vpop.f32.mrb[0].mxu0
        %v1706 = vadd.f32 0.0, %v1705
        %v1707 = vpop.f32.mrb[0].mxu0
        %1708 = vmatprep.mubr.f32.mxu0 0.0
        %1709 = vmatmul.mubr.f32.gmra.mrb[0].mxu0 %v1587
        %v1710 = vpop.f32.mrb[0].mxu0
        %v1711 = vadd.f32 0.0, %v1710
        %v1712 = vpop.f32.mrb[0].mxu0
        %1713 = vmatprep.mubr.f32.mxu0 0.0
        %1714 = vmatmul.mubr.f32.gmra.mrb[0].mxu0 %v1590
        %v1715 = vpop.f32.mrb[0].mxu0
        %v1716 = vadd.f32 0.0, %v1715
        %v1717 = vpop.f32.mrb[0].mxu0
        %1718 = vmatprep.mubr.f32.mxu0 0.0
        %1719 = vmatmul.mubr.f32.gmra.mrb[0].mxu0 %v1593
        %v1720 = vpop.f32.mrb[0].mxu0
        %v1721 = vadd.f32 0.0, %v1720
        %v1722 = vpop.f32.mrb[0].mxu0
        %1723 = vmatprep.mubr.f32.mxu0 0.0
        %1724 = vmatmul.mubr.f32.gmra.mrb[0].mxu0 %v1596
        %v1725 = vpop.f32.mrb[0].mxu0
        %v1726 = vadd.f32 0.0, %v1725
        %v1727 = vpop.f32.mrb[0].mxu0
        %1728 = vmatprep.mubr.f32.mxu0 0.0
        %1729 = vmatmul.mubr.f32.gmra.mrb[0].mxu0 %v1599
        %v1730 = vpop.f32.mrb[0].mxu0
        %v1731 = vadd.f32 0.0, %v1730
        %v1732 = vpop.f32.mrb[0].mxu0
        %1733 = vmatprep.mubr.f32.mxu0 0.0
        %1734 = vmatmul.mubr.f32.gmra.mrb[0].mxu0 %v1602
        %v1735 = vpop.f32.mrb[0].mxu0
        %v1736 = vadd.f32 0.0, %v1735
        %v1737 = vpop.f32.mrb[0].mxu0
        %1738 = vmatprep.mubr.f32.mxu0 0.0
        %1739 = vmatmul.mubr.f32.gmra.mrb[0].mxu0 %v1605
        %v1740 = vpop.f32.mrb[0].mxu0
        %v1741 = vadd.f32 0.0, %v1740
        %v1742 = vpop.f32.mrb[0].mxu0
        %1743 = vmatprep.mubr.f32.mxu0 0.0
        %1744 = vmatmul.mubr.f32.gmra.mrb[0].mxu0 %v1608
        %v1745 = vpop.f32.mrb[0].mxu0
        %v1746 = vadd.f32 0.0, %v1745
        %v1747 = vpop.f32.mrb[0].mxu0
        %1748 = vmatprep.mubr.f32.mxu0 0.0
        %1749 = vmatmul.mubr.f32.gmra.mrb[0].mxu0 %v1611
        %v1750 = vpop.f32.mrb[0].mxu0
        %v1751 = vadd.f32 0.0, %v1750
        %v1752 = vpop.f32.mrb[0].mxu0
        %1753 = vmatprep.mubr.f32.mxu0 0.0
        %1754 = vmatmul.mubr.f32.gmra.mrb[0].mxu0 %v1614
        %v1755 = vpop.f32.mrb[0].mxu0
        %v1756 = vadd.f32 0.0, %v1755
        %v1757 = vpop.f32.mrb[0].mxu0
        %1758 = vmatprep.mubr.f32.mxu0 0.0
        %1759 = vmatmul.mubr.f32.gmra.mrb[0].mxu0 %v1617
        %v1760 = vpop.f32.mrb[0].mxu0
        %v1761 = vadd.f32 0.0, %v1760
        %v1762 = vpop.f32.mrb[0].mxu0
        %1763 = vdwg.mxu0
        %v1764 = vld [vmem:[%s10] sm:$0xff]
        %v1765 = vld [vmem:[%s10 + $0x8] sm:$0xff]
        %v1766 = vld [vmem:[%s10 + $0x10] sm:$0xff]
        %v1767 = vld [vmem:[%s10 + $0x18] sm:$0xff]
        %v1768 = vld [vmem:[%s10 + $0x20] sm:$0xff]
        %v1769 = vld [vmem:[%s10 + $0x28] sm:$0xff]
        %v1770 = vld [vmem:[%s10 + $0x30] sm:$0xff]
        %v1771 = vld [vmem:[%s10 + $0x38] sm:$0xff]
        %v1772 = vld [vmem:[%s10 + $0x40] sm:$0xff]
        %v1773 = vld [vmem:[%s10 + $0x48] sm:$0xff]
        %v1774 = vld [vmem:[%s10 + $0x50] sm:$0xff]
        %v1775 = vld [vmem:[%s10 + $0x58] sm:$0xff]
        %v1776 = vld [vmem:[%s10 + $0x60] sm:$0xff]
        %v1777 = vld [vmem:[%s10 + $0x68] sm:$0xff]
        %v1778 = vld [vmem:[%s10 + $0x70] sm:$0xff]
        %v1779 = vld [vmem:[%s10 + $0x78] sm:$0xff]
        %v1780 = vld [vmem:[%s10 + $0x80] sm:$0xff]
        %v1781 = vld [vmem:[%s10 + $0x88] sm:$0xff]
        %v1782 = vld [vmem:[%s10 + $0x90] sm:$0xff]
        %v1783 = vld [vmem:[%s10 + $0x98] sm:$0xff]
        %v1784 = vld [vmem:[%s10 + $0xa0] sm:$0xff]
        %v1785 = vld [vmem:[%s10 + $0xa8] sm:$0xff]
        %v1786 = vld [vmem:[%s10 + $0xb0] sm:$0xff]
        %v1787 = vld [vmem:[%s10 + $0xb8] sm:$0xff]
        %v1788 = vld [vmem:[%s10 + $0xc0] sm:$0xff]
        %v1789 = vld [vmem:[%s10 + $0xc8] sm:$0xff]
        %v1790 = vld [vmem:[%s10 + $0xd0] sm:$0xff]
        %v1791 = vld [vmem:[%s10 + $0xd8] sm:$0xff]
        %v1792 = vld [vmem:[%s10 + $0xe0] sm:$0xff]
        %v1793 = vld [vmem:[%s10 + $0xe8] sm:$0xff]
        %v1794 = vld [vmem:[%s10 + $0xf0] sm:$0xff]
        %v1795 = vld [vmem:[%s10 + $0xf8] sm:$0xff]
        %1796 = vmatprep.subr.mxu0 %v1765
        %1797 = vmatpush1.msra.mxu0 %v1764
        %1798 = vmatprep.subr.mxu0 %v1767
        %1799 = vmatpush1.msra.mxu0 %v1766
        %1800 = vmatprep.subr.mxu0 %v1769
        %1801 = vmatpush1.msra.mxu0 %v1768
        %1802 = vmatprep.subr.mxu0 %v1771
        %1803 = vmatpush1.msra.mxu0 %v1770
        %1804 = vmatprep.subr.mxu0 %v1773
        %1805 = vmatpush1.msra.mxu0 %v1772
        %1806 = vmatprep.subr.mxu0 %v1775
        %1807 = vmatpush1.msra.mxu0 %v1774
        %1808 = vmatprep.subr.mxu0 %v1777
        %1809 = vmatpush1.msra.mxu0 %v1776
        %1810 = vmatprep.subr.mxu0 %v1779
        %1811 = vmatpush1.msra.mxu0 %v1778
        %1812 = vmatprep.subr.mxu0 %v1781
        %1813 = vmatpush1.msra.mxu0 %v1780
        %1814 = vmatprep.subr.mxu0 %v1783
        %1815 = vmatpush1.msra.mxu0 %v1782
        %1816 = vmatprep.subr.mxu0 %v1785
        %1817 = vmatpush1.msra.mxu0 %v1784
        %1818 = vmatprep.subr.mxu0 %v1787
        %1819 = vmatpush1.msra.mxu0 %v1786
        %1820 = vmatprep.subr.mxu0 %v1789
        %1821 = vmatpush1.msra.mxu0 %v1788
        %1822 = vmatprep.subr.mxu0 %v1791
        %1823 = vmatpush1.msra.mxu0 %v1790
        %1824 = vmatprep.subr.mxu0 %v1793
        %1825 = vmatpush1.msra.mxu0 %v1792
        %1826 = vmatprep.subr.mxu0 %v1795
        %1827 = vmatpush1.msra.mxu0 %v1794
        %1828 = vmatprep.subr.mxu0 0.0
        %1829 = vmatpush1.msra.mxu0 0.0
        %1830 = vmatprep.subr.mxu0 0.0
        %1831 = vmatpush1.msra.mxu0 0.0
        %1832 = vmatprep.subr.mxu0 0.0
        %1833 = vmatpush1.msra.mxu0 0.0
        %1834 = vmatprep.subr.mxu0 0.0
        %1835 = vmatpush1.msra.mxu0 0.0
        %1836 = vmatprep.subr.mxu0 0.0
        %1837 = vmatpush1.msra.mxu0 0.0
        %1838 = vmatprep.subr.mxu0 0.0
        %1839 = vmatpush1.msra.mxu0 0.0
        %1840 = vmatprep.subr.mxu0 0.0
        %1841 = vmatpush1.msra.mxu0 0.0
        %1842 = vmatprep.subr.mxu0 0.0
        %1843 = vmatpush1.msra.mxu0 0.0
        %1844 = vmatprep.subr.mxu0 0.0
        %1845 = vmatpush1.msra.mxu0 0.0
        %1846 = vmatprep.subr.mxu0 0.0
        %1847 = vmatpush1.msra.mxu0 0.0
        %1848 = vmatprep.subr.mxu0 0.0
        %1849 = vmatpush1.msra.mxu0 0.0
        %1850 = vmatprep.subr.mxu0 0.0
        %1851 = vmatpush1.msra.mxu0 0.0
        %1852 = vmatprep.subr.mxu0 0.0
        %1853 = vmatpush1.msra.mxu0 0.0
        %1854 = vmatprep.subr.mxu0 0.0
        %1855 = vmatpush1.msra.mxu0 0.0
        %1856 = vmatprep.subr.mxu0 0.0
        %1857 = vmatpush1.msra.mxu0 0.0
        %1858 = vmatprep.subr.mxu0 0.0
        %1859 = vmatpush1.msra.mxu0 0.0
        %1860 = vmatprep.mubr.f32.mxu0 0.0
        %1861 = vmatmul.mubr.f32.gmra.mrb[0].mxu0 %v1686
        %v1862 = vpop.f32.mrb[0].mxu0
        %v1863 = vadd.f32 0.0, %v1862
        %v1864 = vpop.f32.mrb[0].mxu0
        %v1865 = vadd.f32 0.0, %v1864
        %1866 = vmatprep.mubr.f32.mxu0 0.0
        %1867 = vmatmul.mubr.f32.gmra.mrb[0].mxu0 %v1691
        %v1868 = vpop.f32.mrb[0].mxu0
        %v1869 = vadd.f32 0.0, %v1868
        %v1870 = vpop.f32.mrb[0].mxu0
        %v1871 = vadd.f32 0.0, %v1870
        %1872 = vmatprep.mubr.f32.mxu0 0.0
        %1873 = vmatmul.mubr.f32.gmra.mrb[0].mxu0 %v1696
        %v1874 = vpop.f32.mrb[0].mxu0
        %v1875 = vadd.f32 0.0, %v1874
        %v1876 = vpop.f32.mrb[0].mxu0
        %v1877 = vadd.f32 0.0, %v1876
        %1878 = vmatprep.mubr.f32.mxu0 0.0
        %1879 = vmatmul.mubr.f32.gmra.mrb[0].mxu0 %v1701
        %v1880 = vpop.f32.mrb[0].mxu0
        %v1881 = vadd.f32 0.0, %v1880
        %v1882 = vpop.f32.mrb[0].mxu0
        %v1883 = vadd.f32 0.0, %v1882
        %1884 = vmatprep.mubr.f32.mxu0 0.0
        %1885 = vmatmul.mubr.f32.gmra.mrb[0].mxu0 %v1706
        %v1886 = vpop.f32.mrb[0].mxu0
        %v1887 = vadd.f32 0.0, %v1886
        %v1888 = vpop.f32.mrb[0].mxu0
        %v1889 = vadd.f32 0.0, %v1888
        %1890 = vmatprep.mubr.f32.mxu0 0.0
        %1891 = vmatmul.mubr.f32.gmra.mrb[0].mxu0 %v1711
        %v1892 = vpop.f32.mrb[0].mxu0
        %v1893 = vadd.f32 0.0, %v1892
        %v1894 = vpop.f32.mrb[0].mxu0
        %v1895 = vadd.f32 0.0, %v1894
        %1896 = vmatprep.mubr.f32.mxu0 0.0
        %1897 = vmatmul.mubr.f32.gmra.mrb[0].mxu0 %v1716
        %v1898 = vpop.f32.mrb[0].mxu0
        %v1899 = vadd.f32 0.0, %v1898
        %v1900 = vpop.f32.mrb[0].mxu0
        %v1901 = vadd.f32 0.0, %v1900
        %1902 = vmatprep.mubr.f32.mxu0 0.0
        %1903 = vmatmul.mubr.f32.gmra.mrb[0].mxu0 %v1721
        %v1904 = vpop.f32.mrb[0].mxu0
        %v1905 = vadd.f32 0.0, %v1904
        %v1906 = vpop.f32.mrb[0].mxu0
        %v1907 = vadd.f32 0.0, %v1906
        %1908 = vmatprep.mubr.f32.mxu0 0.0
        %1909 = vmatmul.mubr.f32.gmra.mrb[0].mxu0 %v1726
        %v1910 = vpop.f32.mrb[0].mxu0
        %v1911 = vadd.f32 0.0, %v1910
        %v1912 = vpop.f32.mrb[0].mxu0
        %v1913 = vadd.f32 0.0, %v1912
        %1914 = vmatprep.mubr.f32.mxu0 0.0
        %1915 = vmatmul.mubr.f32.gmra.mrb[0].mxu0 %v1731
        %v1916 = vpop.f32.mrb[0].mxu0
        %v1917 = vadd.f32 0.0, %v1916
        %v1918 = vpop.f32.mrb[0].mxu0
        %v1919 = vadd.f32 0.0, %v1918
        %1920 = vmatprep.mubr.f32.mxu0 0.0
        %1921 = vmatmul.mubr.f32.gmra.mrb[0].mxu0 %v1736
        %v1922 = vpop.f32.mrb[0].mxu0
        %v1923 = vadd.f32 0.0, %v1922
        %v1924 = vpop.f32.mrb[0].mxu0
        %v1925 = vadd.f32 0.0, %v1924
        %1926 = vmatprep.mubr.f32.mxu0 0.0
        %1927 = vmatmul.mubr.f32.gmra.mrb[0].mxu0 %v1741
        %v1928 = vpop.f32.mrb[0].mxu0
        %v1929 = vadd.f32 0.0, %v1928
        %v1930 = vpop.f32.mrb[0].mxu0
        %v1931 = vadd.f32 0.0, %v1930
        %1932 = vmatprep.mubr.f32.mxu0 0.0
        %1933 = vmatmul.mubr.f32.gmra.mrb[0].mxu0 %v1746
        %v1934 = vpop.f32.mrb[0].mxu0
        %v1935 = vadd.f32 0.0, %v1934
        %v1936 = vpop.f32.mrb[0].mxu0
        %v1937 = vadd.f32 0.0, %v1936
        %1938 = vmatprep.mubr.f32.mxu0 0.0
        %1939 = vmatmul.mubr.f32.gmra.mrb[0].mxu0 %v1751
        %v1940 = vpop.f32.mrb[0].mxu0
        %v1941 = vadd.f32 0.0, %v1940
        %v1942 = vpop.f32.mrb[0].mxu0
        %v1943 = vadd.f32 0.0, %v1942
        %1944 = vmatprep.mubr.f32.mxu0 0.0
        %1945 = vmatmul.mubr.f32.gmra.mrb[0].mxu0 %v1756
        %v1946 = vpop.f32.mrb[0].mxu0
        %v1947 = vadd.f32 0.0, %v1946
        %v1948 = vpop.f32.mrb[0].mxu0
        %v1949 = vadd.f32 0.0, %v1948
        %1950 = vmatprep.mubr.f32.mxu0 0.0
        %1951 = vmatmul.mubr.f32.gmra.mrb[0].mxu0 %v1761
        %v1952 = vpop.f32.mrb[0].mxu0
        %v1953 = vadd.f32 0.0, %v1952
        %v1954 = vpop.f32.mrb[0].mxu0
        %v1955 = vadd.f32 0.0, %v1954
        %1956 = vdwg.mxu0
        %1957 = vmatprep.subr.mxu0 0.0
        %1958 = vmatpush1.msra.mxu0 %v1547
        %1959 = vmatprep.subr.mxu0 0.0
        %1960 = vmatpush1.msra.mxu0 %v1548
        %1961 = vmatprep.subr.mxu0 0.0
        %1962 = vmatpush1.msra.mxu0 %v1549
        %1963 = vmatprep.subr.mxu0 0.0
        %1964 = vmatpush1.msra.mxu0 %v1550
        %1965 = vmatprep.subr.mxu0 0.0
        %1966 = vmatpush1.msra.mxu0 %v1551
        %1967 = vmatprep.subr.mxu0 0.0
        %1968 = vmatpush1.msra.mxu0 %v1552
        %1969 = vmatprep.subr.mxu0 0.0
        %1970 = vmatpush1.msra.mxu0 %v1553
        %1971 = vmatprep.subr.mxu0 0.0
        %1972 = vmatpush1.msra.mxu0 %v1554
        %1973 = vmatprep.subr.mxu0 0.0
        %1974 = vmatpush1.msra.mxu0 0.0
        %1975 = vmatprep.subr.mxu0 0.0
        %1976 = vmatpush1.msra.mxu0 0.0
        %1977 = vmatprep.subr.mxu0 0.0
        %1978 = vmatpush1.msra.mxu0 0.0
        %1979 = vmatprep.subr.mxu0 0.0
        %1980 = vmatpush1.msra.mxu0 0.0
        %1981 = vmatprep.subr.mxu0 0.0
        %1982 = vmatpush1.msra.mxu0 0.0
        %1983 = vmatprep.subr.mxu0 0.0
        %1984 = vmatpush1.msra.mxu0 0.0
        %1985 = vmatprep.subr.mxu0 0.0
        %1986 = vmatpush1.msra.mxu0 0.0
        %1987 = vmatprep.subr.mxu0 0.0
        %1988 = vmatpush1.msra.mxu0 0.0
        %1989 = vmatprep.subr.mxu0 0.0
        %1990 = vmatpush1.msra.mxu0 0.0
        %1991 = vmatprep.subr.mxu0 0.0
        %1992 = vmatpush1.msra.mxu0 0.0
        %1993 = vmatprep.subr.mxu0 0.0
        %1994 = vmatpush1.msra.mxu0 0.0
        %1995 = vmatprep.subr.mxu0 0.0
        %1996 = vmatpush1.msra.mxu0 0.0
        %1997 = vmatprep.subr.mxu0 0.0
        %1998 = vmatpush1.msra.mxu0 0.0
        %1999 = vmatprep.subr.mxu0 0.0
        %2000 = vmatpush1.msra.mxu0 0.0
        %2001 = vmatprep.subr.mxu0 0.0
        %2002 = vmatpush1.msra.mxu0 0.0
        %2003 = vmatprep.subr.mxu0 0.0
        %2004 = vmatpush1.msra.mxu0 0.0
        %2005 = vmatprep.subr.mxu0 0.0
        %2006 = vmatpush1.msra.mxu0 0.0
        %2007 = vmatprep.subr.mxu0 0.0
        %2008 = vmatpush1.msra.mxu0 0.0
        %2009 = vmatprep.subr.mxu0 0.0
        %2010 = vmatpush1.msra.mxu0 0.0
        %2011 = vmatprep.subr.mxu0 0.0
        %2012 = vmatpush1.msra.mxu0 0.0
        %2013 = vmatprep.subr.mxu0 0.0
        %2014 = vmatpush1.msra.mxu0 0.0
        %2015 = vmatprep.subr.mxu0 0.0
        %2016 = vmatpush1.msra.mxu0 0.0
        %2017 = vmatprep.subr.mxu0 0.0
        %2018 = vmatpush1.msra.mxu0 0.0
        %2019 = vmatprep.subr.mxu0 0.0
        %2020 = vmatpush1.msra.mxu0 0.0
        %2021 = vmatprep.mubr.f32.mxu0 0.0
        %2022 = vmatmul.mubr.f32.gmra.mrb[0].mxu0 %v1572
        %v2023 = vpop.f32.mrb[0].mxu0
        %v2024 = vadd.f32 0.0, %v2023
        %v2025 = vpop.f32.mrb[0].mxu0
        %2026 = vmatprep.mubr.f32.mxu0 0.0
        %2027 = vmatmul.mubr.f32.gmra.mrb[0].mxu0 %v1575
        %v2028 = vpop.f32.mrb[0].mxu0
        %v2029 = vadd.f32 0.0, %v2028
        %v2030 = vpop.f32.mrb[0].mxu0
        %2031 = vmatprep.mubr.f32.mxu0 0.0
        %2032 = vmatmul.mubr.f32.gmra.mrb[0].mxu0 %v1578
        %v2033 = vpop.f32.mrb[0].mxu0
        %v2034 = vadd.f32 0.0, %v2033
        %v2035 = vpop.f32.mrb[0].mxu0
        %2036 = vmatprep.mubr.f32.mxu0 0.0
        %2037 = vmatmul.mubr.f32.gmra.mrb[0].mxu0 %v1581
        %v2038 = vpop.f32.mrb[0].mxu0
        %v2039 = vadd.f32 0.0, %v2038
        %v2040 = vpop.f32.mrb[0].mxu0
        %2041 = vmatprep.mubr.f32.mxu0 0.0
        %2042 = vmatmul.mubr.f32.gmra.mrb[0].mxu0 %v1584
        %v2043 = vpop.f32.mrb[0].mxu0
        %v2044 = vadd.f32 0.0, %v2043
        %v2045 = vpop.f32.mrb[0].mxu0
        %2046 = vmatprep.mubr.f32.mxu0 0.0
        %2047 = vmatmul.mubr.f32.gmra.mrb[0].mxu0 %v1587
        %v2048 = vpop.f32.mrb[0].mxu0
        %v2049 = vadd.f32 0.0, %v2048
        %v2050 = vpop.f32.mrb[0].mxu0
        %2051 = vmatprep.mubr.f32.mxu0 0.0
        %2052 = vmatmul.mubr.f32.gmra.mrb[0].mxu0 %v1590
        %v2053 = vpop.f32.mrb[0].mxu0
        %v2054 = vadd.f32 0.0, %v2053
        %v2055 = vpop.f32.mrb[0].mxu0
        %2056 = vmatprep.mubr.f32.mxu0 0.0
        %2057 = vmatmul.mubr.f32.gmra.mrb[0].mxu0 %v1593
        %v2058 = vpop.f32.mrb[0].mxu0
        %v2059 = vadd.f32 0.0, %v2058
        %v2060 = vpop.f32.mrb[0].mxu0
        %2061 = vmatprep.mubr.f32.mxu0 0.0
        %2062 = vmatmul.mubr.f32.gmra.mrb[0].mxu0 %v1596
        %v2063 = vpop.f32.mrb[0].mxu0
        %v2064 = vadd.f32 0.0, %v2063
        %v2065 = vpop.f32.mrb[0].mxu0
        %2066 = vmatprep.mubr.f32.mxu0 0.0
        %2067 = vmatmul.mubr.f32.gmra.mrb[0].mxu0 %v1599
        %v2068 = vpop.f32.mrb[0].mxu0
        %v2069 = vadd.f32 0.0, %v2068
        %v2070 = vpop.f32.mrb[0].mxu0
        %2071 = vmatprep.mubr.f32.mxu0 0.0
        %2072 = vmatmul.mubr.f32.gmra.mrb[0].mxu0 %v1602
        %v2073 = vpop.f32.mrb[0].mxu0
        %v2074 = vadd.f32 0.0, %v2073
        %v2075 = vpop.f32.mrb[0].mxu0
        %2076 = vmatprep.mubr.f32.mxu0 0.0
        %2077 = vmatmul.mubr.f32.gmra.mrb[0].mxu0 %v1605
        %v2078 = vpop.f32.mrb[0].mxu0
        %v2079 = vadd.f32 0.0, %v2078
        %v2080 = vpop.f32.mrb[0].mxu0
        %2081 = vmatprep.mubr.f32.mxu0 0.0
        %2082 = vmatmul.mubr.f32.gmra.mrb[0].mxu0 %v1608
        %v2083 = vpop.f32.mrb[0].mxu0
        %v2084 = vadd.f32 0.0, %v2083
        %v2085 = vpop.f32.mrb[0].mxu0
        %2086 = vmatprep.mubr.f32.mxu0 0.0
        %2087 = vmatmul.mubr.f32.gmra.mrb[0].mxu0 %v1611
        %v2088 = vpop.f32.mrb[0].mxu0
        %v2089 = vadd.f32 0.0, %v2088
        %v2090 = vpop.f32.mrb[0].mxu0
        %2091 = vmatprep.mubr.f32.mxu0 0.0
        %2092 = vmatmul.mubr.f32.gmra.mrb[0].mxu0 %v1614
        %v2093 = vpop.f32.mrb[0].mxu0
        %v2094 = vadd.f32 0.0, %v2093
        %v2095 = vpop.f32.mrb[0].mxu0
        %2096 = vmatprep.mubr.f32.mxu0 0.0
        %2097 = vmatmul.mubr.f32.gmra.mrb[0].mxu0 %v1617
        %v2098 = vpop.f32.mrb[0].mxu0
        %v2099 = vadd.f32 0.0, %v2098
        %v2100 = vpop.f32.mrb[0].mxu0
        %2101 = vdwg.mxu0
        %2102 = vmatprep.subr.mxu0 %v1765
        %2103 = vmatpush1.msra.mxu0 %v1764
        %2104 = vmatprep.subr.mxu0 %v1767
        %2105 = vmatpush1.msra.mxu0 %v1766
        %2106 = vmatprep.subr.mxu0 %v1769
        %2107 = vmatpush1.msra.mxu0 %v1768
        %2108 = vmatprep.subr.mxu0 %v1771
        %2109 = vmatpush1.msra.mxu0 %v1770
        %2110 = vmatprep.subr.mxu0 %v1773
        %2111 = vmatpush1.msra.mxu0 %v1772
        %2112 = vmatprep.subr.mxu0 %v1775
        %2113 = vmatpush1.msra.mxu0 %v1774
        %2114 = vmatprep.subr.mxu0 %v1777
        %2115 = vmatpush1.msra.mxu0 %v1776
        %2116 = vmatprep.subr.mxu0 %v1779
        %2117 = vmatpush1.msra.mxu0 %v1778
        %2118 = vmatprep.subr.mxu0 %v1781
        %2119 = vmatpush1.msra.mxu0 %v1780
        %2120 = vmatprep.subr.mxu0 %v1783
        %2121 = vmatpush1.msra.mxu0 %v1782
        %2122 = vmatprep.subr.mxu0 %v1785
        %2123 = vmatpush1.msra.mxu0 %v1784
        %2124 = vmatprep.subr.mxu0 %v1787
        %2125 = vmatpush1.msra.mxu0 %v1786
        %2126 = vmatprep.subr.mxu0 %v1789
        %2127 = vmatpush1.msra.mxu0 %v1788
        %2128 = vmatprep.subr.mxu0 %v1791
        %2129 = vmatpush1.msra.mxu0 %v1790
        %2130 = vmatprep.subr.mxu0 %v1793
        %2131 = vmatpush1.msra.mxu0 %v1792
        %2132 = vmatprep.subr.mxu0 %v1795
        %2133 = vmatpush1.msra.mxu0 %v1794
        %2134 = vmatprep.subr.mxu0 0.0
        %2135 = vmatpush1.msra.mxu0 0.0
        %2136 = vmatprep.subr.mxu0 0.0
        %2137 = vmatpush1.msra.mxu0 0.0
        %2138 = vmatprep.subr.mxu0 0.0
        %2139 = vmatpush1.msra.mxu0 0.0
        %2140 = vmatprep.subr.mxu0 0.0
        %2141 = vmatpush1.msra.mxu0 0.0
        %2142 = vmatprep.subr.mxu0 0.0
        %2143 = vmatpush1.msra.mxu0 0.0
        %2144 = vmatprep.subr.mxu0 0.0
        %2145 = vmatpush1.msra.mxu0 0.0
        %2146 = vmatprep.subr.mxu0 0.0
        %2147 = vmatpush1.msra.mxu0 0.0
        %2148 = vmatprep.subr.mxu0 0.0
        %2149 = vmatpush1.msra.mxu0 0.0
        %2150 = vmatprep.subr.mxu0 0.0
        %2151 = vmatpush1.msra.mxu0 0.0
        %2152 = vmatprep.subr.mxu0 0.0
        %2153 = vmatpush1.msra.mxu0 0.0
        %2154 = vmatprep.subr.mxu0 0.0
        %2155 = vmatpush1.msra.mxu0 0.0
        %2156 = vmatprep.subr.mxu0 0.0
        %2157 = vmatpush1.msra.mxu0 0.0
        %2158 = vmatprep.subr.mxu0 0.0
        %2159 = vmatpush1.msra.mxu0 0.0
        %2160 = vmatprep.subr.mxu0 0.0
        %2161 = vmatpush1.msra.mxu0 0.0
        %2162 = vmatprep.subr.mxu0 0.0
        %2163 = vmatpush1.msra.mxu0 0.0
        %2164 = vmatprep.subr.mxu0 0.0
        %2165 = vmatpush1.msra.mxu0 0.0
        %2166 = vmatprep.mubr.f32.mxu0 0.0
        %2167 = vmatmul.mubr.f32.gmra.mrb[0].mxu0 %v2024
        %v2168 = vpop.f32.mrb[0].mxu0
        %v2169 = vadd.f32 0.0, %v2168
        %v2170 = vpop.f32.mrb[0].mxu0
        %v2171 = vadd.f32 0.0, %v2170
        %2172 = vmatprep.mubr.f32.mxu0 0.0
        %2173 = vmatmul.mubr.f32.gmra.mrb[0].mxu0 %v2029
        %v2174 = vpop.f32.mrb[0].mxu0
        %v2175 = vadd.f32 0.0, %v2174
        %v2176 = vpop.f32.mrb[0].mxu0
        %v2177 = vadd.f32 0.0, %v2176
        %2178 = vmatprep.mubr.f32.mxu0 0.0
        %2179 = vmatmul.mubr.f32.gmra.mrb[0].mxu0 %v2034
        %v2180 = vpop.f32.mrb[0].mxu0
        %v2181 = vadd.f32 0.0, %v2180
        %v2182 = vpop.f32.mrb[0].mxu0
        %v2183 = vadd.f32 0.0, %v2182
        %2184 = vmatprep.mubr.f32.mxu0 0.0
        %2185 = vmatmul.mubr.f32.gmra.mrb[0].mxu0 %v2039
        %v2186 = vpop.f32.mrb[0].mxu0
        %v2187 = vadd.f32 0.0, %v2186
        %v2188 = vpop.f32.mrb[0].mxu0
        %v2189 = vadd.f32 0.0, %v2188
        %2190 = vmatprep.mubr.f32.mxu0 0.0
        %2191 = vmatmul.mubr.f32.gmra.mrb[0].mxu0 %v2044
        %v2192 = vpop.f32.mrb[0].mxu0
        %v2193 = vadd.f32 0.0, %v2192
        %v2194 = vpop.f32.mrb[0].mxu0
        %v2195 = vadd.f32 0.0, %v2194
        %2196 = vmatprep.mubr.f32.mxu0 0.0
        %2197 = vmatmul.mubr.f32.gmra.mrb[0].mxu0 %v2049
        %v2198 = vpop.f32.mrb[0].mxu0
        %v2199 = vadd.f32 0.0, %v2198
        %v2200 = vpop.f32.mrb[0].mxu0
        %v2201 = vadd.f32 0.0, %v2200
        %2202 = vmatprep.mubr.f32.mxu0 0.0
        %2203 = vmatmul.mubr.f32.gmra.mrb[0].mxu0 %v2054
        %v2204 = vpop.f32.mrb[0].mxu0
        %v2205 = vadd.f32 0.0, %v2204
        %v2206 = vpop.f32.mrb[0].mxu0
        %v2207 = vadd.f32 0.0, %v2206
        %2208 = vmatprep.mubr.f32.mxu0 0.0
        %2209 = vmatmul.mubr.f32.gmra.mrb[0].mxu0 %v2059
        %v2210 = vpop.f32.mrb[0].mxu0
        %v2211 = vadd.f32 0.0, %v2210
        %v2212 = vpop.f32.mrb[0].mxu0
        %v2213 = vadd.f32 0.0, %v2212
        %2214 = vmatprep.mubr.f32.mxu0 0.0
        %2215 = vmatmul.mubr.f32.gmra.mrb[0].mxu0 %v2064
        %v2216 = vpop.f32.mrb[0].mxu0
        %v2217 = vadd.f32 0.0, %v2216
        %v2218 = vpop.f32.mrb[0].mxu0
        %v2219 = vadd.f32 0.0, %v2218
        %2220 = vmatprep.mubr.f32.mxu0 0.0
        %2221 = vmatmul.mubr.f32.gmra.mrb[0].mxu0 %v2069
        %v2222 = vpop.f32.mrb[0].mxu0
        %v2223 = vadd.f32 0.0, %v2222
        %v2224 = vpop.f32.mrb[0].mxu0
        %v2225 = vadd.f32 0.0, %v2224
        %2226 = vmatprep.mubr.f32.mxu0 0.0
        %2227 = vmatmul.mubr.f32.gmra.mrb[0].mxu0 %v2074
        %v2228 = vpop.f32.mrb[0].mxu0
        %v2229 = vadd.f32 0.0, %v2228
        %v2230 = vpop.f32.mrb[0].mxu0
        %v2231 = vadd.f32 0.0, %v2230
        %2232 = vmatprep.mubr.f32.mxu0 0.0
        %2233 = vmatmul.mubr.f32.gmra.mrb[0].mxu0 %v2079
        %v2234 = vpop.f32.mrb[0].mxu0
        %v2235 = vadd.f32 0.0, %v2234
        %v2236 = vpop.f32.mrb[0].mxu0
        %v2237 = vadd.f32 0.0, %v2236
        %2238 = vmatprep.mubr.f32.mxu0 0.0
        %2239 = vmatmul.mubr.f32.gmra.mrb[0].mxu0 %v2084
        %v2240 = vpop.f32.mrb[0].mxu0
        %v2241 = vadd.f32 0.0, %v2240
        %v2242 = vpop.f32.mrb[0].mxu0
        %v2243 = vadd.f32 0.0, %v2242
        %2244 = vmatprep.mubr.f32.mxu0 0.0
        %2245 = vmatmul.mubr.f32.gmra.mrb[0].mxu0 %v2089
        %v2246 = vpop.f32.mrb[0].mxu0
        %v2247 = vadd.f32 0.0, %v2246
        %v2248 = vpop.f32.mrb[0].mxu0
        %v2249 = vadd.f32 0.0, %v2248
        %2250 = vmatprep.mubr.f32.mxu0 0.0
        %2251 = vmatmul.mubr.f32.gmra.mrb[0].mxu0 %v2094
        %v2252 = vpop.f32.mrb[0].mxu0
        %v2253 = vadd.f32 0.0, %v2252
        %v2254 = vpop.f32.mrb[0].mxu0
        %v2255 = vadd.f32 0.0, %v2254
        %2256 = vmatprep.mubr.f32.mxu0 0.0
        %2257 = vmatmul.mubr.f32.gmra.mrb[0].mxu0 %v2099
        %v2258 = vpop.f32.mrb[0].mxu0
        %v2259 = vadd.f32 0.0, %v2258
        %v2260 = vpop.f32.mrb[0].mxu0
        %v2261 = vadd.f32 0.0, %v2260
        %2262 = vdwg.mxu0
        %v2263 = vmul.f32 %v1863, %v938
        %v2264 = vmul.f32 %v1865, %v938
        %v2265 = vmul.f32 %v1869, %v938
        %v2266 = vmul.f32 %v1871, %v938
        %v2267 = vmul.f32 %v1875, %v938
        %v2268 = vmul.f32 %v1877, %v938
        %v2269 = vmul.f32 %v1881, %v938
        %v2270 = vmul.f32 %v1883, %v938
        %v2271 = vmul.f32 %v1887, %v938
        %v2272 = vmul.f32 %v1889, %v938
        %v2273 = vmul.f32 %v1893, %v938
        %v2274 = vmul.f32 %v1895, %v938
        %v2275 = vmul.f32 %v1899, %v938
        %v2276 = vmul.f32 %v1901, %v938
        %v2277 = vmul.f32 %v1905, %v938
        %v2278 = vmul.f32 %v1907, %v938
        %v2279 = vmul.f32 %v1911, %v938
        %v2280 = vmul.f32 %v1913, %v938
        %v2281 = vmul.f32 %v1917, %v938
        %v2282 = vmul.f32 %v1919, %v938
        %v2283 = vmul.f32 %v1923, %v938
        %v2284 = vmul.f32 %v1925, %v938
        %v2285 = vmul.f32 %v1929, %v938
        %v2286 = vmul.f32 %v1931, %v938
        %v2287 = vmul.f32 %v1935, %v938
        %v2288 = vmul.f32 %v1937, %v938
        %v2289 = vmul.f32 %v1941, %v938
        %v2290 = vmul.f32 %v1943, %v938
        %v2291 = vmul.f32 %v1947, %v938
        %v2292 = vmul.f32 %v1949, %v938
        %v2293 = vmul.f32 %v1953, %v938
        %v2294 = vmul.f32 %v1955, %v938
        %v2295 = vmul.f32 %v2169, %v944
        %v2296 = vmul.f32 %v2171, %v944
        %v2297 = vmul.f32 %v2175, %v944
        %v2298 = vmul.f32 %v2177, %v944
        %v2299 = vmul.f32 %v2181, %v944
        %v2300 = vmul.f32 %v2183, %v944
        %v2301 = vmul.f32 %v2187, %v944
        %v2302 = vmul.f32 %v2189, %v944
        %v2303 = vmul.f32 %v2193, %v944
        %v2304 = vmul.f32 %v2195, %v944
        %v2305 = vmul.f32 %v2199, %v944
        %v2306 = vmul.f32 %v2201, %v944
        %v2307 = vmul.f32 %v2205, %v944
        %v2308 = vmul.f32 %v2207, %v944
        %v2309 = vmul.f32 %v2211, %v944
        %v2310 = vmul.f32 %v2213, %v944
        %v2311 = vmul.f32 %v2217, %v944
        %v2312 = vmul.f32 %v2219, %v944
        %v2313 = vmul.f32 %v2223, %v944
        %v2314 = vmul.f32 %v2225, %v944
        %v2315 = vmul.f32 %v2229, %v944
        %v2316 = vmul.f32 %v2231, %v944
        %v2317 = vmul.f32 %v2235, %v944
        %v2318 = vmul.f32 %v2237, %v944
        %v2319 = vmul.f32 %v2241, %v944
        %v2320 = vmul.f32 %v2243, %v944
        %v2321 = vmul.f32 %v2247, %v944
        %v2322 = vmul.f32 %v2249, %v944
        %v2323 = vmul.f32 %v2253, %v944
        %v2324 = vmul.f32 %v2255, %v944
        %v2325 = vmul.f32 %v2259, %v944
        %v2326 = vmul.f32 %v2261, %v944
        %v2327 = vadd.f32 %v2263, %v2295
        %v2328 = vadd.f32 %v2264, %v2296
        %v2329 = vadd.f32 %v2265, %v2297
        %v2330 = vadd.f32 %v2266, %v2298
        %v2331 = vadd.f32 %v2267, %v2299
        %v2332 = vadd.f32 %v2268, %v2300
        %v2333 = vadd.f32 %v2269, %v2301
        %v2334 = vadd.f32 %v2270, %v2302
        %v2335 = vadd.f32 %v2271, %v2303
        %v2336 = vadd.f32 %v2272, %v2304
        %v2337 = vadd.f32 %v2273, %v2305
        %v2338 = vadd.f32 %v2274, %v2306
        %v2339 = vadd.f32 %v2275, %v2307
        %v2340 = vadd.f32 %v2276, %v2308
        %v2341 = vadd.f32 %v2277, %v2309
        %v2342 = vadd.f32 %v2278, %v2310
        %v2343 = vadd.f32 %v2279, %v2311
        %v2344 = vadd.f32 %v2280, %v2312
        %v2345 = vadd.f32 %v2281, %v2313
        %v2346 = vadd.f32 %v2282, %v2314
        %v2347 = vadd.f32 %v2283, %v2315
        %v2348 = vadd.f32 %v2284, %v2316
        %v2349 = vadd.f32 %v2285, %v2317
        %v2350 = vadd.f32 %v2286, %v2318
        %v2351 = vadd.f32 %v2287, %v2319
        %v2352 = vadd.f32 %v2288, %v2320
        %v2353 = vadd.f32 %v2289, %v2321
        %v2354 = vadd.f32 %v2290, %v2322
        %v2355 = vadd.f32 %v2291, %v2323
        %v2356 = vadd.f32 %v2292, %v2324
        %v2357 = vadd.f32 %v2293, %v2325
        %v2358 = vadd.f32 %v2294, %v2326
        %v2359 = vadd.f32 %v2327, %v954
        %v2360 = vadd.f32 %v2328, %v954
        %v2361 = vadd.f32 %v2329, %v954
        %v2362 = vadd.f32 %v2330, %v954
        %v2363 = vadd.f32 %v2331, %v954
        %v2364 = vadd.f32 %v2332, %v954
        %v2365 = vadd.f32 %v2333, %v954
        %v2366 = vadd.f32 %v2334, %v954
        %v2367 = vadd.f32 %v2335, %v954
        %v2368 = vadd.f32 %v2336, %v954
        %v2369 = vadd.f32 %v2337, %v954
        %v2370 = vadd.f32 %v2338, %v954
        %v2371 = vadd.f32 %v2339, %v954
        %v2372 = vadd.f32 %v2340, %v954
        %v2373 = vadd.f32 %v2341, %v954
        %v2374 = vadd.f32 %v2342, %v954
        %v2375 = vadd.f32 %v2343, %v954
        %v2376 = vadd.f32 %v2344, %v954
        %v2377 = vadd.f32 %v2345, %v954
        %v2378 = vadd.f32 %v2346, %v954
        %v2379 = vadd.f32 %v2347, %v954
        %v2380 = vadd.f32 %v2348, %v954
        %v2381 = vadd.f32 %v2349, %v954
        %v2382 = vadd.f32 %v2350, %v954
        %v2383 = vadd.f32 %v2351, %v954
        %v2384 = vadd.f32 %v2352, %v954
        %v2385 = vadd.f32 %v2353, %v954
        %v2386 = vadd.f32 %v2354, %v954
        %v2387 = vadd.f32 %v2355, %v954
        %v2388 = vadd.f32 %v2356, %v954
        %v2389 = vadd.f32 %v2357, %v954
        %v2390 = vadd.f32 %v2358, %v954
        %v2391 = vmul.f32 %v1863, %v960
        %v2392 = vmul.f32 %v1865, %v960
        %v2393 = vmul.f32 %v1869, %v960
        %v2394 = vmul.f32 %v1871, %v960
        %v2395 = vmul.f32 %v1875, %v960
        %v2396 = vmul.f32 %v1877, %v960
        %v2397 = vmul.f32 %v1881, %v960
        %v2398 = vmul.f32 %v1883, %v960
        %v2399 = vmul.f32 %v1887, %v960
        %v2400 = vmul.f32 %v1889, %v960
        %v2401 = vmul.f32 %v1893, %v960
        %v2402 = vmul.f32 %v1895, %v960
        %v2403 = vmul.f32 %v1899, %v960
        %v2404 = vmul.f32 %v1901, %v960
        %v2405 = vmul.f32 %v1905, %v960
        %v2406 = vmul.f32 %v1907, %v960
        %v2407 = vmul.f32 %v1911, %v960
        %v2408 = vmul.f32 %v1913, %v960
        %v2409 = vmul.f32 %v1917, %v960
        %v2410 = vmul.f32 %v1919, %v960
        %v2411 = vmul.f32 %v1923, %v960
        %v2412 = vmul.f32 %v1925, %v960
        %v2413 = vmul.f32 %v1929, %v960
        %v2414 = vmul.f32 %v1931, %v960
        %v2415 = vmul.f32 %v1935, %v960
        %v2416 = vmul.f32 %v1937, %v960
        %v2417 = vmul.f32 %v1941, %v960
        %v2418 = vmul.f32 %v1943, %v960
        %v2419 = vmul.f32 %v1947, %v960
        %v2420 = vmul.f32 %v1949, %v960
        %v2421 = vmul.f32 %v1953, %v960
        %v2422 = vmul.f32 %v1955, %v960
        %v2423 = vmul.f32 %v2169, %v966
        %v2424 = vmul.f32 %v2171, %v966
        %v2425 = vmul.f32 %v2175, %v966
        %v2426 = vmul.f32 %v2177, %v966
        %v2427 = vmul.f32 %v2181, %v966
        %v2428 = vmul.f32 %v2183, %v966
        %v2429 = vmul.f32 %v2187, %v966
        %v2430 = vmul.f32 %v2189, %v966
        %v2431 = vmul.f32 %v2193, %v966
        %v2432 = vmul.f32 %v2195, %v966
        %v2433 = vmul.f32 %v2199, %v966
        %v2434 = vmul.f32 %v2201, %v966
        %v2435 = vmul.f32 %v2205, %v966
        %v2436 = vmul.f32 %v2207, %v966
        %v2437 = vmul.f32 %v2211, %v966
        %v2438 = vmul.f32 %v2213, %v966
        %v2439 = vmul.f32 %v2217, %v966
        %v2440 = vmul.f32 %v2219, %v966
        %v2441 = vmul.f32 %v2223, %v966
        %v2442 = vmul.f32 %v2225, %v966
        %v2443 = vmul.f32 %v2229, %v966
        %v2444 = vmul.f32 %v2231, %v966
        %v2445 = vmul.f32 %v2235, %v966
        %v2446 = vmul.f32 %v2237, %v966
        %v2447 = vmul.f32 %v2241, %v966
        %v2448 = vmul.f32 %v2243, %v966
        %v2449 = vmul.f32 %v2247, %v966
        %v2450 = vmul.f32 %v2249, %v966
        %v2451 = vmul.f32 %v2253, %v966
        %v2452 = vmul.f32 %v2255, %v966
        %v2453 = vmul.f32 %v2259, %v966
        %v2454 = vmul.f32 %v2261, %v966
        %v2455 = vadd.f32 %v2391, %v2423
        %v2456 = vadd.f32 %v2392, %v2424
        %v2457 = vadd.f32 %v2393, %v2425
        %v2458 = vadd.f32 %v2394, %v2426
        %v2459 = vadd.f32 %v2395, %v2427
        %v2460 = vadd.f32 %v2396, %v2428
        %v2461 = vadd.f32 %v2397, %v2429
        %v2462 = vadd.f32 %v2398, %v2430
        %v2463 = vadd.f32 %v2399, %v2431
        %v2464 = vadd.f32 %v2400, %v2432
        %v2465 = vadd.f32 %v2401, %v2433
        %v2466 = vadd.f32 %v2402, %v2434
        %v2467 = vadd.f32 %v2403, %v2435
        %v2468 = vadd.f32 %v2404, %v2436
        %v2469 = vadd.f32 %v2405, %v2437
        %v2470 = vadd.f32 %v2406, %v2438
        %v2471 = vadd.f32 %v2407, %v2439
        %v2472 = vadd.f32 %v2408, %v2440
        %v2473 = vadd.f32 %v2409, %v2441
        %v2474 = vadd.f32 %v2410, %v2442
        %v2475 = vadd.f32 %v2411, %v2443
        %v2476 = vadd.f32 %v2412, %v2444
        %v2477 = vadd.f32 %v2413, %v2445
        %v2478 = vadd.f32 %v2414, %v2446
        %v2479 = vadd.f32 %v2415, %v2447
        %v2480 = vadd.f32 %v2416, %v2448
        %v2481 = vadd.f32 %v2417, %v2449
        %v2482 = vadd.f32 %v2418, %v2450
        %v2483 = vadd.f32 %v2419, %v2451
        %v2484 = vadd.f32 %v2420, %v2452
        %v2485 = vadd.f32 %v2421, %v2453
        %v2486 = vadd.f32 %v2422, %v2454
        %v2487 = vadd.f32 %v2455, %v976
        %v2488 = vadd.f32 %v2456, %v976
        %v2489 = vadd.f32 %v2457, %v976
        %v2490 = vadd.f32 %v2458, %v976
        %v2491 = vadd.f32 %v2459, %v976
        %v2492 = vadd.f32 %v2460, %v976
        %v2493 = vadd.f32 %v2461, %v976
        %v2494 = vadd.f32 %v2462, %v976
        %v2495 = vadd.f32 %v2463, %v976
        %v2496 = vadd.f32 %v2464, %v976
        %v2497 = vadd.f32 %v2465, %v976
        %v2498 = vadd.f32 %v2466, %v976
        %v2499 = vadd.f32 %v2467, %v976
        %v2500 = vadd.f32 %v2468, %v976
        %v2501 = vadd.f32 %v2469, %v976
        %v2502 = vadd.f32 %v2470, %v976
        %v2503 = vadd.f32 %v2471, %v976
        %v2504 = vadd.f32 %v2472, %v976
        %v2505 = vadd.f32 %v2473, %v976
        %v2506 = vadd.f32 %v2474, %v976
        %v2507 = vadd.f32 %v2475, %v976
        %v2508 = vadd.f32 %v2476, %v976
        %v2509 = vadd.f32 %v2477, %v976
        %v2510 = vadd.f32 %v2478, %v976
        %v2511 = vadd.f32 %v2479, %v976
        %v2512 = vadd.f32 %v2480, %v976
        %v2513 = vadd.f32 %v2481, %v976
        %v2514 = vadd.f32 %v2482, %v976
        %v2515 = vadd.f32 %v2483, %v976
        %v2516 = vadd.f32 %v2484, %v976
        %v2517 = vadd.f32 %v2485, %v976
        %v2518 = vadd.f32 %v2486, %v976
        %v2519 = vld [vmem:[%s11] sm:$0xff]
        %v2520 = vld [vmem:[%s11 + $0x8] sm:$0xff]
        %v2521 = vld [vmem:[%s11 + $0x10] sm:$0xff]
        %v2522 = vld [vmem:[%s11 + $0x18] sm:$0xff]
        %v2523 = vld [vmem:[%s11 + $0x20] sm:$0xff]
        %v2524 = vld [vmem:[%s11 + $0x28] sm:$0xff]
        %v2525 = vld [vmem:[%s11 + $0x30] sm:$0xff]
        %v2526 = vld [vmem:[%s11 + $0x38] sm:$0xff]
        %v2527 = vld [vmem:[%s11 + $0x40] sm:$0xff]
        %v2528 = vld [vmem:[%s11 + $0x48] sm:$0xff]
        %v2529 = vld [vmem:[%s11 + $0x50] sm:$0xff]
        %v2530 = vld [vmem:[%s11 + $0x58] sm:$0xff]
        %2531 = vmatprep.subr.mxu0 %v2360
        %2532 = vmatpush1.msra.mxu0 %v2359
        %2533 = vmatprep.subr.mxu0 %v2362
        %2534 = vmatpush1.msra.mxu0 %v2361
        %2535 = vmatprep.subr.mxu0 %v2364
        %2536 = vmatpush1.msra.mxu0 %v2363
        %2537 = vmatprep.subr.mxu0 %v2366
        %2538 = vmatpush1.msra.mxu0 %v2365
        %2539 = vmatprep.subr.mxu0 %v2368
        %2540 = vmatpush1.msra.mxu0 %v2367
        %2541 = vmatprep.subr.mxu0 %v2370
        %2542 = vmatpush1.msra.mxu0 %v2369
        %2543 = vmatprep.subr.mxu0 %v2372
        %2544 = vmatpush1.msra.mxu0 %v2371
        %2545 = vmatprep.subr.mxu0 %v2374
        %2546 = vmatpush1.msra.mxu0 %v2373
        %2547 = vmatprep.subr.mxu0 %v2376
        %2548 = vmatpush1.msra.mxu0 %v2375
        %2549 = vmatprep.subr.mxu0 %v2378
        %2550 = vmatpush1.msra.mxu0 %v2377
        %2551 = vmatprep.subr.mxu0 %v2380
        %2552 = vmatpush1.msra.mxu0 %v2379
        %2553 = vmatprep.subr.mxu0 %v2382
        %2554 = vmatpush1.msra.mxu0 %v2381
        %2555 = vmatprep.subr.mxu0 %v2384
        %2556 = vmatpush1.msra.mxu0 %v2383
        %2557 = vmatprep.subr.mxu0 %v2386
        %2558 = vmatpush1.msra.mxu0 %v2385
        %2559 = vmatprep.subr.mxu0 %v2388
        %2560 = vmatpush1.msra.mxu0 %v2387
        %2561 = vmatprep.subr.mxu0 %v2390
        %2562 = vmatpush1.msra.mxu0 %v2389
        %2563 = vmatprep.subr.mxu0 0.0
        %2564 = vmatpush1.msra.mxu0 0.0
        %2565 = vmatprep.subr.mxu0 0.0
        %2566 = vmatpush1.msra.mxu0 0.0
        %2567 = vmatprep.subr.mxu0 0.0
        %2568 = vmatpush1.msra.mxu0 0.0
        %2569 = vmatprep.subr.mxu0 0.0
        %2570 = vmatpush1.msra.mxu0 0.0
        %2571 = vmatprep.subr.mxu0 0.0
        %2572 = vmatpush1.msra.mxu0 0.0
        %2573 = vmatprep.subr.mxu0 0.0
        %2574 = vmatpush1.msra.mxu0 0.0
        %2575 = vmatprep.subr.mxu0 0.0
        %2576 = vmatpush1.msra.mxu0 0.0
        %2577 = vmatprep.subr.mxu0 0.0
        %2578 = vmatpush1.msra.mxu0 0.0
        %2579 = vmatprep.subr.mxu0 0.0
        %2580 = vmatpush1.msra.mxu0 0.0
        %2581 = vmatprep.subr.mxu0 0.0
        %2582 = vmatpush1.msra.mxu0 0.0
        %2583 = vmatprep.subr.mxu0 0.0
        %2584 = vmatpush1.msra.mxu0 0.0
        %2585 = vmatprep.subr.mxu0 0.0
        %2586 = vmatpush1.msra.mxu0 0.0
        %2587 = vmatprep.subr.mxu0 0.0
        %2588 = vmatpush1.msra.mxu0 0.0
        %2589 = vmatprep.subr.mxu0 0.0
        %2590 = vmatpush1.msra.mxu0 0.0
        %2591 = vmatprep.subr.mxu0 0.0
        %2592 = vmatpush1.msra.mxu0 0.0
        %2593 = vmatprep.subr.mxu0 0.0
        %2594 = vmatpush1.msra.mxu0 0.0
        %2595 = vmatprep.mubr.f32.mxu0 0.0
        %2596 = vmatmul.mubr.f32.gmra.mrb[0].mxu0 %v2519
        %v2597 = vpop.f32.mrb[0].mxu0
        %v2598 = vadd.f32 0.0, %v2597
        %v2599 = vpop.f32.mrb[0].mxu0
        %v2600 = vadd.f32 0.0, %v2599
        %2601 = vmatprep.mubr.f32.mxu0 0.0
        %2602 = vmatmul.mubr.f32.gmra.mrb[0].mxu0 %v2520
        %v2603 = vpop.f32.mrb[0].mxu0
        %v2604 = vadd.f32 0.0, %v2603
        %v2605 = vpop.f32.mrb[0].mxu0
        %v2606 = vadd.f32 0.0, %v2605
        %2607 = vmatprep.mubr.f32.mxu0 0.0
        %2608 = vmatmul.mubr.f32.gmra.mrb[0].mxu0 %v2521
        %v2609 = vpop.f32.mrb[0].mxu0
        %v2610 = vadd.f32 0.0, %v2609
        %v2611 = vpop.f32.mrb[0].mxu0
        %v2612 = vadd.f32 0.0, %v2611
        %2613 = vmatprep.mubr.f32.mxu0 0.0
        %2614 = vmatmul.mubr.f32.gmra.mrb[0].mxu0 %v2522
        %v2615 = vpop.f32.mrb[0].mxu0
        %v2616 = vadd.f32 0.0, %v2615
        %v2617 = vpop.f32.mrb[0].mxu0
        %v2618 = vadd.f32 0.0, %v2617
        %2619 = vmatprep.mubr.f32.mxu0 0.0
        %2620 = vmatmul.mubr.f32.gmra.mrb[0].mxu0 %v2523
        %v2621 = vpop.f32.mrb[0].mxu0
        %v2622 = vadd.f32 0.0, %v2621
        %v2623 = vpop.f32.mrb[0].mxu0
        %v2624 = vadd.f32 0.0, %v2623
        %2625 = vmatprep.mubr.f32.mxu0 0.0
        %2626 = vmatmul.mubr.f32.gmra.mrb[0].mxu0 %v2524
        %v2627 = vpop.f32.mrb[0].mxu0
        %v2628 = vadd.f32 0.0, %v2627
        %v2629 = vpop.f32.mrb[0].mxu0
        %v2630 = vadd.f32 0.0, %v2629
        %2631 = vmatprep.mubr.f32.mxu0 0.0
        %2632 = vmatmul.mubr.f32.gmra.mrb[0].mxu0 %v2525
        %v2633 = vpop.f32.mrb[0].mxu0
        %v2634 = vadd.f32 0.0, %v2633
        %v2635 = vpop.f32.mrb[0].mxu0
        %v2636 = vadd.f32 0.0, %v2635
        %2637 = vmatprep.mubr.f32.mxu0 0.0
        %2638 = vmatmul.mubr.f32.gmra.mrb[0].mxu0 %v2526
        %v2639 = vpop.f32.mrb[0].mxu0
        %v2640 = vadd.f32 0.0, %v2639
        %v2641 = vpop.f32.mrb[0].mxu0
        %v2642 = vadd.f32 0.0, %v2641
        %2643 = vmatprep.mubr.f32.mxu0 0.0
        %2644 = vmatmul.mubr.f32.gmra.mrb[0].mxu0 %v2527
        %v2645 = vpop.f32.mrb[0].mxu0
        %v2646 = vadd.f32 0.0, %v2645
        %v2647 = vpop.f32.mrb[0].mxu0
        %v2648 = vadd.f32 0.0, %v2647
        %2649 = vmatprep.mubr.f32.mxu0 0.0
        %2650 = vmatmul.mubr.f32.gmra.mrb[0].mxu0 %v2528
        %v2651 = vpop.f32.mrb[0].mxu0
        %v2652 = vadd.f32 0.0, %v2651
        %v2653 = vpop.f32.mrb[0].mxu0
        %v2654 = vadd.f32 0.0, %v2653
        %2655 = vmatprep.mubr.f32.mxu0 0.0
        %2656 = vmatmul.mubr.f32.gmra.mrb[0].mxu0 %v2529
        %v2657 = vpop.f32.mrb[0].mxu0
        %v2658 = vadd.f32 0.0, %v2657
        %v2659 = vpop.f32.mrb[0].mxu0
        %v2660 = vadd.f32 0.0, %v2659
        %2661 = vmatprep.mubr.f32.mxu0 0.0
        %2662 = vmatmul.mubr.f32.gmra.mrb[0].mxu0 %v2530
        %v2663 = vpop.f32.mrb[0].mxu0
        %v2664 = vadd.f32 0.0, %v2663
        %v2665 = vpop.f32.mrb[0].mxu0
        %v2666 = vadd.f32 0.0, %v2665
        %2667 = vdwg.mxu0
        %v2668 = vld [vmem:[%s12] sm:$0xff]
        %v2669 = vld [vmem:[%s12 + $0x8] sm:$0xff]
        %v2670 = vld [vmem:[%s12 + $0x10] sm:$0xff]
        %v2671 = vld [vmem:[%s12 + $0x18] sm:$0xff]
        %v2672 = vld [vmem:[%s12 + $0x20] sm:$0xff]
        %v2673 = vld [vmem:[%s12 + $0x28] sm:$0xff]
        %v2674 = vld [vmem:[%s12 + $0x30] sm:$0xff]
        %v2675 = vld [vmem:[%s12 + $0x38] sm:$0xff]
        %v2676 = vld [vmem:[%s12 + $0x40] sm:$0xff]
        %v2677 = vld [vmem:[%s12 + $0x48] sm:$0xff]
        %v2678 = vld [vmem:[%s12 + $0x50] sm:$0xff]
        %v2679 = vld [vmem:[%s12 + $0x58] sm:$0xff]
        %v2680 = vld [vmem:[%s12 + $0x60] sm:$0xff]
        %v2681 = vld [vmem:[%s12 + $0x68] sm:$0xff]
        %v2682 = vld [vmem:[%s12 + $0x70] sm:$0xff]
        %v2683 = vld [vmem:[%s12 + $0x78] sm:$0xff]
        %v2684 = vld [vmem:[%s12 + $0x80] sm:$0xff]
        %v2685 = vld [vmem:[%s12 + $0x88] sm:$0xff]
        %v2686 = vld [vmem:[%s12 + $0x90] sm:$0xff]
        %v2687 = vld [vmem:[%s12 + $0x98] sm:$0xff]
        %v2688 = vld [vmem:[%s12 + $0xa0] sm:$0xff]
        %v2689 = vld [vmem:[%s12 + $0xa8] sm:$0xff]
        %v2690 = vld [vmem:[%s12 + $0xb0] sm:$0xff]
        %v2691 = vld [vmem:[%s12 + $0xb8] sm:$0xff]
        %v2692 = vld [vmem:[%s12 + $0xc0] sm:$0xff]
        %v2693 = vld [vmem:[%s12 + $0xc8] sm:$0xff]
        %v2694 = vld [vmem:[%s12 + $0xd0] sm:$0xff]
        %v2695 = vld [vmem:[%s12 + $0xd8] sm:$0xff]
        %v2696 = vld [vmem:[%s12 + $0xe0] sm:$0xff]
        %v2697 = vld [vmem:[%s12 + $0xe8] sm:$0xff]
        %v2698 = vld [vmem:[%s12 + $0xf0] sm:$0xff]
        %v2699 = vld [vmem:[%s12 + $0xf8] sm:$0xff]
        %v2700 = vld [vmem:[%s12 + $0x100] sm:$0xff]
        %v2701 = vld [vmem:[%s12 + $0x108] sm:$0xff]
        %v2702 = vld [vmem:[%s12 + $0x110] sm:$0xff]
        %v2703 = vld [vmem:[%s12 + $0x118] sm:$0xff]
        %v2704 = vld [vmem:[%s12 + $0x120] sm:$0xff]
        %v2705 = vld [vmem:[%s12 + $0x128] sm:$0xff]
        %v2706 = vld [vmem:[%s12 + $0x130] sm:$0xff]
        %v2707 = vld [vmem:[%s12 + $0x138] sm:$0xff]
        %v2708 = vld [vmem:[%s12 + $0x140] sm:$0xff]
        %v2709 = vld [vmem:[%s12 + $0x148] sm:$0xff]
        %v2710 = vld [vmem:[%s12 + $0x150] sm:$0xff]
        %v2711 = vld [vmem:[%s12 + $0x158] sm:$0xff]
        %v2712 = vld [vmem:[%s12 + $0x160] sm:$0xff]
        %v2713 = vld [vmem:[%s12 + $0x168] sm:$0xff]
        %v2714 = vld [vmem:[%s12 + $0x170] sm:$0xff]
        %v2715 = vld [vmem:[%s12 + $0x178] sm:$0xff]
        %v2716 = vld [vmem:[%s12 + $0x180] sm:$0xff]
        %v2717 = vld [vmem:[%s12 + $0x188] sm:$0xff]
        %v2718 = vld [vmem:[%s12 + $0x190] sm:$0xff]
        %v2719 = vld [vmem:[%s12 + $0x198] sm:$0xff]
        %v2720 = vld [vmem:[%s12 + $0x1a0] sm:$0xff]
        %v2721 = vld [vmem:[%s12 + $0x1a8] sm:$0xff]
        %v2722 = vld [vmem:[%s12 + $0x1b0] sm:$0xff]
        %v2723 = vld [vmem:[%s12 + $0x1b8] sm:$0xff]
        %v2724 = vld [vmem:[%s12 + $0x1c0] sm:$0xff]
        %v2725 = vld [vmem:[%s12 + $0x1c8] sm:$0xff]
        %v2726 = vld [vmem:[%s12 + $0x1d0] sm:$0xff]
        %v2727 = vld [vmem:[%s12 + $0x1d8] sm:$0xff]
        %v2728 = vld [vmem:[%s12 + $0x1e0] sm:$0xff]
        %v2729 = vld [vmem:[%s12 + $0x1e8] sm:$0xff]
        %v2730 = vld [vmem:[%s12 + $0x1f0] sm:$0xff]
        %v2731 = vld [vmem:[%s12 + $0x1f8] sm:$0xff]
        %2732 = vmatprep.subr.mxu0 %v2669
        %2733 = vmatpush1.msra.mxu0 %v2668
        %2734 = vmatprep.subr.mxu0 %v2671
        %2735 = vmatpush1.msra.mxu0 %v2670
        %2736 = vmatprep.subr.mxu0 %v2673
        %2737 = vmatpush1.msra.mxu0 %v2672
        %2738 = vmatprep.subr.mxu0 %v2675
        %2739 = vmatpush1.msra.mxu0 %v2674
        %2740 = vmatprep.subr.mxu0 %v2677
        %2741 = vmatpush1.msra.mxu0 %v2676
        %2742 = vmatprep.subr.mxu0 %v2679
        %2743 = vmatpush1.msra.mxu0 %v2678
        %2744 = vmatprep.subr.mxu0 %v2681
        %2745 = vmatpush1.msra.mxu0 %v2680
        %2746 = vmatprep.subr.mxu0 %v2683
        %2747 = vmatpush1.msra.mxu0 %v2682
        %2748 = vmatprep.subr.mxu0 %v2685
        %2749 = vmatpush1.msra.mxu0 %v2684
        %2750 = vmatprep.subr.mxu0 %v2687
        %2751 = vmatpush1.msra.mxu0 %v2686
        %2752 = vmatprep.subr.mxu0 %v2689
        %2753 = vmatpush1.msra.mxu0 %v2688
        %2754 = vmatprep.subr.mxu0 %v2691
        %2755 = vmatpush1.msra.mxu0 %v2690
        %2756 = vmatprep.subr.mxu0 %v2693
        %2757 = vmatpush1.msra.mxu0 %v2692
        %2758 = vmatprep.subr.mxu0 %v2695
        %2759 = vmatpush1.msra.mxu0 %v2694
        %2760 = vmatprep.subr.mxu0 %v2697
        %2761 = vmatpush1.msra.mxu0 %v2696
        %2762 = vmatprep.subr.mxu0 %v2699
        %2763 = vmatpush1.msra.mxu0 %v2698
        %2764 = vmatprep.subr.mxu0 %v2701
        %2765 = vmatpush1.msra.mxu0 %v2700
        %2766 = vmatprep.subr.mxu0 %v2703
        %2767 = vmatpush1.msra.mxu0 %v2702
        %2768 = vmatprep.subr.mxu0 %v2705
        %2769 = vmatpush1.msra.mxu0 %v2704
        %2770 = vmatprep.subr.mxu0 %v2707
        %2771 = vmatpush1.msra.mxu0 %v2706
        %2772 = vmatprep.subr.mxu0 %v2709
        %2773 = vmatpush1.msra.mxu0 %v2708
        %2774 = vmatprep.subr.mxu0 %v2711
        %2775 = vmatpush1.msra.mxu0 %v2710
        %2776 = vmatprep.subr.mxu0 %v2713
        %2777 = vmatpush1.msra.mxu0 %v2712
        %2778 = vmatprep.subr.mxu0 %v2715
        %2779 = vmatpush1.msra.mxu0 %v2714
        %2780 = vmatprep.subr.mxu0 %v2717
        %2781 = vmatpush1.msra.mxu0 %v2716
        %2782 = vmatprep.subr.mxu0 %v2719
        %2783 = vmatpush1.msra.mxu0 %v2718
        %2784 = vmatprep.subr.mxu0 %v2721
        %2785 = vmatpush1.msra.mxu0 %v2720
        %2786 = vmatprep.subr.mxu0 %v2723
        %2787 = vmatpush1.msra.mxu0 %v2722
        %2788 = vmatprep.subr.mxu0 %v2725
        %2789 = vmatpush1.msra.mxu0 %v2724
        %2790 = vmatprep.subr.mxu0 %v2727
        %2791 = vmatpush1.msra.mxu0 %v2726
        %2792 = vmatprep.subr.mxu0 %v2729
        %2793 = vmatpush1.msra.mxu0 %v2728
        %2794 = vmatprep.subr.mxu0 %v2731
        %2795 = vmatpush1.msra.mxu0 %v2730
        %2796 = vmatprep.mubr.f32.mxu0 %v2600
        %2797 = vmatmul.mubr.f32.gmra.mrb[0].mxu0 %v2598
        %v2798 = vpop.f32.mrb[0].mxu0
        %v2799 = vadd.f32 0.0, %v2798
        %v2800 = vpop.f32.mrb[0].mxu0
        %v2801 = vadd.f32 0.0, %v2800
        %2802 = vmatprep.mubr.f32.mxu0 %v2606
        %2803 = vmatmul.mubr.f32.gmra.mrb[0].mxu0 %v2604
        %v2804 = vpop.f32.mrb[0].mxu0
        %v2805 = vadd.f32 0.0, %v2804
        %v2806 = vpop.f32.mrb[0].mxu0
        %v2807 = vadd.f32 0.0, %v2806
        %2808 = vmatprep.mubr.f32.mxu0 %v2612
        %2809 = vmatmul.mubr.f32.gmra.mrb[0].mxu0 %v2610
        %v2810 = vpop.f32.mrb[0].mxu0
        %v2811 = vadd.f32 0.0, %v2810
        %v2812 = vpop.f32.mrb[0].mxu0
        %v2813 = vadd.f32 0.0, %v2812
        %2814 = vmatprep.mubr.f32.mxu0 %v2618
        %2815 = vmatmul.mubr.f32.gmra.mrb[0].mxu0 %v2616
        %v2816 = vpop.f32.mrb[0].mxu0
        %v2817 = vadd.f32 0.0, %v2816
        %v2818 = vpop.f32.mrb[0].mxu0
        %v2819 = vadd.f32 0.0, %v2818
        %2820 = vmatprep.mubr.f32.mxu0 %v2624
        %2821 = vmatmul.mubr.f32.gmra.mrb[0].mxu0 %v2622
        %v2822 = vpop.f32.mrb[0].mxu0
        %v2823 = vadd.f32 0.0, %v2822
        %v2824 = vpop.f32.mrb[0].mxu0
        %v2825 = vadd.f32 0.0, %v2824
        %2826 = vmatprep.mubr.f32.mxu0 %v2630
        %2827 = vmatmul.mubr.f32.gmra.mrb[0].mxu0 %v2628
        %v2828 = vpop.f32.mrb[0].mxu0
        %v2829 = vadd.f32 0.0, %v2828
        %v2830 = vpop.f32.mrb[0].mxu0
        %v2831 = vadd.f32 0.0, %v2830
        %2832 = vmatprep.mubr.f32.mxu0 %v2636
        %2833 = vmatmul.mubr.f32.gmra.mrb[0].mxu0 %v2634
        %v2834 = vpop.f32.mrb[0].mxu0
        %v2835 = vadd.f32 0.0, %v2834
        %v2836 = vpop.f32.mrb[0].mxu0
        %v2837 = vadd.f32 0.0, %v2836
        %2838 = vmatprep.mubr.f32.mxu0 %v2642
        %2839 = vmatmul.mubr.f32.gmra.mrb[0].mxu0 %v2640
        %v2840 = vpop.f32.mrb[0].mxu0
        %v2841 = vadd.f32 0.0, %v2840
        %v2842 = vpop.f32.mrb[0].mxu0
        %v2843 = vadd.f32 0.0, %v2842
        %2844 = vmatprep.mubr.f32.mxu0 %v2648
        %2845 = vmatmul.mubr.f32.gmra.mrb[0].mxu0 %v2646
        %v2846 = vpop.f32.mrb[0].mxu0
        %v2847 = vadd.f32 0.0, %v2846
        %v2848 = vpop.f32.mrb[0].mxu0
        %v2849 = vadd.f32 0.0, %v2848
        %2850 = vmatprep.mubr.f32.mxu0 %v2654
        %2851 = vmatmul.mubr.f32.gmra.mrb[0].mxu0 %v2652
        %v2852 = vpop.f32.mrb[0].mxu0
        %v2853 = vadd.f32 0.0, %v2852
        %v2854 = vpop.f32.mrb[0].mxu0
        %v2855 = vadd.f32 0.0, %v2854
        %2856 = vmatprep.mubr.f32.mxu0 %v2660
        %2857 = vmatmul.mubr.f32.gmra.mrb[0].mxu0 %v2658
        %v2858 = vpop.f32.mrb[0].mxu0
        %v2859 = vadd.f32 0.0, %v2858
        %v2860 = vpop.f32.mrb[0].mxu0
        %v2861 = vadd.f32 0.0, %v2860
        %2862 = vmatprep.mubr.f32.mxu0 %v2666
        %2863 = vmatmul.mubr.f32.gmra.mrb[0].mxu0 %v2664
        %v2864 = vpop.f32.mrb[0].mxu0
        %v2865 = vadd.f32 0.0, %v2864
        %v2866 = vpop.f32.mrb[0].mxu0
        %v2867 = vadd.f32 0.0, %v2866
        %2868 = vdwg.mxu0
        %2869 = vst [vmem:[%s485] sm:$0xff] %v2799
        %2870 = vst.msk [vmem:[%s485 + $0x8] sm:$0xff] %vm1127, %v2801
        %2871 = vst [vmem:[%s485 + $0x10] sm:$0xff] %v2805
        %2872 = vst.msk [vmem:[%s485 + $0x18] sm:$0xff] %vm1127, %v2807
        %2873 = vst [vmem:[%s485 + $0x20] sm:$0xff] %v2811
        %2874 = vst.msk [vmem:[%s485 + $0x28] sm:$0xff] %vm1127, %v2813
        %2875 = vst [vmem:[%s485 + $0x30] sm:$0xff] %v2817
        %2876 = vst.msk [vmem:[%s485 + $0x38] sm:$0xff] %vm1127, %v2819
        %2877 = vst [vmem:[%s485 + $0x40] sm:$0xff] %v2823
        %2878 = vst.msk [vmem:[%s485 + $0x48] sm:$0xff] %vm1127, %v2825
        %2879 = vst [vmem:[%s485 + $0x50] sm:$0xff] %v2829
        %2880 = vst.msk [vmem:[%s485 + $0x58] sm:$0xff] %vm1127, %v2831
        %2881 = vst [vmem:[%s485 + $0x60] sm:$0xff] %v2835
        %2882 = vst.msk [vmem:[%s485 + $0x68] sm:$0xff] %vm1127, %v2837
        %2883 = vst [vmem:[%s485 + $0x70] sm:$0xff] %v2841
        %2884 = vst.msk [vmem:[%s485 + $0x78] sm:$0xff] %vm1127, %v2843
        %2885 = vst [vmem:[%s485 + $0x80] sm:$0xff] %v2847
        %2886 = vst.msk [vmem:[%s485 + $0x88] sm:$0xff] %vm1127, %v2849
        %2887 = vst [vmem:[%s485 + $0x90] sm:$0xff] %v2853
        %2888 = vst.msk [vmem:[%s485 + $0x98] sm:$0xff] %vm1127, %v2855
        %2889 = vst [vmem:[%s485 + $0xa0] sm:$0xff] %v2859
        %2890 = vst.msk [vmem:[%s485 + $0xa8] sm:$0xff] %vm1127, %v2861
        %2891 = vst [vmem:[%s485 + $0xb0] sm:$0xff] %v2865
        %2892 = vst.msk [vmem:[%s485 + $0xb8] sm:$0xff] %vm1127, %v2867
        %v2893 = vld [vmem:[%s11] sm:$0xff]
        %v2894 = vld [vmem:[%s11 + $0x8] sm:$0xff]
        %v2895 = vld [vmem:[%s11 + $0x10] sm:$0xff]
        %v2896 = vld [vmem:[%s11 + $0x18] sm:$0xff]
        %v2897 = vld [vmem:[%s11 + $0x20] sm:$0xff]
        %v2898 = vld [vmem:[%s11 + $0x28] sm:$0xff]
        %v2899 = vld [vmem:[%s11 + $0x30] sm:$0xff]
        %v2900 = vld [vmem:[%s11 + $0x38] sm:$0xff]
        %v2901 = vld [vmem:[%s11 + $0x40] sm:$0xff]
        %v2902 = vld [vmem:[%s11 + $0x48] sm:$0xff]
        %v2903 = vld [vmem:[%s11 + $0x50] sm:$0xff]
        %v2904 = vld [vmem:[%s11 + $0x58] sm:$0xff]
        %2905 = vmatprep.subr.mxu0 %v2488
        %2906 = vmatpush1.msra.mxu0 %v2487
        %2907 = vmatprep.subr.mxu0 %v2490
        %2908 = vmatpush1.msra.mxu0 %v2489
        %2909 = vmatprep.subr.mxu0 %v2492
        %2910 = vmatpush1.msra.mxu0 %v2491
        %2911 = vmatprep.subr.mxu0 %v2494
        %2912 = vmatpush1.msra.mxu0 %v2493
        %2913 = vmatprep.subr.mxu0 %v2496
        %2914 = vmatpush1.msra.mxu0 %v2495
        %2915 = vmatprep.subr.mxu0 %v2498
        %2916 = vmatpush1.msra.mxu0 %v2497
        %2917 = vmatprep.subr.mxu0 %v2500
        %2918 = vmatpush1.msra.mxu0 %v2499
        %2919 = vmatprep.subr.mxu0 %v2502
        %2920 = vmatpush1.msra.mxu0 %v2501
        %2921 = vmatprep.subr.mxu0 %v2504
        %2922 = vmatpush1.msra.mxu0 %v2503
        %2923 = vmatprep.subr.mxu0 %v2506
        %2924 = vmatpush1.msra.mxu0 %v2505
        %2925 = vmatprep.subr.mxu0 %v2508
        %2926 = vmatpush1.msra.mxu0 %v2507
        %2927 = vmatprep.subr.mxu0 %v2510
        %2928 = vmatpush1.msra.mxu0 %v2509
        %2929 = vmatprep.subr.mxu0 %v2512
        %2930 = vmatpush1.msra.mxu0 %v2511
        %2931 = vmatprep.subr.mxu0 %v2514
        %2932 = vmatpush1.msra.mxu0 %v2513
        %2933 = vmatprep.subr.mxu0 %v2516
        %2934 = vmatpush1.msra.mxu0 %v2515
        %2935 = vmatprep.subr.mxu0 %v2518
        %2936 = vmatpush1.msra.mxu0 %v2517
        %2937 = vmatprep.subr.mxu0 0.0
        %2938 = vmatpush1.msra.mxu0 0.0
        %2939 = vmatprep.subr.mxu0 0.0
        %2940 = vmatpush1.msra.mxu0 0.0
        %2941 = vmatprep.subr.mxu0 0.0
        %2942 = vmatpush1.msra.mxu0 0.0
        %2943 = vmatprep.subr.mxu0 0.0
        %2944 = vmatpush1.msra.mxu0 0.0
        %2945 = vmatprep.subr.mxu0 0.0
        %2946 = vmatpush1.msra.mxu0 0.0
        %2947 = vmatprep.subr.mxu0 0.0
        %2948 = vmatpush1.msra.mxu0 0.0
        %2949 = vmatprep.subr.mxu0 0.0
        %2950 = vmatpush1.msra.mxu0 0.0
        %2951 = vmatprep.subr.mxu0 0.0
        %2952 = vmatpush1.msra.mxu0 0.0
        %2953 = vmatprep.subr.mxu0 0.0
        %2954 = vmatpush1.msra.mxu0 0.0
        %2955 = vmatprep.subr.mxu0 0.0
        %2956 = vmatpush1.msra.mxu0 0.0
        %2957 = vmatprep.subr.mxu0 0.0
        %2958 = vmatpush1.msra.mxu0 0.0
        %2959 = vmatprep.subr.mxu0 0.0
        %2960 = vmatpush1.msra.mxu0 0.0
        %2961 = vmatprep.subr.mxu0 0.0
        %2962 = vmatpush1.msra.mxu0 0.0
        %2963 = vmatprep.subr.mxu0 0.0
        %2964 = vmatpush1.msra.mxu0 0.0
        %2965 = vmatprep.subr.mxu0 0.0
        %2966 = vmatpush1.msra.mxu0 0.0
        %2967 = vmatprep.subr.mxu0 0.0
        %2968 = vmatpush1.msra.mxu0 0.0
        %2969 = vmatprep.mubr.f32.mxu0 0.0
        %2970 = vmatmul.mubr.f32.gmra.mrb[0].mxu0 %v2893
        %v2971 = vpop.f32.mrb[0].mxu0
        %v2972 = vadd.f32 0.0, %v2971
        %v2973 = vpop.f32.mrb[0].mxu0
        %v2974 = vadd.f32 0.0, %v2973
        %2975 = vmatprep.mubr.f32.mxu0 0.0
        %2976 = vmatmul.mubr.f32.gmra.mrb[0].mxu0 %v2894
        %v2977 = vpop.f32.mrb[0].mxu0
        %v2978 = vadd.f32 0.0, %v2977
        %v2979 = vpop.f32.mrb[0].mxu0
        %v2980 = vadd.f32 0.0, %v2979
        %2981 = vmatprep.mubr.f32.mxu0 0.0
        %2982 = vmatmul.mubr.f32.gmra.mrb[0].mxu0 %v2895
        %v2983 = vpop.f32.mrb[0].mxu0
        %v2984 = vadd.f32 0.0, %v2983
        %v2985 = vpop.f32.mrb[0].mxu0
        %v2986 = vadd.f32 0.0, %v2985
        %2987 = vmatprep.mubr.f32.mxu0 0.0
        %2988 = vmatmul.mubr.f32.gmra.mrb[0].mxu0 %v2896
        %v2989 = vpop.f32.mrb[0].mxu0
        %v2990 = vadd.f32 0.0, %v2989
        %v2991 = vpop.f32.mrb[0].mxu0
        %v2992 = vadd.f32 0.0, %v2991
        %2993 = vmatprep.mubr.f32.mxu0 0.0
        %2994 = vmatmul.mubr.f32.gmra.mrb[0].mxu0 %v2897
        %v2995 = vpop.f32.mrb[0].mxu0
        %v2996 = vadd.f32 0.0, %v2995
        %v2997 = vpop.f32.mrb[0].mxu0
        %v2998 = vadd.f32 0.0, %v2997
        %2999 = vmatprep.mubr.f32.mxu0 0.0
        %3000 = vmatmul.mubr.f32.gmra.mrb[0].mxu0 %v2898
        %v3001 = vpop.f32.mrb[0].mxu0
        %v3002 = vadd.f32 0.0, %v3001
        %v3003 = vpop.f32.mrb[0].mxu0
        %v3004 = vadd.f32 0.0, %v3003
        %3005 = vmatprep.mubr.f32.mxu0 0.0
        %3006 = vmatmul.mubr.f32.gmra.mrb[0].mxu0 %v2899
        %v3007 = vpop.f32.mrb[0].mxu0
        %v3008 = vadd.f32 0.0, %v3007
        %v3009 = vpop.f32.mrb[0].mxu0
        %v3010 = vadd.f32 0.0, %v3009
        %3011 = vmatprep.mubr.f32.mxu0 0.0
        %3012 = vmatmul.mubr.f32.gmra.mrb[0].mxu0 %v2900
        %v3013 = vpop.f32.mrb[0].mxu0
        %v3014 = vadd.f32 0.0, %v3013
        %v3015 = vpop.f32.mrb[0].mxu0
        %v3016 = vadd.f32 0.0, %v3015
        %3017 = vmatprep.mubr.f32.mxu0 0.0
        %3018 = vmatmul.mubr.f32.gmra.mrb[0].mxu0 %v2901
        %v3019 = vpop.f32.mrb[0].mxu0
        %v3020 = vadd.f32 0.0, %v3019
        %v3021 = vpop.f32.mrb[0].mxu0
        %v3022 = vadd.f32 0.0, %v3021
        %3023 = vmatprep.mubr.f32.mxu0 0.0
        %3024 = vmatmul.mubr.f32.gmra.mrb[0].mxu0 %v2902
        %v3025 = vpop.f32.mrb[0].mxu0
        %v3026 = vadd.f32 0.0, %v3025
        %v3027 = vpop.f32.mrb[0].mxu0
        %v3028 = vadd.f32 0.0, %v3027
        %3029 = vmatprep.mubr.f32.mxu0 0.0
        %3030 = vmatmul.mubr.f32.gmra.mrb[0].mxu0 %v2903
        %v3031 = vpop.f32.mrb[0].mxu0
        %v3032 = vadd.f32 0.0, %v3031
        %v3033 = vpop.f32.mrb[0].mxu0
        %v3034 = vadd.f32 0.0, %v3033
        %3035 = vmatprep.mubr.f32.mxu0 0.0
        %3036 = vmatmul.mubr.f32.gmra.mrb[0].mxu0 %v2904
        %v3037 = vpop.f32.mrb[0].mxu0
        %v3038 = vadd.f32 0.0, %v3037
        %v3039 = vpop.f32.mrb[0].mxu0
        %v3040 = vadd.f32 0.0, %v3039
        %3041 = vdwg.mxu0
        %v3042 = vld [vmem:[%s12] sm:$0xff]
        %v3043 = vld [vmem:[%s12 + $0x8] sm:$0xff]
        %v3044 = vld [vmem:[%s12 + $0x10] sm:$0xff]
        %v3045 = vld [vmem:[%s12 + $0x18] sm:$0xff]
        %v3046 = vld [vmem:[%s12 + $0x20] sm:$0xff]
        %v3047 = vld [vmem:[%s12 + $0x28] sm:$0xff]
        %v3048 = vld [vmem:[%s12 + $0x30] sm:$0xff]
        %v3049 = vld [vmem:[%s12 + $0x38] sm:$0xff]
        %v3050 = vld [vmem:[%s12 + $0x40] sm:$0xff]
        %v3051 = vld [vmem:[%s12 + $0x48] sm:$0xff]
        %v3052 = vld [vmem:[%s12 + $0x50] sm:$0xff]
        %v3053 = vld [vmem:[%s12 + $0x58] sm:$0xff]
        %v3054 = vld [vmem:[%s12 + $0x60] sm:$0xff]
        %v3055 = vld [vmem:[%s12 + $0x68] sm:$0xff]
        %v3056 = vld [vmem:[%s12 + $0x70] sm:$0xff]
        %v3057 = vld [vmem:[%s12 + $0x78] sm:$0xff]
        %v3058 = vld [vmem:[%s12 + $0x80] sm:$0xff]
        %v3059 = vld [vmem:[%s12 + $0x88] sm:$0xff]
        %v3060 = vld [vmem:[%s12 + $0x90] sm:$0xff]
        %v3061 = vld [vmem:[%s12 + $0x98] sm:$0xff]
        %v3062 = vld [vmem:[%s12 + $0xa0] sm:$0xff]
        %v3063 = vld [vmem:[%s12 + $0xa8] sm:$0xff]
        %v3064 = vld [vmem:[%s12 + $0xb0] sm:$0xff]
        %v3065 = vld [vmem:[%s12 + $0xb8] sm:$0xff]
        %v3066 = vld [vmem:[%s12 + $0xc0] sm:$0xff]
        %v3067 = vld [vmem:[%s12 + $0xc8] sm:$0xff]
        %v3068 = vld [vmem:[%s12 + $0xd0] sm:$0xff]
        %v3069 = vld [vmem:[%s12 + $0xd8] sm:$0xff]
        %v3070 = vld [vmem:[%s12 + $0xe0] sm:$0xff]
        %v3071 = vld [vmem:[%s12 + $0xe8] sm:$0xff]
        %v3072 = vld [vmem:[%s12 + $0xf0] sm:$0xff]
        %v3073 = vld [vmem:[%s12 + $0xf8] sm:$0xff]
        %v3074 = vld [vmem:[%s12 + $0x100] sm:$0xff]
        %v3075 = vld [vmem:[%s12 + $0x108] sm:$0xff]
        %v3076 = vld [vmem:[%s12 + $0x110] sm:$0xff]
        %v3077 = vld [vmem:[%s12 + $0x118] sm:$0xff]
        %v3078 = vld [vmem:[%s12 + $0x120] sm:$0xff]
        %v3079 = vld [vmem:[%s12 + $0x128] sm:$0xff]
        %v3080 = vld [vmem:[%s12 + $0x130] sm:$0xff]
        %v3081 = vld [vmem:[%s12 + $0x138] sm:$0xff]
        %v3082 = vld [vmem:[%s12 + $0x140] sm:$0xff]
        %v3083 = vld [vmem:[%s12 + $0x148] sm:$0xff]
        %v3084 = vld [vmem:[%s12 + $0x150] sm:$0xff]
        %v3085 = vld [vmem:[%s12 + $0x158] sm:$0xff]
        %v3086 = vld [vmem:[%s12 + $0x160] sm:$0xff]
        %v3087 = vld [vmem:[%s12 + $0x168] sm:$0xff]
        %v3088 = vld [vmem:[%s12 + $0x170] sm:$0xff]
        %v3089 = vld [vmem:[%s12 + $0x178] sm:$0xff]
        %v3090 = vld [vmem:[%s12 + $0x180] sm:$0xff]
        %v3091 = vld [vmem:[%s12 + $0x188] sm:$0xff]
        %v3092 = vld [vmem:[%s12 + $0x190] sm:$0xff]
        %v3093 = vld [vmem:[%s12 + $0x198] sm:$0xff]
        %v3094 = vld [vmem:[%s12 + $0x1a0] sm:$0xff]
        %v3095 = vld [vmem:[%s12 + $0x1a8] sm:$0xff]
        %v3096 = vld [vmem:[%s12 + $0x1b0] sm:$0xff]
        %v3097 = vld [vmem:[%s12 + $0x1b8] sm:$0xff]
        %v3098 = vld [vmem:[%s12 + $0x1c0] sm:$0xff]
        %v3099 = vld [vmem:[%s12 + $0x1c8] sm:$0xff]
        %v3100 = vld [vmem:[%s12 + $0x1d0] sm:$0xff]
        %v3101 = vld [vmem:[%s12 + $0x1d8] sm:$0xff]
        %v3102 = vld [vmem:[%s12 + $0x1e0] sm:$0xff]
        %v3103 = vld [vmem:[%s12 + $0x1e8] sm:$0xff]
        %v3104 = vld [vmem:[%s12 + $0x1f0] sm:$0xff]
        %v3105 = vld [vmem:[%s12 + $0x1f8] sm:$0xff]
        %3106 = vmatprep.subr.mxu0 %v3043
        %3107 = vmatpush1.msra.mxu0 %v3042
        %3108 = vmatprep.subr.mxu0 %v3045
        %3109 = vmatpush1.msra.mxu0 %v3044
        %3110 = vmatprep.subr.mxu0 %v3047
        %3111 = vmatpush1.msra.mxu0 %v3046
        %3112 = vmatprep.subr.mxu0 %v3049
        %3113 = vmatpush1.msra.mxu0 %v3048
        %3114 = vmatprep.subr.mxu0 %v3051
        %3115 = vmatpush1.msra.mxu0 %v3050
        %3116 = vmatprep.subr.mxu0 %v3053
        %3117 = vmatpush1.msra.mxu0 %v3052
        %3118 = vmatprep.subr.mxu0 %v3055
        %3119 = vmatpush1.msra.mxu0 %v3054
        %3120 = vmatprep.subr.mxu0 %v3057
        %3121 = vmatpush1.msra.mxu0 %v3056
        %3122 = vmatprep.subr.mxu0 %v3059
        %3123 = vmatpush1.msra.mxu0 %v3058
        %3124 = vmatprep.subr.mxu0 %v3061
        %3125 = vmatpush1.msra.mxu0 %v3060
        %3126 = vmatprep.subr.mxu0 %v3063
        %3127 = vmatpush1.msra.mxu0 %v3062
        %3128 = vmatprep.subr.mxu0 %v3065
        %3129 = vmatpush1.msra.mxu0 %v3064
        %3130 = vmatprep.subr.mxu0 %v3067
        %3131 = vmatpush1.msra.mxu0 %v3066
        %3132 = vmatprep.subr.mxu0 %v3069
        %3133 = vmatpush1.msra.mxu0 %v3068
        %3134 = vmatprep.subr.mxu0 %v3071
        %3135 = vmatpush1.msra.mxu0 %v3070
        %3136 = vmatprep.subr.mxu0 %v3073
        %3137 = vmatpush1.msra.mxu0 %v3072
        %3138 = vmatprep.subr.mxu0 %v3075
        %3139 = vmatpush1.msra.mxu0 %v3074
        %3140 = vmatprep.subr.mxu0 %v3077
        %3141 = vmatpush1.msra.mxu0 %v3076
        %3142 = vmatprep.subr.mxu0 %v3079
        %3143 = vmatpush1.msra.mxu0 %v3078
        %3144 = vmatprep.subr.mxu0 %v3081
        %3145 = vmatpush1.msra.mxu0 %v3080
        %3146 = vmatprep.subr.mxu0 %v3083
        %3147 = vmatpush1.msra.mxu0 %v3082
        %3148 = vmatprep.subr.mxu0 %v3085
        %3149 = vmatpush1.msra.mxu0 %v3084
        %3150 = vmatprep.subr.mxu0 %v3087
        %3151 = vmatpush1.msra.mxu0 %v3086
        %3152 = vmatprep.subr.mxu0 %v3089
        %3153 = vmatpush1.msra.mxu0 %v3088
        %3154 = vmatprep.subr.mxu0 %v3091
        %3155 = vmatpush1.msra.mxu0 %v3090
        %3156 = vmatprep.subr.mxu0 %v3093
        %3157 = vmatpush1.msra.mxu0 %v3092
        %3158 = vmatprep.subr.mxu0 %v3095
        %3159 = vmatpush1.msra.mxu0 %v3094
        %3160 = vmatprep.subr.mxu0 %v3097
        %3161 = vmatpush1.msra.mxu0 %v3096
        %3162 = vmatprep.subr.mxu0 %v3099
        %3163 = vmatpush1.msra.mxu0 %v3098
        %3164 = vmatprep.subr.mxu0 %v3101
        %3165 = vmatpush1.msra.mxu0 %v3100
        %3166 = vmatprep.subr.mxu0 %v3103
        %3167 = vmatpush1.msra.mxu0 %v3102
        %3168 = vmatprep.subr.mxu0 %v3105
        %3169 = vmatpush1.msra.mxu0 %v3104
        %3170 = vmatprep.mubr.f32.mxu0 %v2974
        %3171 = vmatmul.mubr.f32.gmra.mrb[0].mxu0 %v2972
        %v3172 = vpop.f32.mrb[0].mxu0
        %v3173 = vadd.f32 0.0, %v3172
        %v3174 = vpop.f32.mrb[0].mxu0
        %v3175 = vadd.f32 0.0, %v3174
        %3176 = vmatprep.mubr.f32.mxu0 %v2980
        %3177 = vmatmul.mubr.f32.gmra.mrb[0].mxu0 %v2978
        %v3178 = vpop.f32.mrb[0].mxu0
        %v3179 = vadd.f32 0.0, %v3178
        %v3180 = vpop.f32.mrb[0].mxu0
        %v3181 = vadd.f32 0.0, %v3180
        %3182 = vmatprep.mubr.f32.mxu0 %v2986
        %3183 = vmatmul.mubr.f32.gmra.mrb[0].mxu0 %v2984
        %v3184 = vpop.f32.mrb[0].mxu0
        %v3185 = vadd.f32 0.0, %v3184
        %v3186 = vpop.f32.mrb[0].mxu0
        %v3187 = vadd.f32 0.0, %v3186
        %3188 = vmatprep.mubr.f32.mxu0 %v2992
        %3189 = vmatmul.mubr.f32.gmra.mrb[0].mxu0 %v2990
        %v3190 = vpop.f32.mrb[0].mxu0
        %v3191 = vadd.f32 0.0, %v3190
        %v3192 = vpop.f32.mrb[0].mxu0
        %v3193 = vadd.f32 0.0, %v3192
        %3194 = vmatprep.mubr.f32.mxu0 %v2998
        %3195 = vmatmul.mubr.f32.gmra.mrb[0].mxu0 %v2996
        %v3196 = vpop.f32.mrb[0].mxu0
        %v3197 = vadd.f32 0.0, %v3196
        %v3198 = vpop.f32.mrb[0].mxu0
        %v3199 = vadd.f32 0.0, %v3198
        %3200 = vmatprep.mubr.f32.mxu0 %v3004
        %3201 = vmatmul.mubr.f32.gmra.mrb[0].mxu0 %v3002
        %v3202 = vpop.f32.mrb[0].mxu0
        %v3203 = vadd.f32 0.0, %v3202
        %v3204 = vpop.f32.mrb[0].mxu0
        %v3205 = vadd.f32 0.0, %v3204
        %3206 = vmatprep.mubr.f32.mxu0 %v3010
        %3207 = vmatmul.mubr.f32.gmra.mrb[0].mxu0 %v3008
        %v3208 = vpop.f32.mrb[0].mxu0
        %v3209 = vadd.f32 0.0, %v3208
        %v3210 = vpop.f32.mrb[0].mxu0
        %v3211 = vadd.f32 0.0, %v3210
        %3212 = vmatprep.mubr.f32.mxu0 %v3016
        %3213 = vmatmul.mubr.f32.gmra.mrb[0].mxu0 %v3014
        %v3214 = vpop.f32.mrb[0].mxu0
        %v3215 = vadd.f32 0.0, %v3214
        %v3216 = vpop.f32.mrb[0].mxu0
        %v3217 = vadd.f32 0.0, %v3216
        %3218 = vmatprep.mubr.f32.mxu0 %v3022
        %3219 = vmatmul.mubr.f32.gmra.mrb[0].mxu0 %v3020
        %v3220 = vpop.f32.mrb[0].mxu0
        %v3221 = vadd.f32 0.0, %v3220
        %v3222 = vpop.f32.mrb[0].mxu0
        %v3223 = vadd.f32 0.0, %v3222
        %3224 = vmatprep.mubr.f32.mxu0 %v3028
        %3225 = vmatmul.mubr.f32.gmra.mrb[0].mxu0 %v3026
        %v3226 = vpop.f32.mrb[0].mxu0
        %v3227 = vadd.f32 0.0, %v3226
        %v3228 = vpop.f32.mrb[0].mxu0
        %v3229 = vadd.f32 0.0, %v3228
        %3230 = vmatprep.mubr.f32.mxu0 %v3034
        %3231 = vmatmul.mubr.f32.gmra.mrb[0].mxu0 %v3032
        %v3232 = vpop.f32.mrb[0].mxu0
        %v3233 = vadd.f32 0.0, %v3232
        %v3234 = vpop.f32.mrb[0].mxu0
        %v3235 = vadd.f32 0.0, %v3234
        %3236 = vmatprep.mubr.f32.mxu0 %v3040
        %3237 = vmatmul.mubr.f32.gmra.mrb[0].mxu0 %v3038
        %v3238 = vpop.f32.mrb[0].mxu0
        %v3239 = vadd.f32 0.0, %v3238
        %v3240 = vpop.f32.mrb[0].mxu0
        %v3241 = vadd.f32 0.0, %v3240
        %3242 = vdwg.mxu0
        %s3243 = scalar_lea.vmem %s485, 192 [#allocation10]
        %3244 = vst [vmem:[%s3243] sm:$0xff] %v3173
        %3245 = vst.msk [vmem:[%s3243 + $0x8] sm:$0xff] %vm1127, %v3175
        %3246 = vst [vmem:[%s3243 + $0x10] sm:$0xff] %v3179
        %3247 = vst.msk [vmem:[%s3243 + $0x18] sm:$0xff] %vm1127, %v3181
        %3248 = vst [vmem:[%s3243 + $0x20] sm:$0xff] %v3185
        %3249 = vst.msk [vmem:[%s3243 + $0x28] sm:$0xff] %vm1127, %v3187
        %3250 = vst [vmem:[%s3243 + $0x30] sm:$0xff] %v3191
        %3251 = vst.msk [vmem:[%s3243 + $0x38] sm:$0xff] %vm1127, %v3193
        %3252 = vst [vmem:[%s3243 + $0x40] sm:$0xff] %v3197
        %3253 = vst.msk [vmem:[%s3243 + $0x48] sm:$0xff] %vm1127, %v3199
        %3254 = vst [vmem:[%s3243 + $0x50] sm:$0xff] %v3203
        %3255 = vst.msk [vmem:[%s3243 + $0x58] sm:$0xff] %vm1127, %v3205
        %3256 = vst [vmem:[%s3243 + $0x60] sm:$0xff] %v3209
        %3257 = vst.msk [vmem:[%s3243 + $0x68] sm:$0xff] %vm1127, %v3211
        %3258 = vst [vmem:[%s3243 + $0x70] sm:$0xff] %v3215
        %3259 = vst.msk [vmem:[%s3243 + $0x78] sm:$0xff] %vm1127, %v3217
        %3260 = vst [vmem:[%s3243 + $0x80] sm:$0xff] %v3221
        %3261 = vst.msk [vmem:[%s3243 + $0x88] sm:$0xff] %vm1127, %v3223
        %3262 = vst [vmem:[%s3243 + $0x90] sm:$0xff] %v3227
        %3263 = vst.msk [vmem:[%s3243 + $0x98] sm:$0xff] %vm1127, %v3229
        %3264 = vst [vmem:[%s3243 + $0xa0] sm:$0xff] %v3233
        %3265 = vst.msk [vmem:[%s3243 + $0xa8] sm:$0xff] %vm1127, %v3235
        %3266 = vst [vmem:[%s3243 + $0xb0] sm:$0xff] %v3239
        %3267 = vst.msk [vmem:[%s3243 + $0xb8] sm:$0xff] %vm1127, %v3241
        %s3268 = sand.u32 %s316, 1
        %s3269 = scalar_lea.sflag [#allocation3], %s3268
        %s3270 = sand.u32 %s316, 1
        %s3271 = smul.addr %s3270, 384
        %s3272 = scalar_lea.vmem [#allocation10], %s3271
        // Predicated region
        $region89: #{tpu_custom_call.1} parent=71 // pred_check
          %p3273 = pneg %p326
        $region90: #{tpu_custom_call.1} parent=71 // pred_check_branch
          %3275 = sbr.rel (%p3273) target = $region92
        $region91: #{tpu_custom_call.1} parent=71 // pred_region
          %s3277 = ssub.s32 6144, 6144
          %3278 = vsyncadd %s3269, %s3277
          %s3279 = smul.addr %s30, 48
          %s3280 = smul.addr %s3279, 128
          %s3281 = scalar_lea.hbm %s13, %s3280
          %s3282 = sshll.u32 %s3272, 4
          %s3283 = int_to_ptr.vmem [resolvable:$true] %s3282
          %3288 = dma.vmem_to_hbm [thread:$0]  %s3283, 6144, %s3281, %s3269, 256, 256, 16
        $region92: #{tpu_custom_call.1} parent=71 // pred_fallthru
          _
      $region72: #{tpu_custom_call.1} parent=5 // pred_fallthru
        _
      %p3289 = scmp.le.s32.totalorder 2, %s25
      // Predicated region
      $region93: #{tpu_custom_call.1} parent=5 // pred_check
        %p3290 = pneg %p3289
      $region94: #{tpu_custom_call.1} parent=5 // pred_check_branch
        %3292 = sbr.rel (%p3290) target = $region96
      $region95: #{tpu_custom_call.1} parent=5 // pred_region
        %s3293 = ssub.s32 %s25, 2
        // Predicated region
        $region97: #{tpu_custom_call.1} parent=95 // pred_check
          %p3294 = pneg %p332
        $region98: #{tpu_custom_call.1} parent=95 // pred_check_branch
          %3296 = sbr.rel (%p3294) target = $region100
        $region99: #{tpu_custom_call.1} parent=95 // pred_region
          %s3297 = sand.u32 %s317, 1
          %s3298 = scalar_lea.sflag [#allocation3], %s3297
          %s3299 = sand.u32 %s317, 1
          %s3300 = smul.addr %s3299, 384
          %s3301 = scalar_lea.vmem [#allocation10], %s3300
          %3302 = dma.done %s3298, 6144
        $region100: #{tpu_custom_call.1} parent=95 // pred_fallthru
          _
      $region96: #{tpu_custom_call.1} parent=5 // pred_fallthru
        _
    $region6: #{tpu_custom_call.1} parent=1 // loop_footer
      %s29 = sadd.s32 1, %s25
    $region7: #{tpu_custom_call.1} parent=1 // loop_footer_branch
      %24 = sbr.rel target = $region3
    $region8: #{tpu_custom_call.1} parent=1 // loop_exit
      _
    %3303 = vsyncpa [#allocation3], 1
    %s3304 = scalar_lea.sflag [#allocation3], 1
    %3305 = vsyncpa %s3304, 1
    %3306 = vsyncpa [#allocation4], 1
    %s3307 = scalar_lea.sflag [#allocation4], 1
    %3308 = vsyncpa %s3307, 1
    %3309 = vsyncpa [#allocation6], 1
    %3310 = vsyncpa [#allocation9], 1

</llo_original>
